<compile_context>
chip_gen: v7x
topology: tpu7x:2x2x1
jax: 0.10.0
libtpu: 0.0.40
codegen_flags: <defaults>
</compile_context>

<pallas_src>
import numpy as np
import jax
import jax.numpy as jnp
from jax.experimental import pallas as pl
from jax.experimental.pallas import tpu as pltpu

HC = 18  # hidden_channel (hard-coded to 18 inside Model.__init__)


def _round_up(x, m):
    return ((x + m - 1) // m) * m


# --------------------------------------------------------------------------
# Pallas kernel: recurrent core of one bidirectional-LSTM pair.
# One grid step == one LSTM (forward + backward head); grid=(2,) covers
# lstm1 and lstm2 of a stage.  Gate order = PyTorch (i | f | g | o), each gate
# padded to a 128-lane group.  Only h @ W_hh^T is computed in the time loop;
# x @ W_ih^T + b arrives as pre-activations.
# --------------------------------------------------------------------------
def _make_bilstm_kernel(T, B, Hp):
    Gp = 4 * Hp

    def kernel(p_ref, whh_ref, out_ref):
        # p_ref:   (2, T, B, Gp) f32  pre-activations (fwd head 0, bwd head 1)
        # whh_ref: (2, Hp, Gp)   bf16 recurrent weights (gate-padded)
        # out_ref: (2, T, B, Hp) f32  hidden states (head 1 in reversed time)
        wdt = whh_ref.dtype

        def cell(pre, h, c, k):
            gates = pre + jnp.dot(h.astype(wdt), whh_ref[k],
                                  preferred_element_type=jnp.float32)
            i = jax.nn.sigmoid(gates[:, 0 * Hp:1 * Hp])
            f = jax.nn.sigmoid(gates[:, 1 * Hp:2 * Hp])
            g = jnp.tanh(gates[:, 2 * Hp:3 * Hp])
            o = jax.nn.sigmoid(gates[:, 3 * Hp:4 * Hp])
            c_new = f * c + i * g
            h_new = o * jnp.tanh(c_new)
            return h_new, c_new

        def step(t, carry):
            hf, cf, hb, cb = carry
            hf, cf = cell(p_ref[0, t], hf, cf, 0)            # forward head
            hb, cb = cell(p_ref[1, T - 1 - t], hb, cb, 1)    # backward head
            out_ref[0, t] = hf                               # lane-dense (B, 128)
            out_ref[1, t] = hb
            return hf, cf, hb, cb

        z = jnp.zeros((B, Hp), jnp.float32)
        jax.lax.fori_loop(0, T, step, (z, z, z, z), unroll=(T <= 32))

    return kernel


def fused_bilstm4(preacts, whh):
    """preacts: (4, T, B, Gp) f32 pre-activations, whh: (4, Hp, Gp) bf16.
    Heads: [lstm1_fwd, lstm1_bwd, lstm2_fwd, lstm2_bwd]; program i handles
    heads (2i, 2i+1).  Returns (4, T, B, Hp) hidden states; backward heads are
    in reversed (kernel) time order."""
    _, T, B, Gp = preacts.shape
    Hp = whh.shape[1]
    return pl.pallas_call(
        _make_bilstm_kernel(T, B, Hp),
        out_shape=jax.ShapeDtypeStruct((4, T, B, Hp), jnp.float32),
        grid=(2,),
        in_specs=[
            pl.BlockSpec((2, T, B, Gp), lambda i: (i, 0, 0, 0)),
            pl.BlockSpec((2, Hp, Gp), lambda i: (i, 0, 0)),
        ],
        out_specs=pl.BlockSpec((2, T, B, Hp), lambda i: (i, 0, 0, 0)),
        compiler_params=pltpu.CompilerParams(
            dimension_semantics=("parallel",)),   # lstm1/lstm2 -> 2 TCs on v7x
    )(preacts, whh)


def bilstm_pair(xv, xe, lp):
    """Run lstm1 (on xv) and lstm2 (on xe), both bidirectional.
    xv, xe: (T, B, In).  Returns two (T, B, 2H) outputs (PyTorch layout)."""
    T, B, In = xv.shape
    H = In // 2
    whh = lp["whh"]
    Hp = whh.shape[1]
    Gp = 4 * Hp
    cdt = lp["wih_v"].dtype

    # Input projection + bias hoisted out of the recurrence:
    # one (T*B, In) @ (In, 2*Gp) matmul per stream, f32 accumulation.
    pv = jnp.dot(xv.reshape(T * B, In).astype(cdt), lp["wih_v"],
                 preferred_element_type=jnp.float32)
    pe = jnp.dot(xe.reshape(T * B, In).astype(cdt), lp["wih_e"],
                 preferred_element_type=jnp.float32)
    pv = pv.reshape(T, B, 2, Gp).transpose(2, 0, 1, 3)     # (2, T, B, Gp)
    pe = pe.reshape(T, B, 2, Gp).transpose(2, 0, 1, 3)
    preacts = jnp.concatenate([pv, pe], axis=0) + lp["b"][:, None, None, :]

    out = fused_bilstm4(preacts, whh)                      # (4, T, B, Hp)
    h1f = out[0, :, :, :H]
    h1b = out[1, ::-1, :, :H]                              # un-reverse bwd head
    h2f = out[2, :, :, :H]
    h2b = out[3, ::-1, :, :H]
    ov = jnp.concatenate([h1f, h1b], axis=-1)
    oe = jnp.concatenate([h2f, h2b], axis=-1)
    return ov, oe


# --------------------------------------------------------------------------
# Glue ops (plain JAX; tiny K/N channel dims stay with XLA per perf review)
# --------------------------------------------------------------------------
def _batchnorm(x, axes, eps=1e-5):
    # gamma = 1, beta = 0 (bn_init / default); biased variance like PyTorch.
    mean = jnp.mean(x, axis=axes, keepdims=True)
    var = jnp.mean(jnp.square(x - mean), axis=axes, keepdims=True)
    return (x - mean) * jax.lax.rsqrt(var + eps)


def dgn_block(fv, fe, p, relu):
    """fv, fe: (NM, T, V, C) channel-last slabs.  The four incidence-matrix
    aggregations + the two 1x1 convs are folded (at init) into one
    (V*2C, 2*V*O) matrix, so the block body is a single matmul."""
    NM, T, V, C = fv.shape
    O = p["bv"].shape[0]
    x = jnp.concatenate([fv, fe], axis=-1).reshape(NM * T, V * 2 * C)
    y = jnp.dot(x, p["K"], preferred_element_type=jnp.float32)
    y = y.reshape(NM, T, 2, V, O)
    fvp = _batchnorm(y[:, :, 0] + p["bv"], axes=(0, 1, 2))
    fep = _batchnorm(y[:, :, 1] + p["be"], axes=(0, 1, 2))
    if relu:
        fvp = jnp.maximum(fvp, 0.0)
        fep = jnp.maximum(fep, 0.0)
    return fvp, fep


# --------------------------------------------------------------------------
# Encoder / Decoder / Model forward
# --------------------------------------------------------------------------
def encoder_forward(fv, fe, p):
    N, C, T, V, M = fv.shape
    # (N,C,T,V,M) -> (NM, T, V, C) channel-last slab
    fv = fv.transpose(0, 4, 2, 3, 1).reshape(N * M, T, V, C)
    fe = fe.transpose(0, 4, 2, 3, 1).reshape(N * M, T, V, C)
    fv, fe = dgn_block(fv, fe, p["l1"], True)
    fv, fe = dgn_block(fv, fe, p["l2"], True)
    fv, fe = dgn_block(fv, fe, p["l3"], True)
    # -> (T, NM, HC*V) with channel-major feature order (matches reference)
    xv = fv.transpose(1, 0, 3, 2).reshape(T, N * M, HC * V)
    xe = fe.transpose(1, 0, 3, 2).reshape(T, N * M, HC * V)
    ov, oe = bilstm_pair(xv, xe, p["lstm"])
    return ov.reshape(T, N, M, HC * V), oe.reshape(T, N, M, HC * V)


def decoder_forward(fv, fe, p):
    T, N, M, Hidden = fv.shape
    V = Hidden // HC
    ov, oe = bilstm_pair(fv.reshape(T, N * M, Hidden),
                         fe.reshape(T, N * M, Hidden), p["lstm"])
    # reference: (T,NM,HC,V).permute(1,2,0,3); here kept channel-last (NM,T,V,HC)
    fv = ov.reshape(T, N * M, HC, V).transpose(1, 0, 3, 2)
    fe = oe.reshape(T, N * M, HC, V).transpose(1, 0, 3, 2)
    fv, fe = dgn_block(fv, fe, p["l1"], True)
    fv, fe = dgn_block(fv, fe, p["l2"], True)
    fv, fe = dgn_block(fv, fe, p["l3"], False)
    out = (fv + fe) * 0.5                                      # (NM, T, V, 3)
    out = out.reshape(N, M, T, V, 3).transpose(0, 4, 2, 3, 1)  # (N, 3, T, V, M)
    return out


@jax.jit
def model_forward(fv, fe, params):
    # data_bn: per (c, v, m) channel, stats over (N, T) -- identical to the
    # reference's BatchNorm1d applied to the (N, M*V*C, T) view, no transposes.
    fv = _batchnorm(fv, axes=(0, 2))
    fe = _batchnorm(fe, axes=(0, 2))
    fv_enc, fe_enc = encoder_forward(fv, fe, params["encoder"])
    fv_dec = decoder_forward(fv_enc, fe_enc, params["decoder"])
    return fv_dec, fv_enc


# --------------------------------------------------------------------------
# Deterministic parameter initialization (weights pre-transposed, gate-padded,
# DGN aggregation+conv folded into a single matrix per block).
# --------------------------------------------------------------------------
def init_model_params(key, V, in_channels=3):
    keys = iter(jax.random.split(key, 128))

    def uniform(shape, fan_in):
        bound = 1.0 / np.sqrt(fan_in)
        return jax.random.uniform(next(keys), shape, jnp.float32, -bound, bound)

    # Directed chain graph with a root self-edge so that E == V (the module
    # assumes E == V == num_point).
    source_M = np.zeros((V, V), np.float32)
    target_M = np.zeros((V, V), np.float32)
    for e in range(V - 1):
        source_M[e, e] = 1.0
        target_M[e + 1, e] = 1.0
    source_M[0, V - 1] = 1.0
    target_M[0, V - 1] = 1.0
    sM = jnp.asarray(source_M)
    tM = jnp.asarray(target_M)
    eye = jnp.eye(V, dtype=jnp.float32)

    def dgn_params(cin, cout):
        # 1x1 conv weights with feature axis first (pre-transposed: (3*cin, cout))
        Hv_W = uniform((3 * cin, cout), 3 * cin)
        Hv_b = uniform((cout,), 3 * cin)
        He_W = uniform((3 * cin, cout), 3 * cin)
        He_b = uniform((cout,), 3 * cin)
        W0, W1, W2 = Hv_W[:cin], Hv_W[cin:2 * cin], Hv_W[2 * cin:]
        U0, U1, U2 = He_W[:cin], He_W[cin:2 * cin], He_W[2 * cin:]
        # Fold incidence aggregation + 1x1 conv into one matrix acting on
        # concat([fv, fe], channel-last) flattened over (V, 2C):
        #   fvp[b,t,w,o] = sum_c fv[btwc] W0[c,o]
        #                + sum_{v,c} fe[btvc] (sM[w,v] W1[c,o] + tM[w,v] W2[c,o])
        #   fep[b,t,w,o] = sum_{v,c} fv[btvc] (sM[v,w] U1[c,o] + tM[v,w] U2[c,o])
        #                + sum_c fe[btwc] U0[c,o]
        KV = jnp.concatenate(
            [jnp.einsum("vw,jo->vjwo", eye, W0),
             jnp.einsum("wv,jo->vjwo", sM, W1) + jnp.einsum("wv,jo->vjwo", tM, W2)],
            axis=1).reshape(V * 2 * cin, V * cout)
        KE = jnp.concatenate(
            [jnp.einsum("vw,jo->vjwo", sM, U1) + jnp.einsum("vw,jo->vjwo", tM, U2),
             jnp.einsum("vw,jo->vjwo", eye, U0)],
            axis=1).reshape(V * 2 * cin, V * cout)
        return {"K": jnp.concatenate([KV, KE], axis=1),   # (V*2C, 2*V*O)
                "bv": Hv_b, "be": He_b}

    def lstm_stage_params(in_size, hidden):
        # 4 heads: [lstm1_fwd, lstm1_bwd, lstm2_fwd, lstm2_bwd]
        H = hidden
        Hp = _round_up(H, 128)
        Gp = 4 * Hp

        def pad_gate_cols(WT):   # (K, 4H) -> (K, Gp): each gate in a 128-lane group
            out = jnp.zeros((WT.shape[0], Gp), jnp.float32)
            for g in range(4):
                out = out.at[:, g * Hp:g * Hp + H].set(WT[:, g * H:(g + 1) * H])
            return out

        wih, whh, bias = [], [], []
        for _ in range(4):
            W_ih = uniform((4 * H, in_size), H)
            W_hh = uniform((4 * H, H), H)
            b_ih = uniform((4 * H,), H)
            b_hh = uniform((4 * H,), H)
            wih.append(pad_gate_cols(W_ih.T))                              # (In, Gp)
            whh.append(jnp.zeros((Hp, Gp), jnp.float32)
                       .at[:H].set(pad_gate_cols(W_hh.T)))                 # (Hp, Gp)
            bias.append(pad_gate_cols((b_ih + b_hh)[None, :])[0])          # (Gp,)
        return {"wih_v": jnp.concatenate(wih[0:2], axis=1).astype(jnp.bfloat16),
                "wih_e": jnp.concatenate(wih[2:4], axis=1).astype(jnp.bfloat16),
                "whh": jnp.stack(whh).astype(jnp.bfloat16),                # (4,Hp,Gp)
                "b": jnp.stack(bias)}                                      # (4,Gp) f32

    lstm_in = V * HC
    lstm_h = (V * HC) // 2

    encoder = {"l1": dgn_params(in_channels, 6),
               "l2": dgn_params(6, 12),
               "l3": dgn_params(12, HC),
               "lstm": lstm_stage_params(lstm_in, lstm_h)}
    decoder = {"l1": dgn_params(HC, 12),
               "l2": dgn_params(12, 6),
               "l3": dgn_params(6, 3),
               "lstm": lstm_stage_params(lstm_in, lstm_h)}
    return {"encoder": encoder, "decoder": decoder}


if __name__ == "__main__":
    # Small shapes: N=2 sequences, C=3 channels, T=8 frames, V=8 joints, M=1 person
    N, C, T, V, M = 2, 3, 8, 8, 1
    key = jax.random.PRNGKey(0)
    kp, kv, ke = jax.random.split(key, 3)

    params = init_model_params(kp, V=V, in_channels=C)
    fv = jax.random.normal(kv, (N, C, T, V, M), jnp.float32)
    fe = jax.random.normal(ke, (N, C, T, V, M), jnp.float32)

    fv_dec, fv_enc = model_forward(fv, fe, params)
    jax.block_until_ready((fv_dec, fv_enc))

    assert fv_dec.shape == (N, 3, T, V, M), fv_dec.shape
    assert fv_enc.shape == (T, N, M, HC * V), fv_enc.shape
    assert bool(jnp.all(jnp.isfinite(fv_dec))) and bool(jnp.all(jnp.isfinite(fv_enc)))
    print("KERNEL_OK")
</pallas_src>

<mosaic_0001>
module attributes {stable_mosaic.version = 11 : i64} {
  func.func @kernel(%arg0: i32, %arg1: memref<2x8x2x512xf32, #tpu.memory_space<vmem>>, %arg2: memref<2x128x512xbf16, #tpu.memory_space<vmem>>, %arg3: memref<2x8x2x128xf32, #tpu.memory_space<vmem>>) attributes {dimension_semantics = [#tpu.dimension_semantics<parallel>], iteration_bounds = array<i64: 2>, scalar_prefetch = 0 : i64, scratch_operands = 0 : i64, tpu.core_type = #tpu.core_type<tc>, window_params = [{transform_indices = @transform_0, window_bounds = array<i64: 2, 8, 2, 512>}, {transform_indices = @transform_1, window_bounds = array<i64: 2, 128, 512>}, {transform_indices = @transform_2, window_bounds = array<i64: 2, 8, 2, 128>}]} {
    %cst = arith.constant 0.000000e+00 : f32
    %0 = vector.broadcast %cst : f32 to vector<2x128xf32>
    %c0_i32 = arith.constant 0 : i32
    %c0 = arith.constant 0 : index
    %1 = arith.index_cast %c0_i32 : i32 to index
    %c0_0 = arith.constant 0 : index
    %c0_1 = arith.constant 0 : index
    %2 = vector.load %arg1[%c0, %1, %c0_0, %c0_1] : memref<2x8x2x512xf32, #tpu.memory_space<vmem>>, vector<1x1x2x512xf32>
    %3 = vector.shape_cast %2 : vector<1x1x2x512xf32> to vector<2x512xf32>
    %4 = arith.truncf %0 : vector<2x128xf32> to vector<2x128xbf16>
    %c0_2 = arith.constant 0 : index
    %c0_3 = arith.constant 0 : index
    %c0_4 = arith.constant 0 : index
    %5 = vector.load %arg2[%c0_2, %c0_3, %c0_4] : memref<2x128x512xbf16, #tpu.memory_space<vmem>>, vector<1x128x512xbf16>
    %6 = vector.shape_cast %5 : vector<1x128x512xbf16> to vector<128x512xbf16>
    %cst_5 = arith.constant dense<0.000000e+00> : vector<2x512xf32>
    %7 = tpu.matmul %4, %6, %cst_5 {dimension_numbers = #tpu.dot_dimension_numbers<[1], [0], [0], [1], [0, 0, 1, 1], [], []>} : vector<2x128xbf16>, vector<128x512xbf16>, vector<2x512xf32> -> vector<2x512xf32>
    %8 = arith.addf %3, %7 : vector<2x512xf32>
    %9 = vector.extract_strided_slice %8 {offsets = [0, 0], sizes = [2, 128], strides = [1, 1]} : vector<2x512xf32> to vector<2x128xf32>
    %10 = arith.negf %9 : vector<2x128xf32>
    %11 = math.exp %10 : vector<2x128xf32>
    %cst_6 = arith.constant 1.000000e+00 : f32
    %12 = vector.broadcast %cst_6 : f32 to vector<2x128xf32>
    %13 = arith.addf %12, %11 : vector<2x128xf32>
    %14 = arith.divf %12, %13 : vector<2x128xf32>
    %15 = vector.extract_strided_slice %8 {offsets = [0, 128], sizes = [2, 128], strides = [1, 1]} : vector<2x512xf32> to vector<2x128xf32>
    %16 = arith.negf %15 : vector<2x128xf32>
    %17 = math.exp %16 : vector<2x128xf32>
    %cst_7 = arith.constant 1.000000e+00 : f32
    %18 = vector.broadcast %cst_7 : f32 to vector<2x128xf32>
    %19 = arith.addf %18, %17 : vector<2x128xf32>
    %20 = arith.divf %18, %19 : vector<2x128xf32>
    %21 = vector.extract_strided_slice %8 {offsets = [0, 256], sizes = [2, 128], strides = [1, 1]} : vector<2x512xf32> to vector<2x128xf32>
    %22 = math.tanh %21 : vector<2x128xf32>
    %23 = vector.extract_strided_slice %8 {offsets = [0, 384], sizes = [2, 128], strides = [1, 1]} : vector<2x512xf32> to vector<2x128xf32>
    %24 = arith.negf %23 : vector<2x128xf32>
    %25 = math.exp %24 : vector<2x128xf32>
    %cst_8 = arith.constant 1.000000e+00 : f32
    %26 = vector.broadcast %cst_8 : f32 to vector<2x128xf32>
    %27 = arith.addf %26, %25 : vector<2x128xf32>
    %28 = arith.divf %26, %27 : vector<2x128xf32>
    %29 = arith.mulf %20, %0 : vector<2x128xf32>
    %30 = arith.mulf %14, %22 : vector<2x128xf32>
    %31 = arith.addf %29, %30 : vector<2x128xf32>
    %32 = math.tanh %31 : vector<2x128xf32>
    %33 = arith.mulf %28, %32 : vector<2x128xf32>
    %c7_i32 = arith.constant 7 : i32
    %34 = arith.subi %c7_i32, %c0_i32 : i32
    %c1 = arith.constant 1 : index
    %35 = arith.index_cast %34 : i32 to index
    %c0_9 = arith.constant 0 : index
    %c0_10 = arith.constant 0 : index
    %36 = vector.load %arg1[%c1, %35, %c0_9, %c0_10] : memref<2x8x2x512xf32, #tpu.memory_space<vmem>>, vector<1x1x2x512xf32>
    %37 = vector.shape_cast %36 : vector<1x1x2x512xf32> to vector<2x512xf32>
    %38 = arith.truncf %0 : vector<2x128xf32> to vector<2x128xbf16>
    %c1_11 = arith.constant 1 : index
    %c0_12 = arith.constant 0 : index
    %c0_13 = arith.constant 0 : index
    %39 = vector.load %arg2[%c1_11, %c0_12, %c0_13] : memref<2x128x512xbf16, #tpu.memory_space<vmem>>, vector<1x128x512xbf16>
    %40 = vector.shape_cast %39 : vector<1x128x512xbf16> to vector<128x512xbf16>
    %cst_14 = arith.constant dense<0.000000e+00> : vector<2x512xf32>
    %41 = tpu.matmul %38, %40, %cst_14 {dimension_numbers = #tpu.dot_dimension_numbers<[1], [0], [0], [1], [0, 0, 1, 1], [], []>} : vector<2x128xbf16>, vector<128x512xbf16>, vector<2x512xf32> -> vector<2x512xf32>
    %42 = arith.addf %37, %41 : vector<2x512xf32>
    %43 = vector.extract_strided_slice %42 {offsets = [0, 0], sizes = [2, 128], strides = [1, 1]} : vector<2x512xf32> to vector<2x128xf32>
    %44 = arith.negf %43 : vector<2x128xf32>
    %45 = math.exp %44 : vector<2x128xf32>
    %cst_15 = arith.constant 1.000000e+00 : f32
    %46 = vector.broadcast %cst_15 : f32 to vector<2x128xf32>
    %47 = arith.addf %46, %45 : vector<2x128xf32>
    %48 = arith.divf %46, %47 : vector<2x128xf32>
    %49 = vector.extract_strided_slice %42 {offsets = [0, 128], sizes = [2, 128], strides = [1, 1]} : vector<2x512xf32> to vector<2x128xf32>
    %50 = arith.negf %49 : vector<2x128xf32>
    %51 = math.exp %50 : vector<2x128xf32>
    %cst_16 = arith.constant 1.000000e+00 : f32
    %52 = vector.broadcast %cst_16 : f32 to vector<2x128xf32>
    %53 = arith.addf %52, %51 : vector<2x128xf32>
    %54 = arith.divf %52, %53 : vector<2x128xf32>
    %55 = vector.extract_strided_slice %42 {offsets = [0, 256], sizes = [2, 128], strides = [1, 1]} : vector<2x512xf32> to vector<2x128xf32>
    %56 = math.tanh %55 : vector<2x128xf32>
    %57 = vector.extract_strided_slice %42 {offsets = [0, 384], sizes = [2, 128], strides = [1, 1]} : vector<2x512xf32> to vector<2x128xf32>
    %58 = arith.negf %57 : vector<2x128xf32>
    %59 = math.exp %58 : vector<2x128xf32>
    %cst_17 = arith.constant 1.000000e+00 : f32
    %60 = vector.broadcast %cst_17 : f32 to vector<2x128xf32>
    %61 = arith.addf %60, %59 : vector<2x128xf32>
    %62 = arith.divf %60, %61 : vector<2x128xf32>
    %63 = arith.mulf %54, %0 : vector<2x128xf32>
    %64 = arith.mulf %48, %56 : vector<2x128xf32>
    %65 = arith.addf %63, %64 : vector<2x128xf32>
    %66 = math.tanh %65 : vector<2x128xf32>
    %67 = arith.mulf %62, %66 : vector<2x128xf32>
    %c0_18 = arith.constant 0 : index
    %68 = arith.index_cast %c0_i32 : i32 to index
    %c0_19 = arith.constant 0 : index
    %c0_20 = arith.constant 0 : index
    %69 = vector.load %arg3[%c0_18, %68, %c0_19, %c0_20] : memref<2x8x2x128xf32, #tpu.memory_space<vmem>>, vector<1x1x2x128xf32>
    %70 = vector.shape_cast %69 : vector<1x1x2x128xf32> to vector<2x128xf32>
    %71 = vector.shape_cast %33 : vector<2x128xf32> to vector<1x1x2x128xf32>
    tpu.vector_store %arg3[%c0_18, %68, %c0_19, %c0_20], %71 {strides = array<i32>} : memref<2x8x2x128xf32, #tpu.memory_space<vmem>>, vector<1x1x2x128xf32>,
    %c1_21 = arith.constant 1 : index
    %72 = arith.index_cast %c0_i32 : i32 to index
    %c0_22 = arith.constant 0 : index
    %c0_23 = arith.constant 0 : index
    %73 = vector.load %arg3[%c1_21, %72, %c0_22, %c0_23] : memref<2x8x2x128xf32, #tpu.memory_space<vmem>>, vector<1x1x2x128xf32>
    %74 = vector.shape_cast %73 : vector<1x1x2x128xf32> to vector<2x128xf32>
    %75 = vector.shape_cast %67 : vector<2x128xf32> to vector<1x1x2x128xf32>
    tpu.vector_store %arg3[%c1_21, %72, %c0_22, %c0_23], %75 {strides = array<i32>} : memref<2x8x2x128xf32, #tpu.memory_space<vmem>>, vector<1x1x2x128xf32>,
    %c1_i32 = arith.constant 1 : i32
    %c0_24 = arith.constant 0 : index
    %76 = arith.index_cast %c1_i32 : i32 to index
    %c0_25 = arith.constant 0 : index
    %c0_26 = arith.constant 0 : index
    %77 = vector.load %arg1[%c0_24, %76, %c0_25, %c0_26] : memref<2x8x2x512xf32, #tpu.memory_space<vmem>>, vector<1x1x2x512xf32>
    %78 = vector.shape_cast %77 : vector<1x1x2x512xf32> to vector<2x512xf32>
    %79 = arith.truncf %33 : vector<2x128xf32> to vector<2x128xbf16>
    %c0_27 = arith.constant 0 : index
    %c0_28 = arith.constant 0 : index
    %c0_29 = arith.constant 0 : index
    %80 = vector.load %arg2[%c0_27, %c0_28, %c0_29] : memref<2x128x512xbf16, #tpu.memory_space<vmem>>, vector<1x128x512xbf16>
    %81 = vector.shape_cast %80 : vector<1x128x512xbf16> to vector<128x512xbf16>
    %cst_30 = arith.constant dense<0.000000e+00> : vector<2x512xf32>
    %82 = tpu.matmul %79, %81, %cst_30 {dimension_numbers = #tpu.dot_dimension_numbers<[1], [0], [0], [1], [0, 0, 1, 1], [], []>} : vector<2x128xbf16>, vector<128x512xbf16>, vector<2x512xf32> -> vector<2x512xf32>
    %83 = arith.addf %78, %82 : vector<2x512xf32>
    %84 = vector.extract_strided_slice %83 {offsets = [0, 0], sizes = [2, 128], strides = [1, 1]} : vector<2x512xf32> to vector<2x128xf32>
    %85 = arith.negf %84 : vector<2x128xf32>
    %86 = math.exp %85 : vector<2x128xf32>
    %cst_31 = arith.constant 1.000000e+00 : f32
    %87 = vector.broadcast %cst_31 : f32 to vector<2x128xf32>
    %88 = arith.addf %87, %86 : vector<2x128xf32>
    %89 = arith.divf %87, %88 : vector<2x128xf32>
    %90 = vector.extract_strided_slice %83 {offsets = [0, 128], sizes = [2, 128], strides = [1, 1]} : vector<2x512xf32> to vector<2x128xf32>
    %91 = arith.negf %90 : vector<2x128xf32>
    %92 = math.exp %91 : vector<2x128xf32>
    %cst_32 = arith.constant 1.000000e+00 : f32
    %93 = vector.broadcast %cst_32 : f32 to vector<2x128xf32>
    %94 = arith.addf %93, %92 : vector<2x128xf32>
    %95 = arith.divf %93, %94 : vector<2x128xf32>
    %96 = vector.extract_strided_slice %83 {offsets = [0, 256], sizes = [2, 128], strides = [1, 1]} : vector<2x512xf32> to vector<2x128xf32>
    %97 = math.tanh %96 : vector<2x128xf32>
    %98 = vector.extract_strided_slice %83 {offsets = [0, 384], sizes = [2, 128], strides = [1, 1]} : vector<2x512xf32> to vector<2x128xf32>
    %99 = arith.negf %98 : vector<2x128xf32>
    %100 = math.exp %99 : vector<2x128xf32>
    %cst_33 = arith.constant 1.000000e+00 : f32
    %101 = vector.broadcast %cst_33 : f32 to vector<2x128xf32>
    %102 = arith.addf %101, %100 : vector<2x128xf32>
    %103 = arith.divf %101, %102 : vector<2x128xf32>
    %104 = arith.mulf %95, %31 : vector<2x128xf32>
    %105 = arith.mulf %89, %97 : vector<2x128xf32>
    %106 = arith.addf %104, %105 : vector<2x128xf32>
    %107 = math.tanh %106 : vector<2x128xf32>
    %108 = arith.mulf %103, %107 : vector<2x128xf32>
    %c7_i32_34 = arith.constant 7 : i32
    %109 = arith.subi %c7_i32_34, %c1_i32 : i32
    %c1_35 = arith.constant 1 : index
    %110 = arith.index_cast %109 : i32 to index
    %c0_36 = arith.constant 0 : index
    %c0_37 = arith.constant 0 : index
    %111 = vector.load %arg1[%c1_35, %110, %c0_36, %c0_37] : memref<2x8x2x512xf32, #tpu.memory_space<vmem>>, vector<1x1x2x512xf32>
    %112 = vector.shape_cast %111 : vector<1x1x2x512xf32> to vector<2x512xf32>
    %113 = arith.truncf %67 : vector<2x128xf32> to vector<2x128xbf16>
    %c1_38 = arith.constant 1 : index
    %c0_39 = arith.constant 0 : index
    %c0_40 = arith.constant 0 : index
    %114 = vector.load %arg2[%c1_38, %c0_39, %c0_40] : memref<2x128x512xbf16, #tpu.memory_space<vmem>>, vector<1x128x512xbf16>
    %115 = vector.shape_cast %114 : vector<1x128x512xbf16> to vector<128x512xbf16>
    %cst_41 = arith.constant dense<0.000000e+00> : vector<2x512xf32>
    %116 = tpu.matmul %113, %115, %cst_41 {dimension_numbers = #tpu.dot_dimension_numbers<[1], [0], [0], [1], [0, 0, 1, 1], [], []>} : vector<2x128xbf16>, vector<128x512xbf16>, vector<2x512xf32> -> vector<2x512xf32>
    %117 = arith.addf %112, %116 : vector<2x512xf32>
    %118 = vector.extract_strided_slice %117 {offsets = [0, 0], sizes = [2, 128], strides = [1, 1]} : vector<2x512xf32> to vector<2x128xf32>
    %119 = arith.negf %118 : vector<2x128xf32>
    %120 = math.exp %119 : vector<2x128xf32>
    %cst_42 = arith.constant 1.000000e+00 : f32
    %121 = vector.broadcast %cst_42 : f32 to vector<2x128xf32>
    %122 = arith.addf %121, %120 : vector<2x128xf32>
    %123 = arith.divf %121, %122 : vector<2x128xf32>
    %124 = vector.extract_strided_slice %117 {offsets = [0, 128], sizes = [2, 128], strides = [1, 1]} : vector<2x512xf32> to vector<2x128xf32>
    %125 = arith.negf %124 : vector<2x128xf32>
    %126 = math.exp %125 : vector<2x128xf32>
    %cst_43 = arith.constant 1.000000e+00 : f32
    %127 = vector.broadcast %cst_43 : f32 to vector<2x128xf32>
    %128 = arith.addf %127, %126 : vector<2x128xf32>
    %129 = arith.divf %127, %128 : vector<2x128xf32>
    %130 = vector.extract_strided_slice %117 {offsets = [0, 256], sizes = [2, 128], strides = [1, 1]} : vector<2x512xf32> to vector<2x128xf32>
    %131 = math.tanh %130 : vector<2x128xf32>
    %132 = vector.extract_strided_slice %117 {offsets = [0, 384], sizes = [2, 128], strides = [1, 1]} : vector<2x512xf32> to vector<2x128xf32>
    %133 = arith.negf %132 : vector<2x128xf32>
    %134 = math.exp %133 : vector<2x128xf32>
    %cst_44 = arith.constant 1.000000e+00 : f32
    %135 = vector.broadcast %cst_44 : f32 to vector<2x128xf32>
    %136 = arith.addf %135, %134 : vector<2x128xf32>
    %137 = arith.divf %135, %136 : vector<2x128xf32>
    %138 = arith.mulf %129, %65 : vector<2x128xf32>
    %139 = arith.mulf %123, %131 : vector<2x128xf32>
    %140 = arith.addf %138, %139 : vector<2x128xf32>
    %141 = math.tanh %140 : vector<2x128xf32>
    %142 = arith.mulf %137, %141 : vector<2x128xf32>
    %c0_45 = arith.constant 0 : index
    %143 = arith.index_cast %c1_i32 : i32 to index
    %c0_46 = arith.constant 0 : index
    %c0_47 = arith.constant 0 : index
    %144 = vector.load %arg3[%c0_45, %143, %c0_46, %c0_47] : memref<2x8x2x128xf32, #tpu.memory_space<vmem>>, vector<1x1x2x128xf32>
    %145 = vector.shape_cast %144 : vector<1x1x2x128xf32> to vector<2x128xf32>
    %146 = vector.shape_cast %108 : vector<2x128xf32> to vector<1x1x2x128xf32>
    tpu.vector_store %arg3[%c0_45, %143, %c0_46, %c0_47], %146 {strides = array<i32>} : memref<2x8x2x128xf32, #tpu.memory_space<vmem>>, vector<1x1x2x128xf32>,
    %c1_48 = arith.constant 1 : index
    %147 = arith.index_cast %c1_i32 : i32 to index
    %c0_49 = arith.constant 0 : index
    %c0_50 = arith.constant 0 : index
    %148 = vector.load %arg3[%c1_48, %147, %c0_49, %c0_50] : memref<2x8x2x128xf32, #tpu.memory_space<vmem>>, vector<1x1x2x128xf32>
    %149 = vector.shape_cast %148 : vector<1x1x2x128xf32> to vector<2x128xf32>
    %150 = vector.shape_cast %142 : vector<2x128xf32> to vector<1x1x2x128xf32>
    tpu.vector_store %arg3[%c1_48, %147, %c0_49, %c0_50], %150 {strides = array<i32>} : memref<2x8x2x128xf32, #tpu.memory_space<vmem>>, vector<1x1x2x128xf32>,
    %c2_i32 = arith.constant 2 : i32
    %c0_51 = arith.constant 0 : index
    %151 = arith.index_cast %c2_i32 : i32 to index
    %c0_52 = arith.constant 0 : index
    %c0_53 = arith.constant 0 : index
    %152 = vector.load %arg1[%c0_51, %151, %c0_52, %c0_53] : memref<2x8x2x512xf32, #tpu.memory_space<vmem>>, vector<1x1x2x512xf32>
    %153 = vector.shape_cast %152 : vector<1x1x2x512xf32> to vector<2x512xf32>
    %154 = arith.truncf %108 : vector<2x128xf32> to vector<2x128xbf16>
    %c0_54 = arith.constant 0 : index
    %c0_55 = arith.constant 0 : index
    %c0_56 = arith.constant 0 : index
    %155 = vector.load %arg2[%c0_54, %c0_55, %c0_56] : memref<2x128x512xbf16, #tpu.memory_space<vmem>>, vector<1x128x512xbf16>
    %156 = vector.shape_cast %155 : vector<1x128x512xbf16> to vector<128x512xbf16>
    %cst_57 = arith.constant dense<0.000000e+00> : vector<2x512xf32>
    %157 = tpu.matmul %154, %156, %cst_57 {dimension_numbers = #tpu.dot_dimension_numbers<[1], [0], [0], [1], [0, 0, 1, 1], [], []>} : vector<2x128xbf16>, vector<128x512xbf16>, vector<2x512xf32> -> vector<2x512xf32>
    %158 = arith.addf %153, %157 : vector<2x512xf32>
    %159 = vector.extract_strided_slice %158 {offsets = [0, 0], sizes = [2, 128], strides = [1, 1]} : vector<2x512xf32> to vector<2x128xf32>
    %160 = arith.negf %159 : vector<2x128xf32>
    %161 = math.exp %160 : vector<2x128xf32>
    %cst_58 = arith.constant 1.000000e+00 : f32
    %162 = vector.broadcast %cst_58 : f32 to vector<2x128xf32>
    %163 = arith.addf %162, %161 : vector<2x128xf32>
    %164 = arith.divf %162, %163 : vector<2x128xf32>
    %165 = vector.extract_strided_slice %158 {offsets = [0, 128], sizes = [2, 128], strides = [1, 1]} : vector<2x512xf32> to vector<2x128xf32>
    %166 = arith.negf %165 : vector<2x128xf32>
    %167 = math.exp %166 : vector<2x128xf32>
    %cst_59 = arith.constant 1.000000e+00 : f32
    %168 = vector.broadcast %cst_59 : f32 to vector<2x128xf32>
    %169 = arith.addf %168, %167 : vector<2x128xf32>
    %170 = arith.divf %168, %169 : vector<2x128xf32>
    %171 = vector.extract_strided_slice %158 {offsets = [0, 256], sizes = [2, 128], strides = [1, 1]} : vector<2x512xf32> to vector<2x128xf32>
    %172 = math.tanh %171 : vector<2x128xf32>
    %173 = vector.extract_strided_slice %158 {offsets = [0, 384], sizes = [2, 128], strides = [1, 1]} : vector<2x512xf32> to vector<2x128xf32>
    %174 = arith.negf %173 : vector<2x128xf32>
    %175 = math.exp %174 : vector<2x128xf32>
    %cst_60 = arith.constant 1.000000e+00 : f32
    %176 = vector.broadcast %cst_60 : f32 to vector<2x128xf32>
    %177 = arith.addf %176, %175 : vector<2x128xf32>
    %178 = arith.divf %176, %177 : vector<2x128xf32>
    %179 = arith.mulf %170, %106 : vector<2x128xf32>
    %180 = arith.mulf %164, %172 : vector<2x128xf32>
    %181 = arith.addf %179, %180 : vector<2x128xf32>
    %182 = math.tanh %181 : vector<2x128xf32>
    %183 = arith.mulf %178, %182 : vector<2x128xf32>
    %c7_i32_61 = arith.constant 7 : i32
    %184 = arith.subi %c7_i32_61, %c2_i32 : i32
    %c1_62 = arith.constant 1 : index
    %185 = arith.index_cast %184 : i32 to index
    %c0_63 = arith.constant 0 : index
    %c0_64 = arith.constant 0 : index
    %186 = vector.load %arg1[%c1_62, %185, %c0_63, %c0_64] : memref<2x8x2x512xf32, #tpu.memory_space<vmem>>, vector<1x1x2x512xf32>
    %187 = vector.shape_cast %186 : vector<1x1x2x512xf32> to vector<2x512xf32>
    %188 = arith.truncf %142 : vector<2x128xf32> to vector<2x128xbf16>
    %c1_65 = arith.constant 1 : index
    %c0_66 = arith.constant 0 : index
    %c0_67 = arith.constant 0 : index
    %189 = vector.load %arg2[%c1_65, %c0_66, %c0_67] : memref<2x128x512xbf16, #tpu.memory_space<vmem>>, vector<1x128x512xbf16>
    %190 = vector.shape_cast %189 : vector<1x128x512xbf16> to vector<128x512xbf16>
    %cst_68 = arith.constant dense<0.000000e+00> : vector<2x512xf32>
    %191 = tpu.matmul %188, %190, %cst_68 {dimension_numbers = #tpu.dot_dimension_numbers<[1], [0], [0], [1], [0, 0, 1, 1], [], []>} : vector<2x128xbf16>, vector<128x512xbf16>, vector<2x512xf32> -> vector<2x512xf32>
    %192 = arith.addf %187, %191 : vector<2x512xf32>
    %193 = vector.extract_strided_slice %192 {offsets = [0, 0], sizes = [2, 128], strides = [1, 1]} : vector<2x512xf32> to vector<2x128xf32>
    %194 = arith.negf %193 : vector<2x128xf32>
    %195 = math.exp %194 : vector<2x128xf32>
    %cst_69 = arith.constant 1.000000e+00 : f32
    %196 = vector.broadcast %cst_69 : f32 to vector<2x128xf32>
    %197 = arith.addf %196, %195 : vector<2x128xf32>
    %198 = arith.divf %196, %197 : vector<2x128xf32>
    %199 = vector.extract_strided_slice %192 {offsets = [0, 128], sizes = [2, 128], strides = [1, 1]} : vector<2x512xf32> to vector<2x128xf32>
    %200 = arith.negf %199 : vector<2x128xf32>
    %201 = math.exp %200 : vector<2x128xf32>
    %cst_70 = arith.constant 1.000000e+00 : f32
    %202 = vector.broadcast %cst_70 : f32 to vector<2x128xf32>
    %203 = arith.addf %202, %201 : vector<2x128xf32>
    %204 = arith.divf %202, %203 : vector<2x128xf32>
    %205 = vector.extract_strided_slice %192 {offsets = [0, 256], sizes = [2, 128], strides = [1, 1]} : vector<2x512xf32> to vector<2x128xf32>
    %206 = math.tanh %205 : vector<2x128xf32>
    %207 = vector.extract_strided_slice %192 {offsets = [0, 384], sizes = [2, 128], strides = [1, 1]} : vector<2x512xf32> to vector<2x128xf32>
    %208 = arith.negf %207 : vector<2x128xf32>
    %209 = math.exp %208 : vector<2x128xf32>
    %cst_71 = arith.constant 1.000000e+00 : f32
    %210 = vector.broadcast %cst_71 : f32 to vector<2x128xf32>
    %211 = arith.addf %210, %209 : vector<2x128xf32>
    %212 = arith.divf %210, %211 : vector<2x128xf32>
    %213 = arith.mulf %204, %140 : vector<2x128xf32>
    %214 = arith.mulf %198, %206 : vector<2x128xf32>
    %215 = arith.addf %213, %214 : vector<2x128xf32>
    %216 = math.tanh %215 : vector<2x128xf32>
    %217 = arith.mulf %212, %216 : vector<2x128xf32>
    %c0_72 = arith.constant 0 : index
    %218 = arith.index_cast %c2_i32 : i32 to index
    %c0_73 = arith.constant 0 : index
    %c0_74 = arith.constant 0 : index
    %219 = vector.load %arg3[%c0_72, %218, %c0_73, %c0_74] : memref<2x8x2x128xf32, #tpu.memory_space<vmem>>, vector<1x1x2x128xf32>
    %220 = vector.shape_cast %219 : vector<1x1x2x128xf32> to vector<2x128xf32>
    %221 = vector.shape_cast %183 : vector<2x128xf32> to vector<1x1x2x128xf32>
    tpu.vector_store %arg3[%c0_72, %218, %c0_73, %c0_74], %221 {strides = array<i32>} : memref<2x8x2x128xf32, #tpu.memory_space<vmem>>, vector<1x1x2x128xf32>,
    %c1_75 = arith.constant 1 : index
    %222 = arith.index_cast %c2_i32 : i32 to index
    %c0_76 = arith.constant 0 : index
    %c0_77 = arith.constant 0 : index
    %223 = vector.load %arg3[%c1_75, %222, %c0_76, %c0_77] : memref<2x8x2x128xf32, #tpu.memory_space<vmem>>, vector<1x1x2x128xf32>
    %224 = vector.shape_cast %223 : vector<1x1x2x128xf32> to vector<2x128xf32>
    %225 = vector.shape_cast %217 : vector<2x128xf32> to vector<1x1x2x128xf32>
    tpu.vector_store %arg3[%c1_75, %222, %c0_76, %c0_77], %225 {strides = array<i32>} : memref<2x8x2x128xf32, #tpu.memory_space<vmem>>, vector<1x1x2x128xf32>,
    %c3_i32 = arith.constant 3 : i32
    %c0_78 = arith.constant 0 : index
    %226 = arith.index_cast %c3_i32 : i32 to index
    %c0_79 = arith.constant 0 : index
    %c0_80 = arith.constant 0 : index
    %227 = vector.load %arg1[%c0_78, %226, %c0_79, %c0_80] : memref<2x8x2x512xf32, #tpu.memory_space<vmem>>, vector<1x1x2x512xf32>
    %228 = vector.shape_cast %227 : vector<1x1x2x512xf32> to vector<2x512xf32>
    %229 = arith.truncf %183 : vector<2x128xf32> to vector<2x128xbf16>
    %c0_81 = arith.constant 0 : index
    %c0_82 = arith.constant 0 : index
    %c0_83 = arith.constant 0 : index
    %230 = vector.load %arg2[%c0_81, %c0_82, %c0_83] : memref<2x128x512xbf16, #tpu.memory_space<vmem>>, vector<1x128x512xbf16>
    %231 = vector.shape_cast %230 : vector<1x128x512xbf16> to vector<128x512xbf16>
    %cst_84 = arith.constant dense<0.000000e+00> : vector<2x512xf32>
    %232 = tpu.matmul %229, %231, %cst_84 {dimension_numbers = #tpu.dot_dimension_numbers<[1], [0], [0], [1], [0, 0, 1, 1], [], []>} : vector<2x128xbf16>, vector<128x512xbf16>, vector<2x512xf32> -> vector<2x512xf32>
    %233 = arith.addf %228, %232 : vector<2x512xf32>
    %234 = vector.extract_strided_slice %233 {offsets = [0, 0], sizes = [2, 128], strides = [1, 1]} : vector<2x512xf32> to vector<2x128xf32>
    %235 = arith.negf %234 : vector<2x128xf32>
    %236 = math.exp %235 : vector<2x128xf32>
    %cst_85 = arith.constant 1.000000e+00 : f32
    %237 = vector.broadcast %cst_85 : f32 to vector<2x128xf32>
    %238 = arith.addf %237, %236 : vector<2x128xf32>
    %239 = arith.divf %237, %238 : vector<2x128xf32>
    %240 = vector.extract_strided_slice %233 {offsets = [0, 128], sizes = [2, 128], strides = [1, 1]} : vector<2x512xf32> to vector<2x128xf32>
    %241 = arith.negf %240 : vector<2x128xf32>
    %242 = math.exp %241 : vector<2x128xf32>
    %cst_86 = arith.constant 1.000000e+00 : f32
    %243 = vector.broadcast %cst_86 : f32 to vector<2x128xf32>
    %244 = arith.addf %243, %242 : vector<2x128xf32>
    %245 = arith.divf %243, %244 : vector<2x128xf32>
    %246 = vector.extract_strided_slice %233 {offsets = [0, 256], sizes = [2, 128], strides = [1, 1]} : vector<2x512xf32> to vector<2x128xf32>
    %247 = math.tanh %246 : vector<2x128xf32>
    %248 = vector.extract_strided_slice %233 {offsets = [0, 384], sizes = [2, 128], strides = [1, 1]} : vector<2x512xf32> to vector<2x128xf32>
    %249 = arith.negf %248 : vector<2x128xf32>
    %250 = math.exp %249 : vector<2x128xf32>
    %cst_87 = arith.constant 1.000000e+00 : f32
    %251 = vector.broadcast %cst_87 : f32 to vector<2x128xf32>
    %252 = arith.addf %251, %250 : vector<2x128xf32>
    %253 = arith.divf %251, %252 : vector<2x128xf32>
    %254 = arith.mulf %245, %181 : vector<2x128xf32>
    %255 = arith.mulf %239, %247 : vector<2x128xf32>
    %256 = arith.addf %254, %255 : vector<2x128xf32>
    %257 = math.tanh %256 : vector<2x128xf32>
    %258 = arith.mulf %253, %257 : vector<2x128xf32>
    %c7_i32_88 = arith.constant 7 : i32
    %259 = arith.subi %c7_i32_88, %c3_i32 : i32
    %c1_89 = arith.constant 1 : index
    %260 = arith.index_cast %259 : i32 to index
    %c0_90 = arith.constant 0 : index
    %c0_91 = arith.constant 0 : index
    %261 = vector.load %arg1[%c1_89, %260, %c0_90, %c0_91] : memref<2x8x2x512xf32, #tpu.memory_space<vmem>>, vector<1x1x2x512xf32>
    %262 = vector.shape_cast %261 : vector<1x1x2x512xf32> to vector<2x512xf32>
    %263 = arith.truncf %217 : vector<2x128xf32> to vector<2x128xbf16>
    %c1_92 = arith.constant 1 : index
    %c0_93 = arith.constant 0 : index
    %c0_94 = arith.constant 0 : index
    %264 = vector.load %arg2[%c1_92, %c0_93, %c0_94] : memref<2x128x512xbf16, #tpu.memory_space<vmem>>, vector<1x128x512xbf16>
    %265 = vector.shape_cast %264 : vector<1x128x512xbf16> to vector<128x512xbf16>
    %cst_95 = arith.constant dense<0.000000e+00> : vector<2x512xf32>
    %266 = tpu.matmul %263, %265, %cst_95 {dimension_numbers = #tpu.dot_dimension_numbers<[1], [0], [0], [1], [0, 0, 1, 1], [], []>} : vector<2x128xbf16>, vector<128x512xbf16>, vector<2x512xf32> -> vector<2x512xf32>
    %267 = arith.addf %262, %266 : vector<2x512xf32>
    %268 = vector.extract_strided_slice %267 {offsets = [0, 0], sizes = [2, 128], strides = [1, 1]} : vector<2x512xf32> to vector<2x128xf32>
    %269 = arith.negf %268 : vector<2x128xf32>
    %270 = math.exp %269 : vector<2x128xf32>
    %cst_96 = arith.constant 1.000000e+00 : f32
    %271 = vector.broadcast %cst_96 : f32 to vector<2x128xf32>
    %272 = arith.addf %271, %270 : vector<2x128xf32>
    %273 = arith.divf %271, %272 : vector<2x128xf32>
    %274 = vector.extract_strided_slice %267 {offsets = [0, 128], sizes = [2, 128], strides = [1, 1]} : vector<2x512xf32> to vector<2x128xf32>
    %275 = arith.negf %274 : vector<2x128xf32>
    %276 = math.exp %275 : vector<2x128xf32>
    %cst_97 = arith.constant 1.000000e+00 : f32
    %277 = vector.broadcast %cst_97 : f32 to vector<2x128xf32>
    %278 = arith.addf %277, %276 : vector<2x128xf32>
    %279 = arith.divf %277, %278 : vector<2x128xf32>
    %280 = vector.extract_strided_slice %267 {offsets = [0, 256], sizes = [2, 128], strides = [1, 1]} : vector<2x512xf32> to vector<2x128xf32>
    %281 = math.tanh %280 : vector<2x128xf32>
    %282 = vector.extract_strided_slice %267 {offsets = [0, 384], sizes = [2, 128], strides = [1, 1]} : vector<2x512xf32> to vector<2x128xf32>
    %283 = arith.negf %282 : vector<2x128xf32>
    %284 = math.exp %283 : vector<2x128xf32>
    %cst_98 = arith.constant 1.000000e+00 : f32
    %285 = vector.broadcast %cst_98 : f32 to vector<2x128xf32>
    %286 = arith.addf %285, %284 : vector<2x128xf32>
    %287 = arith.divf %285, %286 : vector<2x128xf32>
    %288 = arith.mulf %279, %215 : vector<2x128xf32>
    %289 = arith.mulf %273, %281 : vector<2x128xf32>
    %290 = arith.addf %288, %289 : vector<2x128xf32>
    %291 = math.tanh %290 : vector<2x128xf32>
    %292 = arith.mulf %287, %291 : vector<2x128xf32>
    %c0_99 = arith.constant 0 : index
    %293 = arith.index_cast %c3_i32 : i32 to index
    %c0_100 = arith.constant 0 : index
    %c0_101 = arith.constant 0 : index
    %294 = vector.load %arg3[%c0_99, %293, %c0_100, %c0_101] : memref<2x8x2x128xf32, #tpu.memory_space<vmem>>, vector<1x1x2x128xf32>
    %295 = vector.shape_cast %294 : vector<1x1x2x128xf32> to vector<2x128xf32>
    %296 = vector.shape_cast %258 : vector<2x128xf32> to vector<1x1x2x128xf32>
    tpu.vector_store %arg3[%c0_99, %293, %c0_100, %c0_101], %296 {strides = array<i32>} : memref<2x8x2x128xf32, #tpu.memory_space<vmem>>, vector<1x1x2x128xf32>,
    %c1_102 = arith.constant 1 : index
    %297 = arith.index_cast %c3_i32 : i32 to index
    %c0_103 = arith.constant 0 : index
    %c0_104 = arith.constant 0 : index
    %298 = vector.load %arg3[%c1_102, %297, %c0_103, %c0_104] : memref<2x8x2x128xf32, #tpu.memory_space<vmem>>, vector<1x1x2x128xf32>
    %299 = vector.shape_cast %298 : vector<1x1x2x128xf32> to vector<2x128xf32>
    %300 = vector.shape_cast %292 : vector<2x128xf32> to vector<1x1x2x128xf32>
    tpu.vector_store %arg3[%c1_102, %297, %c0_103, %c0_104], %300 {strides = array<i32>} : memref<2x8x2x128xf32, #tpu.memory_space<vmem>>, vector<1x1x2x128xf32>,
    %c4_i32 = arith.constant 4 : i32
    %c0_105 = arith.constant 0 : index
    %301 = arith.index_cast %c4_i32 : i32 to index
    %c0_106 = arith.constant 0 : index
    %c0_107 = arith.constant 0 : index
    %302 = vector.load %arg1[%c0_105, %301, %c0_106, %c0_107] : memref<2x8x2x512xf32, #tpu.memory_space<vmem>>, vector<1x1x2x512xf32>
    %303 = vector.shape_cast %302 : vector<1x1x2x512xf32> to vector<2x512xf32>
    %304 = arith.truncf %258 : vector<2x128xf32> to vector<2x128xbf16>
    %c0_108 = arith.constant 0 : index
    %c0_109 = arith.constant 0 : index
    %c0_110 = arith.constant 0 : index
    %305 = vector.load %arg2[%c0_108, %c0_109, %c0_110] : memref<2x128x512xbf16, #tpu.memory_space<vmem>>, vector<1x128x512xbf16>
    %306 = vector.shape_cast %305 : vector<1x128x512xbf16> to vector<128x512xbf16>
    %cst_111 = arith.constant dense<0.000000e+00> : vector<2x512xf32>
    %307 = tpu.matmul %304, %306, %cst_111 {dimension_numbers = #tpu.dot_dimension_numbers<[1], [0], [0], [1], [0, 0, 1, 1], [], []>} : vector<2x128xbf16>, vector<128x512xbf16>, vector<2x512xf32> -> vector<2x512xf32>
    %308 = arith.addf %303, %307 : vector<2x512xf32>
    %309 = vector.extract_strided_slice %308 {offsets = [0, 0], sizes = [2, 128], strides = [1, 1]} : vector<2x512xf32> to vector<2x128xf32>
    %310 = arith.negf %309 : vector<2x128xf32>
    %311 = math.exp %310 : vector<2x128xf32>
    %cst_112 = arith.constant 1.000000e+00 : f32
    %312 = vector.broadcast %cst_112 : f32 to vector<2x128xf32>
    %313 = arith.addf %312, %311 : vector<2x128xf32>
    %314 = arith.divf %312, %313 : vector<2x128xf32>
    %315 = vector.extract_strided_slice %308 {offsets = [0, 128], sizes = [2, 128], strides = [1, 1]} : vector<2x512xf32> to vector<2x128xf32>
    %316 = arith.negf %315 : vector<2x128xf32>
    %317 = math.exp %316 : vector<2x128xf32>
    %cst_113 = arith.constant 1.000000e+00 : f32
    %318 = vector.broadcast %cst_113 : f32 to vector<2x128xf32>
    %319 = arith.addf %318, %317 : vector<2x128xf32>
    %320 = arith.divf %318, %319 : vector<2x128xf32>
    %321 = vector.extract_strided_slice %308 {offsets = [0, 256], sizes = [2, 128], strides = [1, 1]} : vector<2x512xf32> to vector<2x128xf32>
    %322 = math.tanh %321 : vector<2x128xf32>
    %323 = vector.extract_strided_slice %308 {offsets = [0, 384], sizes = [2, 128], strides = [1, 1]} : vector<2x512xf32> to vector<2x128xf32>
    %324 = arith.negf %323 : vector<2x128xf32>
    %325 = math.exp %324 : vector<2x128xf32>
    %cst_114 = arith.constant 1.000000e+00 : f32
    %326 = vector.broadcast %cst_114 : f32 to vector<2x128xf32>
    %327 = arith.addf %326, %325 : vector<2x128xf32>
    %328 = arith.divf %326, %327 : vector<2x128xf32>
    %329 = arith.mulf %320, %256 : vector<2x128xf32>
    %330 = arith.mulf %314, %322 : vector<2x128xf32>
    %331 = arith.addf %329, %330 : vector<2x128xf32>
    %332 = math.tanh %331 : vector<2x128xf32>
    %333 = arith.mulf %328, %332 : vector<2x128xf32>
    %c7_i32_115 = arith.constant 7 : i32
    %334 = arith.subi %c7_i32_115, %c4_i32 : i32
    %c1_116 = arith.constant 1 : index
    %335 = arith.index_cast %334 : i32 to index
    %c0_117 = arith.constant 0 : index
    %c0_118 = arith.constant 0 : index
    %336 = vector.load %arg1[%c1_116, %335, %c0_117, %c0_118] : memref<2x8x2x512xf32, #tpu.memory_space<vmem>>, vector<1x1x2x512xf32>
    %337 = vector.shape_cast %336 : vector<1x1x2x512xf32> to vector<2x512xf32>
    %338 = arith.truncf %292 : vector<2x128xf32> to vector<2x128xbf16>
    %c1_119 = arith.constant 1 : index
    %c0_120 = arith.constant 0 : index
    %c0_121 = arith.constant 0 : index
    %339 = vector.load %arg2[%c1_119, %c0_120, %c0_121] : memref<2x128x512xbf16, #tpu.memory_space<vmem>>, vector<1x128x512xbf16>
    %340 = vector.shape_cast %339 : vector<1x128x512xbf16> to vector<128x512xbf16>
    %cst_122 = arith.constant dense<0.000000e+00> : vector<2x512xf32>
    %341 = tpu.matmul %338, %340, %cst_122 {dimension_numbers = #tpu.dot_dimension_numbers<[1], [0], [0], [1], [0, 0, 1, 1], [], []>} : vector<2x128xbf16>, vector<128x512xbf16>, vector<2x512xf32> -> vector<2x512xf32>
    %342 = arith.addf %337, %341 : vector<2x512xf32>
    %343 = vector.extract_strided_slice %342 {offsets = [0, 0], sizes = [2, 128], strides = [1, 1]} : vector<2x512xf32> to vector<2x128xf32>
    %344 = arith.negf %343 : vector<2x128xf32>
    %345 = math.exp %344 : vector<2x128xf32>
    %cst_123 = arith.constant 1.000000e+00 : f32
    %346 = vector.broadcast %cst_123 : f32 to vector<2x128xf32>
    %347 = arith.addf %346, %345 : vector<2x128xf32>
    %348 = arith.divf %346, %347 : vector<2x128xf32>
    %349 = vector.extract_strided_slice %342 {offsets = [0, 128], sizes = [2, 128], strides = [1, 1]} : vector<2x512xf32> to vector<2x128xf32>
    %350 = arith.negf %349 : vector<2x128xf32>
    %351 = math.exp %350 : vector<2x128xf32>
    %cst_124 = arith.constant 1.000000e+00 : f32
    %352 = vector.broadcast %cst_124 : f32 to vector<2x128xf32>
    %353 = arith.addf %352, %351 : vector<2x128xf32>
    %354 = arith.divf %352, %353 : vector<2x128xf32>
    %355 = vector.extract_strided_slice %342 {offsets = [0, 256], sizes = [2, 128], strides = [1, 1]} : vector<2x512xf32> to vector<2x128xf32>
    %356 = math.tanh %355 : vector<2x128xf32>
    %357 = vector.extract_strided_slice %342 {offsets = [0, 384], sizes = [2, 128], strides = [1, 1]} : vector<2x512xf32> to vector<2x128xf32>
    %358 = arith.negf %357 : vector<2x128xf32>
    %359 = math.exp %358 : vector<2x128xf32>
    %cst_125 = arith.constant 1.000000e+00 : f32
    %360 = vector.broadcast %cst_125 : f32 to vector<2x128xf32>
    %361 = arith.addf %360, %359 : vector<2x128xf32>
    %362 = arith.divf %360, %361 : vector<2x128xf32>
    %363 = arith.mulf %354, %290 : vector<2x128xf32>
    %364 = arith.mulf %348, %356 : vector<2x128xf32>
    %365 = arith.addf %363, %364 : vector<2x128xf32>
    %366 = math.tanh %365 : vector<2x128xf32>
    %367 = arith.mulf %362, %366 : vector<2x128xf32>
    %c0_126 = arith.constant 0 : index
    %368 = arith.index_cast %c4_i32 : i32 to index
    %c0_127 = arith.constant 0 : index
    %c0_128 = arith.constant 0 : index
    %369 = vector.load %arg3[%c0_126, %368, %c0_127, %c0_128] : memref<2x8x2x128xf32, #tpu.memory_space<vmem>>, vector<1x1x2x128xf32>
    %370 = vector.shape_cast %369 : vector<1x1x2x128xf32> to vector<2x128xf32>
    %371 = vector.shape_cast %333 : vector<2x128xf32> to vector<1x1x2x128xf32>
    tpu.vector_store %arg3[%c0_126, %368, %c0_127, %c0_128], %371 {strides = array<i32>} : memref<2x8x2x128xf32, #tpu.memory_space<vmem>>, vector<1x1x2x128xf32>,
    %c1_129 = arith.constant 1 : index
    %372 = arith.index_cast %c4_i32 : i32 to index
    %c0_130 = arith.constant 0 : index
    %c0_131 = arith.constant 0 : index
    %373 = vector.load %arg3[%c1_129, %372, %c0_130, %c0_131] : memref<2x8x2x128xf32, #tpu.memory_space<vmem>>, vector<1x1x2x128xf32>
    %374 = vector.shape_cast %373 : vector<1x1x2x128xf32> to vector<2x128xf32>
    %375 = vector.shape_cast %367 : vector<2x128xf32> to vector<1x1x2x128xf32>
    tpu.vector_store %arg3[%c1_129, %372, %c0_130, %c0_131], %375 {strides = array<i32>} : memref<2x8x2x128xf32, #tpu.memory_space<vmem>>, vector<1x1x2x128xf32>,
    %c5_i32 = arith.constant 5 : i32
    %c0_132 = arith.constant 0 : index
    %376 = arith.index_cast %c5_i32 : i32 to index
    %c0_133 = arith.constant 0 : index
    %c0_134 = arith.constant 0 : index
    %377 = vector.load %arg1[%c0_132, %376, %c0_133, %c0_134] : memref<2x8x2x512xf32, #tpu.memory_space<vmem>>, vector<1x1x2x512xf32>
    %378 = vector.shape_cast %377 : vector<1x1x2x512xf32> to vector<2x512xf32>
    %379 = arith.truncf %333 : vector<2x128xf32> to vector<2x128xbf16>
    %c0_135 = arith.constant 0 : index
    %c0_136 = arith.constant 0 : index
    %c0_137 = arith.constant 0 : index
    %380 = vector.load %arg2[%c0_135, %c0_136, %c0_137] : memref<2x128x512xbf16, #tpu.memory_space<vmem>>, vector<1x128x512xbf16>
    %381 = vector.shape_cast %380 : vector<1x128x512xbf16> to vector<128x512xbf16>
    %cst_138 = arith.constant dense<0.000000e+00> : vector<2x512xf32>
    %382 = tpu.matmul %379, %381, %cst_138 {dimension_numbers = #tpu.dot_dimension_numbers<[1], [0], [0], [1], [0, 0, 1, 1], [], []>} : vector<2x128xbf16>, vector<128x512xbf16>, vector<2x512xf32> -> vector<2x512xf32>
    %383 = arith.addf %378, %382 : vector<2x512xf32>
    %384 = vector.extract_strided_slice %383 {offsets = [0, 0], sizes = [2, 128], strides = [1, 1]} : vector<2x512xf32> to vector<2x128xf32>
    %385 = arith.negf %384 : vector<2x128xf32>
    %386 = math.exp %385 : vector<2x128xf32>
    %cst_139 = arith.constant 1.000000e+00 : f32
    %387 = vector.broadcast %cst_139 : f32 to vector<2x128xf32>
    %388 = arith.addf %387, %386 : vector<2x128xf32>
    %389 = arith.divf %387, %388 : vector<2x128xf32>
    %390 = vector.extract_strided_slice %383 {offsets = [0, 128], sizes = [2, 128], strides = [1, 1]} : vector<2x512xf32> to vector<2x128xf32>
    %391 = arith.negf %390 : vector<2x128xf32>
    %392 = math.exp %391 : vector<2x128xf32>
    %cst_140 = arith.constant 1.000000e+00 : f32
    %393 = vector.broadcast %cst_140 : f32 to vector<2x128xf32>
    %394 = arith.addf %393, %392 : vector<2x128xf32>
    %395 = arith.divf %393, %394 : vector<2x128xf32>
    %396 = vector.extract_strided_slice %383 {offsets = [0, 256], sizes = [2, 128], strides = [1, 1]} : vector<2x512xf32> to vector<2x128xf32>
    %397 = math.tanh %396 : vector<2x128xf32>
    %398 = vector.extract_strided_slice %383 {offsets = [0, 384], sizes = [2, 128], strides = [1, 1]} : vector<2x512xf32> to vector<2x128xf32>
    %399 = arith.negf %398 : vector<2x128xf32>
    %400 = math.exp %399 : vector<2x128xf32>
    %cst_141 = arith.constant 1.000000e+00 : f32
    %401 = vector.broadcast %cst_141 : f32 to vector<2x128xf32>
    %402 = arith.addf %401, %400 : vector<2x128xf32>
    %403 = arith.divf %401, %402 : vector<2x128xf32>
    %404 = arith.mulf %395, %331 : vector<2x128xf32>
    %405 = arith.mulf %389, %397 : vector<2x128xf32>
    %406 = arith.addf %404, %405 : vector<2x128xf32>
    %407 = math.tanh %406 : vector<2x128xf32>
    %408 = arith.mulf %403, %407 : vector<2x128xf32>
    %c7_i32_142 = arith.constant 7 : i32
    %409 = arith.subi %c7_i32_142, %c5_i32 : i32
    %c1_143 = arith.constant 1 : index
    %410 = arith.index_cast %409 : i32 to index
    %c0_144 = arith.constant 0 : index
    %c0_145 = arith.constant 0 : index
    %411 = vector.load %arg1[%c1_143, %410, %c0_144, %c0_145] : memref<2x8x2x512xf32, #tpu.memory_space<vmem>>, vector<1x1x2x512xf32>
    %412 = vector.shape_cast %411 : vector<1x1x2x512xf32> to vector<2x512xf32>
    %413 = arith.truncf %367 : vector<2x128xf32> to vector<2x128xbf16>
    %c1_146 = arith.constant 1 : index
    %c0_147 = arith.constant 0 : index
    %c0_148 = arith.constant 0 : index
    %414 = vector.load %arg2[%c1_146, %c0_147, %c0_148] : memref<2x128x512xbf16, #tpu.memory_space<vmem>>, vector<1x128x512xbf16>
    %415 = vector.shape_cast %414 : vector<1x128x512xbf16> to vector<128x512xbf16>
    %cst_149 = arith.constant dense<0.000000e+00> : vector<2x512xf32>
    %416 = tpu.matmul %413, %415, %cst_149 {dimension_numbers = #tpu.dot_dimension_numbers<[1], [0], [0], [1], [0, 0, 1, 1], [], []>} : vector<2x128xbf16>, vector<128x512xbf16>, vector<2x512xf32> -> vector<2x512xf32>
    %417 = arith.addf %412, %416 : vector<2x512xf32>
    %418 = vector.extract_strided_slice %417 {offsets = [0, 0], sizes = [2, 128], strides = [1, 1]} : vector<2x512xf32> to vector<2x128xf32>
    %419 = arith.negf %418 : vector<2x128xf32>
    %420 = math.exp %419 : vector<2x128xf32>
    %cst_150 = arith.constant 1.000000e+00 : f32
    %421 = vector.broadcast %cst_150 : f32 to vector<2x128xf32>
    %422 = arith.addf %421, %420 : vector<2x128xf32>
    %423 = arith.divf %421, %422 : vector<2x128xf32>
    %424 = vector.extract_strided_slice %417 {offsets = [0, 128], sizes = [2, 128], strides = [1, 1]} : vector<2x512xf32> to vector<2x128xf32>
    %425 = arith.negf %424 : vector<2x128xf32>
    %426 = math.exp %425 : vector<2x128xf32>
    %cst_151 = arith.constant 1.000000e+00 : f32
    %427 = vector.broadcast %cst_151 : f32 to vector<2x128xf32>
    %428 = arith.addf %427, %426 : vector<2x128xf32>
    %429 = arith.divf %427, %428 : vector<2x128xf32>
    %430 = vector.extract_strided_slice %417 {offsets = [0, 256], sizes = [2, 128], strides = [1, 1]} : vector<2x512xf32> to vector<2x128xf32>
    %431 = math.tanh %430 : vector<2x128xf32>
    %432 = vector.extract_strided_slice %417 {offsets = [0, 384], sizes = [2, 128], strides = [1, 1]} : vector<2x512xf32> to vector<2x128xf32>
    %433 = arith.negf %432 : vector<2x128xf32>
    %434 = math.exp %433 : vector<2x128xf32>
    %cst_152 = arith.constant 1.000000e+00 : f32
    %435 = vector.broadcast %cst_152 : f32 to vector<2x128xf32>
    %436 = arith.addf %435, %434 : vector<2x128xf32>
    %437 = arith.divf %435, %436 : vector<2x128xf32>
    %438 = arith.mulf %429, %365 : vector<2x128xf32>
    %439 = arith.mulf %423, %431 : vector<2x128xf32>
    %440 = arith.addf %438, %439 : vector<2x128xf32>
    %441 = math.tanh %440 : vector<2x128xf32>
    %442 = arith.mulf %437, %441 : vector<2x128xf32>
    %c0_153 = arith.constant 0 : index
    %443 = arith.index_cast %c5_i32 : i32 to index
    %c0_154 = arith.constant 0 : index
    %c0_155 = arith.constant 0 : index
    %444 = vector.load %arg3[%c0_153, %443, %c0_154, %c0_155] : memref<2x8x2x128xf32, #tpu.memory_space<vmem>>, vector<1x1x2x128xf32>
    %445 = vector.shape_cast %444 : vector<1x1x2x128xf32> to vector<2x128xf32>
    %446 = vector.shape_cast %408 : vector<2x128xf32> to vector<1x1x2x128xf32>
    tpu.vector_store %arg3[%c0_153, %443, %c0_154, %c0_155], %446 {strides = array<i32>} : memref<2x8x2x128xf32, #tpu.memory_space<vmem>>, vector<1x1x2x128xf32>,
    %c1_156 = arith.constant 1 : index
    %447 = arith.index_cast %c5_i32 : i32 to index
    %c0_157 = arith.constant 0 : index
    %c0_158 = arith.constant 0 : index
    %448 = vector.load %arg3[%c1_156, %447, %c0_157, %c0_158] : memref<2x8x2x128xf32, #tpu.memory_space<vmem>>, vector<1x1x2x128xf32>
    %449 = vector.shape_cast %448 : vector<1x1x2x128xf32> to vector<2x128xf32>
    %450 = vector.shape_cast %442 : vector<2x128xf32> to vector<1x1x2x128xf32>
    tpu.vector_store %arg3[%c1_156, %447, %c0_157, %c0_158], %450 {strides = array<i32>} : memref<2x8x2x128xf32, #tpu.memory_space<vmem>>, vector<1x1x2x128xf32>,
    %c6_i32 = arith.constant 6 : i32
    %c0_159 = arith.constant 0 : index
    %451 = arith.index_cast %c6_i32 : i32 to index
    %c0_160 = arith.constant 0 : index
    %c0_161 = arith.constant 0 : index
    %452 = vector.load %arg1[%c0_159, %451, %c0_160, %c0_161] : memref<2x8x2x512xf32, #tpu.memory_space<vmem>>, vector<1x1x2x512xf32>
    %453 = vector.shape_cast %452 : vector<1x1x2x512xf32> to vector<2x512xf32>
    %454 = arith.truncf %408 : vector<2x128xf32> to vector<2x128xbf16>
    %c0_162 = arith.constant 0 : index
    %c0_163 = arith.constant 0 : index
    %c0_164 = arith.constant 0 : index
    %455 = vector.load %arg2[%c0_162, %c0_163, %c0_164] : memref<2x128x512xbf16, #tpu.memory_space<vmem>>, vector<1x128x512xbf16>
    %456 = vector.shape_cast %455 : vector<1x128x512xbf16> to vector<128x512xbf16>
    %cst_165 = arith.constant dense<0.000000e+00> : vector<2x512xf32>
    %457 = tpu.matmul %454, %456, %cst_165 {dimension_numbers = #tpu.dot_dimension_numbers<[1], [0], [0], [1], [0, 0, 1, 1], [], []>} : vector<2x128xbf16>, vector<128x512xbf16>, vector<2x512xf32> -> vector<2x512xf32>
    %458 = arith.addf %453, %457 : vector<2x512xf32>
    %459 = vector.extract_strided_slice %458 {offsets = [0, 0], sizes = [2, 128], strides = [1, 1]} : vector<2x512xf32> to vector<2x128xf32>
    %460 = arith.negf %459 : vector<2x128xf32>
    %461 = math.exp %460 : vector<2x128xf32>
    %cst_166 = arith.constant 1.000000e+00 : f32
    %462 = vector.broadcast %cst_166 : f32 to vector<2x128xf32>
    %463 = arith.addf %462, %461 : vector<2x128xf32>
    %464 = arith.divf %462, %463 : vector<2x128xf32>
    %465 = vector.extract_strided_slice %458 {offsets = [0, 128], sizes = [2, 128], strides = [1, 1]} : vector<2x512xf32> to vector<2x128xf32>
    %466 = arith.negf %465 : vector<2x128xf32>
    %467 = math.exp %466 : vector<2x128xf32>
    %cst_167 = arith.constant 1.000000e+00 : f32
    %468 = vector.broadcast %cst_167 : f32 to vector<2x128xf32>
    %469 = arith.addf %468, %467 : vector<2x128xf32>
    %470 = arith.divf %468, %469 : vector<2x128xf32>
    %471 = vector.extract_strided_slice %458 {offsets = [0, 256], sizes = [2, 128], strides = [1, 1]} : vector<2x512xf32> to vector<2x128xf32>
    %472 = math.tanh %471 : vector<2x128xf32>
    %473 = vector.extract_strided_slice %458 {offsets = [0, 384], sizes = [2, 128], strides = [1, 1]} : vector<2x512xf32> to vector<2x128xf32>
    %474 = arith.negf %473 : vector<2x128xf32>
    %475 = math.exp %474 : vector<2x128xf32>
    %cst_168 = arith.constant 1.000000e+00 : f32
    %476 = vector.broadcast %cst_168 : f32 to vector<2x128xf32>
    %477 = arith.addf %476, %475 : vector<2x128xf32>
    %478 = arith.divf %476, %477 : vector<2x128xf32>
    %479 = arith.mulf %470, %406 : vector<2x128xf32>
    %480 = arith.mulf %464, %472 : vector<2x128xf32>
    %481 = arith.addf %479, %480 : vector<2x128xf32>
    %482 = math.tanh %481 : vector<2x128xf32>
    %483 = arith.mulf %478, %482 : vector<2x128xf32>
    %c7_i32_169 = arith.constant 7 : i32
    %484 = arith.subi %c7_i32_169, %c6_i32 : i32
    %c1_170 = arith.constant 1 : index
    %485 = arith.index_cast %484 : i32 to index
    %c0_171 = arith.constant 0 : index
    %c0_172 = arith.constant 0 : index
    %486 = vector.load %arg1[%c1_170, %485, %c0_171, %c0_172] : memref<2x8x2x512xf32, #tpu.memory_space<vmem>>, vector<1x1x2x512xf32>
    %487 = vector.shape_cast %486 : vector<1x1x2x512xf32> to vector<2x512xf32>
    %488 = arith.truncf %442 : vector<2x128xf32> to vector<2x128xbf16>
    %c1_173 = arith.constant 1 : index
    %c0_174 = arith.constant 0 : index
    %c0_175 = arith.constant 0 : index
    %489 = vector.load %arg2[%c1_173, %c0_174, %c0_175] : memref<2x128x512xbf16, #tpu.memory_space<vmem>>, vector<1x128x512xbf16>
    %490 = vector.shape_cast %489 : vector<1x128x512xbf16> to vector<128x512xbf16>
    %cst_176 = arith.constant dense<0.000000e+00> : vector<2x512xf32>
    %491 = tpu.matmul %488, %490, %cst_176 {dimension_numbers = #tpu.dot_dimension_numbers<[1], [0], [0], [1], [0, 0, 1, 1], [], []>} : vector<2x128xbf16>, vector<128x512xbf16>, vector<2x512xf32> -> vector<2x512xf32>
    %492 = arith.addf %487, %491 : vector<2x512xf32>
    %493 = vector.extract_strided_slice %492 {offsets = [0, 0], sizes = [2, 128], strides = [1, 1]} : vector<2x512xf32> to vector<2x128xf32>
    %494 = arith.negf %493 : vector<2x128xf32>
    %495 = math.exp %494 : vector<2x128xf32>
    %cst_177 = arith.constant 1.000000e+00 : f32
    %496 = vector.broadcast %cst_177 : f32 to vector<2x128xf32>
    %497 = arith.addf %496, %495 : vector<2x128xf32>
    %498 = arith.divf %496, %497 : vector<2x128xf32>
    %499 = vector.extract_strided_slice %492 {offsets = [0, 128], sizes = [2, 128], strides = [1, 1]} : vector<2x512xf32> to vector<2x128xf32>
    %500 = arith.negf %499 : vector<2x128xf32>
    %501 = math.exp %500 : vector<2x128xf32>
    %cst_178 = arith.constant 1.000000e+00 : f32
    %502 = vector.broadcast %cst_178 : f32 to vector<2x128xf32>
    %503 = arith.addf %502, %501 : vector<2x128xf32>
    %504 = arith.divf %502, %503 : vector<2x128xf32>
    %505 = vector.extract_strided_slice %492 {offsets = [0, 256], sizes = [2, 128], strides = [1, 1]} : vector<2x512xf32> to vector<2x128xf32>
    %506 = math.tanh %505 : vector<2x128xf32>
    %507 = vector.extract_strided_slice %492 {offsets = [0, 384], sizes = [2, 128], strides = [1, 1]} : vector<2x512xf32> to vector<2x128xf32>
    %508 = arith.negf %507 : vector<2x128xf32>
    %509 = math.exp %508 : vector<2x128xf32>
    %cst_179 = arith.constant 1.000000e+00 : f32
    %510 = vector.broadcast %cst_179 : f32 to vector<2x128xf32>
    %511 = arith.addf %510, %509 : vector<2x128xf32>
    %512 = arith.divf %510, %511 : vector<2x128xf32>
    %513 = arith.mulf %504, %440 : vector<2x128xf32>
    %514 = arith.mulf %498, %506 : vector<2x128xf32>
    %515 = arith.addf %513, %514 : vector<2x128xf32>
    %516 = math.tanh %515 : vector<2x128xf32>
    %517 = arith.mulf %512, %516 : vector<2x128xf32>
    %c0_180 = arith.constant 0 : index
    %518 = arith.index_cast %c6_i32 : i32 to index
    %c0_181 = arith.constant 0 : index
    %c0_182 = arith.constant 0 : index
    %519 = vector.load %arg3[%c0_180, %518, %c0_181, %c0_182] : memref<2x8x2x128xf32, #tpu.memory_space<vmem>>, vector<1x1x2x128xf32>
    %520 = vector.shape_cast %519 : vector<1x1x2x128xf32> to vector<2x128xf32>
    %521 = vector.shape_cast %483 : vector<2x128xf32> to vector<1x1x2x128xf32>
    tpu.vector_store %arg3[%c0_180, %518, %c0_181, %c0_182], %521 {strides = array<i32>} : memref<2x8x2x128xf32, #tpu.memory_space<vmem>>, vector<1x1x2x128xf32>,
    %c1_183 = arith.constant 1 : index
    %522 = arith.index_cast %c6_i32 : i32 to index
    %c0_184 = arith.constant 0 : index
    %c0_185 = arith.constant 0 : index
    %523 = vector.load %arg3[%c1_183, %522, %c0_184, %c0_185] : memref<2x8x2x128xf32, #tpu.memory_space<vmem>>, vector<1x1x2x128xf32>
    %524 = vector.shape_cast %523 : vector<1x1x2x128xf32> to vector<2x128xf32>
    %525 = vector.shape_cast %517 : vector<2x128xf32> to vector<1x1x2x128xf32>
    tpu.vector_store %arg3[%c1_183, %522, %c0_184, %c0_185], %525 {strides = array<i32>} : memref<2x8x2x128xf32, #tpu.memory_space<vmem>>, vector<1x1x2x128xf32>,
    %c7_i32_186 = arith.constant 7 : i32
    %c0_187 = arith.constant 0 : index
    %526 = arith.index_cast %c7_i32_186 : i32 to index
    %c0_188 = arith.constant 0 : index
    %c0_189 = arith.constant 0 : index
    %527 = vector.load %arg1[%c0_187, %526, %c0_188, %c0_189] : memref<2x8x2x512xf32, #tpu.memory_space<vmem>>, vector<1x1x2x512xf32>
    %528 = vector.shape_cast %527 : vector<1x1x2x512xf32> to vector<2x512xf32>
    %529 = arith.truncf %483 : vector<2x128xf32> to vector<2x128xbf16>
    %c0_190 = arith.constant 0 : index
    %c0_191 = arith.constant 0 : index
    %c0_192 = arith.constant 0 : index
    %530 = vector.load %arg2[%c0_190, %c0_191, %c0_192] : memref<2x128x512xbf16, #tpu.memory_space<vmem>>, vector<1x128x512xbf16>
    %531 = vector.shape_cast %530 : vector<1x128x512xbf16> to vector<128x512xbf16>
    %cst_193 = arith.constant dense<0.000000e+00> : vector<2x512xf32>
    %532 = tpu.matmul %529, %531, %cst_193 {dimension_numbers = #tpu.dot_dimension_numbers<[1], [0], [0], [1], [0, 0, 1, 1], [], []>} : vector<2x128xbf16>, vector<128x512xbf16>, vector<2x512xf32> -> vector<2x512xf32>
    %533 = arith.addf %528, %532 : vector<2x512xf32>
    %534 = vector.extract_strided_slice %533 {offsets = [0, 0], sizes = [2, 128], strides = [1, 1]} : vector<2x512xf32> to vector<2x128xf32>
    %535 = arith.negf %534 : vector<2x128xf32>
    %536 = math.exp %535 : vector<2x128xf32>
    %cst_194 = arith.constant 1.000000e+00 : f32
    %537 = vector.broadcast %cst_194 : f32 to vector<2x128xf32>
    %538 = arith.addf %537, %536 : vector<2x128xf32>
    %539 = arith.divf %537, %538 : vector<2x128xf32>
    %540 = vector.extract_strided_slice %533 {offsets = [0, 128], sizes = [2, 128], strides = [1, 1]} : vector<2x512xf32> to vector<2x128xf32>
    %541 = arith.negf %540 : vector<2x128xf32>
    %542 = math.exp %541 : vector<2x128xf32>
    %cst_195 = arith.constant 1.000000e+00 : f32
    %543 = vector.broadcast %cst_195 : f32 to vector<2x128xf32>
    %544 = arith.addf %543, %542 : vector<2x128xf32>
    %545 = arith.divf %543, %544 : vector<2x128xf32>
    %546 = vector.extract_strided_slice %533 {offsets = [0, 256], sizes = [2, 128], strides = [1, 1]} : vector<2x512xf32> to vector<2x128xf32>
    %547 = math.tanh %546 : vector<2x128xf32>
    %548 = vector.extract_strided_slice %533 {offsets = [0, 384], sizes = [2, 128], strides = [1, 1]} : vector<2x512xf32> to vector<2x128xf32>
    %549 = arith.negf %548 : vector<2x128xf32>
    %550 = math.exp %549 : vector<2x128xf32>
    %cst_196 = arith.constant 1.000000e+00 : f32
    %551 = vector.broadcast %cst_196 : f32 to vector<2x128xf32>
    %552 = arith.addf %551, %550 : vector<2x128xf32>
    %553 = arith.divf %551, %552 : vector<2x128xf32>
    %554 = arith.mulf %545, %481 : vector<2x128xf32>
    %555 = arith.mulf %539, %547 : vector<2x128xf32>
    %556 = arith.addf %554, %555 : vector<2x128xf32>
    %557 = math.tanh %556 : vector<2x128xf32>
    %558 = arith.mulf %553, %557 : vector<2x128xf32>
    %c7_i32_197 = arith.constant 7 : i32
    %559 = arith.subi %c7_i32_197, %c7_i32_186 : i32
    %c1_198 = arith.constant 1 : index
    %560 = arith.index_cast %559 : i32 to index
    %c0_199 = arith.constant 0 : index
    %c0_200 = arith.constant 0 : index
    %561 = vector.load %arg1[%c1_198, %560, %c0_199, %c0_200] : memref<2x8x2x512xf32, #tpu.memory_space<vmem>>, vector<1x1x2x512xf32>
    %562 = vector.shape_cast %561 : vector<1x1x2x512xf32> to vector<2x512xf32>
    %563 = arith.truncf %517 : vector<2x128xf32> to vector<2x128xbf16>
    %c1_201 = arith.constant 1 : index
    %c0_202 = arith.constant 0 : index
    %c0_203 = arith.constant 0 : index
    %564 = vector.load %arg2[%c1_201, %c0_202, %c0_203] : memref<2x128x512xbf16, #tpu.memory_space<vmem>>, vector<1x128x512xbf16>
    %565 = vector.shape_cast %564 : vector<1x128x512xbf16> to vector<128x512xbf16>
    %cst_204 = arith.constant dense<0.000000e+00> : vector<2x512xf32>
    %566 = tpu.matmul %563, %565, %cst_204 {dimension_numbers = #tpu.dot_dimension_numbers<[1], [0], [0], [1], [0, 0, 1, 1], [], []>} : vector<2x128xbf16>, vector<128x512xbf16>, vector<2x512xf32> -> vector<2x512xf32>
    %567 = arith.addf %562, %566 : vector<2x512xf32>
    %568 = vector.extract_strided_slice %567 {offsets = [0, 0], sizes = [2, 128], strides = [1, 1]} : vector<2x512xf32> to vector<2x128xf32>
    %569 = arith.negf %568 : vector<2x128xf32>
    %570 = math.exp %569 : vector<2x128xf32>
    %cst_205 = arith.constant 1.000000e+00 : f32
    %571 = vector.broadcast %cst_205 : f32 to vector<2x128xf32>
    %572 = arith.addf %571, %570 : vector<2x128xf32>
    %573 = arith.divf %571, %572 : vector<2x128xf32>
    %574 = vector.extract_strided_slice %567 {offsets = [0, 128], sizes = [2, 128], strides = [1, 1]} : vector<2x512xf32> to vector<2x128xf32>
    %575 = arith.negf %574 : vector<2x128xf32>
    %576 = math.exp %575 : vector<2x128xf32>
    %cst_206 = arith.constant 1.000000e+00 : f32
    %577 = vector.broadcast %cst_206 : f32 to vector<2x128xf32>
    %578 = arith.addf %577, %576 : vector<2x128xf32>
    %579 = arith.divf %577, %578 : vector<2x128xf32>
    %580 = vector.extract_strided_slice %567 {offsets = [0, 256], sizes = [2, 128], strides = [1, 1]} : vector<2x512xf32> to vector<2x128xf32>
    %581 = math.tanh %580 : vector<2x128xf32>
    %582 = vector.extract_strided_slice %567 {offsets = [0, 384], sizes = [2, 128], strides = [1, 1]} : vector<2x512xf32> to vector<2x128xf32>
    %583 = arith.negf %582 : vector<2x128xf32>
    %584 = math.exp %583 : vector<2x128xf32>
    %cst_207 = arith.constant 1.000000e+00 : f32
    %585 = vector.broadcast %cst_207 : f32 to vector<2x128xf32>
    %586 = arith.addf %585, %584 : vector<2x128xf32>
    %587 = arith.divf %585, %586 : vector<2x128xf32>
    %588 = arith.mulf %579, %515 : vector<2x128xf32>
    %589 = arith.mulf %573, %581 : vector<2x128xf32>
    %590 = arith.addf %588, %589 : vector<2x128xf32>
    %591 = math.tanh %590 : vector<2x128xf32>
    %592 = arith.mulf %587, %591 : vector<2x128xf32>
    %c0_208 = arith.constant 0 : index
    %593 = arith.index_cast %c7_i32_186 : i32 to index
    %c0_209 = arith.constant 0 : index
    %c0_210 = arith.constant 0 : index
    %594 = vector.load %arg3[%c0_208, %593, %c0_209, %c0_210] : memref<2x8x2x128xf32, #tpu.memory_space<vmem>>, vector<1x1x2x128xf32>
    %595 = vector.shape_cast %594 : vector<1x1x2x128xf32> to vector<2x128xf32>
    %596 = vector.shape_cast %558 : vector<2x128xf32> to vector<1x1x2x128xf32>
    tpu.vector_store %arg3[%c0_208, %593, %c0_209, %c0_210], %596 {strides = array<i32>} : memref<2x8x2x128xf32, #tpu.memory_space<vmem>>, vector<1x1x2x128xf32>,
    %c1_211 = arith.constant 1 : index
    %597 = arith.index_cast %c7_i32_186 : i32 to index
    %c0_212 = arith.constant 0 : index
    %c0_213 = arith.constant 0 : index
    %598 = vector.load %arg3[%c1_211, %597, %c0_212, %c0_213] : memref<2x8x2x128xf32, #tpu.memory_space<vmem>>, vector<1x1x2x128xf32>
    %599 = vector.shape_cast %598 : vector<1x1x2x128xf32> to vector<2x128xf32>
    %600 = vector.shape_cast %592 : vector<2x128xf32> to vector<1x1x2x128xf32>
    tpu.vector_store %arg3[%c1_211, %597, %c0_212, %c0_213], %600 {strides = array<i32>} : memref<2x8x2x128xf32, #tpu.memory_space<vmem>>, vector<1x1x2x128xf32>,
    %c8_i32 = arith.constant 8 : i32
    return
  }
  func.func @transform_0(%arg0: i32) -> (i32, i32, i32, i32) {
    %c0_i32 = arith.constant 0 : i32
    %c0_i32_0 = arith.constant 0 : i32
    %c0_i32_1 = arith.constant 0 : i32
    %c0_i32_2 = arith.constant 0 : i32
    return %arg0, %c0_i32, %c0_i32_0, %c0_i32_1 : i32, i32, i32, i32
  }
  func.func @transform_1(%arg0: i32) -> (i32, i32, i32) {
    %c0_i32 = arith.constant 0 : i32
    %c0_i32_0 = arith.constant 0 : i32
    %c0_i32_1 = arith.constant 0 : i32
    return %arg0, %c0_i32, %c0_i32_0 : i32, i32, i32
  }
  func.func @transform_2(%arg0: i32) -> (i32, i32, i32, i32) {
    %c0_i32 = arith.constant 0 : i32
    %c0_i32_0 = arith.constant 0 : i32
    %c0_i32_1 = arith.constant 0 : i32
    %c0_i32_2 = arith.constant 0 : i32
    return %arg0, %c0_i32, %c0_i32_0, %c0_i32_1 : i32, i32, i32, i32
  }
}

</mosaic_0001>

<llo_original>
// kernel: model_forward.2
$region0: #{model_forward.2}
  #allocation0 [shape = 'u32[]', space=smem, size = 0x4, offset = 0x4, fixed_abs, tag = 'smem constant byte address 0x4 - core index']
  #allocation1 [shape = 'u32[144,128]{1,0:T(1,128)}', space=vmem, size = 0x12000, scoped, tag = 'internal scratch']
  %s0 = inlined_call_operand.vmem [shape: f32[4,8,2,512], index: 0, kind: input, shape index: {}]
  %s1 = inlined_call_operand.vmem [shape: bf16[4,128,512], index: 1, kind: input, shape index: {}]
  %s2 = inlined_call_operand.vmem [shape: f32[4,8,2,128], index: 2, kind: output, shape index: {}]
  %s3 = sld [smem:[#allocation0]]
  $region41: #{model_forward.2} parent=0
    _
  %s5 = ssub.s32 1, %s3
  %s6 = scalar_select 0, %s5, %s3
  loop: start=0, step=1, limit=4
  $region2: #{model_forward.2} parent=0 // loop_pre_header
    _
  $region3: #{model_forward.2} parent=0 // loop_header
    %s8 = sphi 0, %s12
    %p9 = scmp.ge.s32.totalorder %s8, 4
    %s18 = sphi 0, %s20
    %s21 = sphi 0, %s18
    %s22 = sphi 0, %s21
    %s38 = sphi 0, %s22
    %s44 = sphi 0, %s46
    %s47 = sphi 0, %s44
    %s48 = sphi 0, %s47
    %s64 = sphi 0, %s48
    %s70 = sphi 0, %s72
    %s73 = sphi 0, %s70
    %s74 = sphi 0, %s73
    %s90 = sphi 0, %s74
  $region4: #{model_forward.2} parent=0 // loop_header_branch
    %11 = sbr.rel (%p9) target = $region8
  $region5: #{model_forward.2} parent=0 // loop_body
    %s13 = ssub.s32 %s8, 1
    %s14 = ssub.s32 %s8, 2
    %s15 = sadd.s32 %s8, 1
    %s16 = ssub.s32 %s8, %s15
    %p17 = scmp.eq.s32.totalorder %s16, 0
    %s19 = sadd.s32 %s18, 1
    %s20 = scalar_select %p17, %s18, %s19
    %p23 = pneg %p17
    %p24 = scmp.eq.s32.totalorder %s8, 1
    %p25 = por %p23, %p24
    %p26 = scmp.ne.s32.totalorder %s18, %s21
    %p27 = scmp.eq.s32.totalorder %s8, 0
    %p28 = por %p26, %p27
    %p29 = scmp.ne.s32.totalorder %s18, %s21
    %p30 = scmp.eq.s32.totalorder %s13, 1
    %p31 = por %p29, %p30
    %p32 = scmp.ne.s32.totalorder %s21, %s22
    %p33 = scmp.eq.s32.totalorder %s13, 0
    %p34 = por %p32, %p33
    %p35 = scmp.ne.s32.totalorder %s21, %s22
    %p36 = scmp.eq.s32.totalorder %s14, 1
    %p37 = por %p35, %p36
    %p39 = scmp.ne.s32.totalorder %s22, %s38
    %p40 = scmp.eq.s32.totalorder %s14, 0
    %p41 = por %p39, %p40
    %s42 = ssub.s32 %s8, %s15
    %p43 = scmp.eq.s32.totalorder %s42, 0
    %s45 = sadd.s32 %s44, 1
    %s46 = scalar_select %p43, %s44, %s45
    %p49 = pneg %p43
    %p50 = scmp.eq.s32.totalorder %s8, 1
    %p51 = por %p49, %p50
    %p52 = scmp.ne.s32.totalorder %s44, %s47
    %p53 = scmp.eq.s32.totalorder %s8, 0
    %p54 = por %p52, %p53
    %p55 = scmp.ne.s32.totalorder %s44, %s47
    %p56 = scmp.eq.s32.totalorder %s13, 1
    %p57 = por %p55, %p56
    %p58 = scmp.ne.s32.totalorder %s47, %s48
    %p59 = scmp.eq.s32.totalorder %s13, 0
    %p60 = por %p58, %p59
    %p61 = scmp.ne.s32.totalorder %s47, %s48
    %p62 = scmp.eq.s32.totalorder %s14, 1
    %p63 = por %p61, %p62
    %p65 = scmp.ne.s32.totalorder %s48, %s64
    %p66 = scmp.eq.s32.totalorder %s14, 0
    %p67 = por %p65, %p66
    %s68 = ssub.s32 %s8, %s15
    %p69 = scmp.eq.s32.totalorder %s68, 0
    %s71 = sadd.s32 %s70, 1
    %s72 = scalar_select %p69, %s70, %s71
    %p75 = pneg %p69
    %p76 = scmp.eq.s32.totalorder %s8, 1
    %p77 = por %p75, %p76
    %p78 = scmp.ne.s32.totalorder %s70, %s73
    %p79 = scmp.eq.s32.totalorder %s8, 0
    %p80 = por %p78, %p79
    %p81 = scmp.ne.s32.totalorder %s70, %s73
    %p82 = scmp.eq.s32.totalorder %s13, 1
    %p83 = por %p81, %p82
    %p84 = scmp.ne.s32.totalorder %s73, %s74
    %p85 = scmp.eq.s32.totalorder %s13, 0
    %p86 = por %p84, %p85
    %p87 = scmp.ne.s32.totalorder %s73, %s74
    %p88 = scmp.eq.s32.totalorder %s14, 1
    %p89 = por %p87, %p88
    %p91 = scmp.ne.s32.totalorder %s74, %s90
    %p92 = scmp.eq.s32.totalorder %s14, 0
    %p93 = por %p91, %p92
    %p94 = scmp.le.s32.totalorder 1, %s8
    %p95 = scmp.lt.s32.totalorder %s8, 3
    %p96 = pnand %p94, %p95
    %p97 = pneg %p96
    // Predicated region
    $region9: #{model_forward.2} parent=5 // pred_check
      _
    $region10: #{model_forward.2} parent=5 // pred_check_branch
      %99 = sbr.rel (%p96) target = $region12
    $region11: #{model_forward.2} parent=5 // pred_region
      %s100 = ssub.s32 %s8, 1
    $region12: #{model_forward.2} parent=5 // pred_fallthru
      _
    %p101 = scmp.lt.s32.totalorder %s8, 2
    // Predicated region
    $region13: #{model_forward.2} parent=5 // pred_check
      %p102 = pneg %p101
    $region14: #{model_forward.2} parent=5 // pred_check_branch
      %104 = sbr.rel (%p102) target = $region16
    $region15: #{model_forward.2} parent=5 // pred_region
      // Predicated region
      $region17: #{model_forward.2} parent=15 // pred_check
        %p105 = pneg %p28
      $region18: #{model_forward.2} parent=15 // pred_check_branch
        %107 = sbr.rel (%p105) target = $region20
      $region19: #{model_forward.2} parent=15 // pred_region
        %s108 = smul.u32 2, %s8
        %p109 = scmp.lt.s32.totalorder %s108, 3
        %s110 = scalar_select %p109, %s108, 3
        %s111 = smul.addr %s110, 32
        %s112 = smul.addr %s111, 2
        %s113 = scalar_lea.vmem %s0, %s112
        %s114 = smul.u32 2, %s8
      $region20: #{model_forward.2} parent=15 // pred_fallthru
        _
      // Predicated region
      $region21: #{model_forward.2} parent=15 // pred_check
        %p115 = pneg %p54
      $region22: #{model_forward.2} parent=15 // pred_check_branch
        %117 = sbr.rel (%p115) target = $region24
      $region23: #{model_forward.2} parent=15 // pred_region
        %s118 = smul.u32 2, %s8
        %p119 = scmp.lt.s32.totalorder %s118, 3
        %s120 = scalar_select %p119, %s118, 3
        %s121 = smul.addr %s120, 64
        %s122 = smul.addr %s121, 4
        %s123 = scalar_lea.vmem %s1, %s122
        %s124 = smul.u32 2, %s8
      $region24: #{model_forward.2} parent=15 // pred_fallthru
        _
    $region16: #{model_forward.2} parent=5 // pred_fallthru
      _
    %p125 = scmp.le.s32.totalorder 1, %s8
    %p126 = scmp.lt.s32.totalorder %s8, 3
    %p127 = pnand %p125, %p126
    %p128 = pneg %p127
    // Predicated region
    $region25: #{model_forward.2} parent=5 // pred_check
      _
    $region26: #{model_forward.2} parent=5 // pred_check_branch
      %130 = sbr.rel (%p127) target = $region28
    $region27: #{model_forward.2} parent=5 // pred_region
      %s131 = ssub.s32 %s8, 1
      %s132 = smul.u32 2, %s13
      %p133 = scmp.lt.s32.totalorder %s132, 3
      %s134 = scalar_select %p133, %s132, 3
      %s135 = smul.addr %s134, 32
      %s136 = smul.addr %s135, 2
      %s137 = scalar_lea.vmem %s0, %s136
      %p138 = pneg %p34
      %p139 = pneg %p31
      %s140 = smul.u32 2, %s13
      %p141 = scmp.lt.s32.totalorder %s140, 3
      %s142 = scalar_select %p141, %s140, 3
      %s143 = smul.addr %s142, 64
      %s144 = smul.addr %s143, 4
      %s145 = scalar_lea.vmem %s1, %s144
      %p146 = pneg %p60
      %p147 = pneg %p57
      %p148 = pneg %p86
      %p149 = pneg %p83
      %s150 = smul.u32 2, %s13
      %p151 = scmp.lt.s32.totalorder %s150, 3
      %s152 = scalar_select %p151, %s150, 3
      %s153 = smul.addr %s152, 8
      %s154 = smul.addr %s153, 2
      %s155 = scalar_lea.vmem %s2, %s154
      %s156 = smul.u32 2, %s13
      %p157 = scmp.lt.s32.totalorder %s156, 3
      %s158 = scalar_select %p157, %s156, 3
      %s159 = smul.addr %s158, 32
      %s160 = smul.addr %s159, 2
      %s161 = scalar_lea.vmem %s0, %s160
      %s162 = smul.u32 2, %s13
      %s163 = smul.u32 2, %s13
      %p164 = scmp.lt.s32.totalorder %s163, 3
      %s165 = scalar_select %p164, %s163, 3
      %s166 = smul.addr %s165, 64
      %s167 = smul.addr %s166, 4
      %s168 = scalar_lea.vmem %s1, %s167
      %s169 = smul.u32 2, %s13
      %s170 = smul.u32 2, %s13
      %p171 = scmp.lt.s32.totalorder %s170, 3
      %s172 = scalar_select %p171, %s170, 3
      %s173 = smul.addr %s172, 8
      %s174 = smul.addr %s173, 2
      %s175 = scalar_lea.vmem %s2, %s174
      %s176 = smul.u32 2, %s13
      %v178 = vld [vmem:[%s161] sm:$0xff]
      %v179 = vld [vmem:[%s168] sm:$0xff]
      %v180 = vld [vmem:[%s168 + $0x8] sm:$0xff]
      %v181 = vld [vmem:[%s168 + $0x10] sm:$0xff]
      %v182 = vld [vmem:[%s168 + $0x18] sm:$0xff]
      %v183 = vld [vmem:[%s168 + $0x20] sm:$0xff]
      %v184 = vld [vmem:[%s168 + $0x28] sm:$0xff]
      %v185 = vld [vmem:[%s168 + $0x30] sm:$0xff]
      %v186 = vld [vmem:[%s168 + $0x38] sm:$0xff]
      %v187 = vld [vmem:[%s168 + $0x40] sm:$0xff]
      %v188 = vld [vmem:[%s168 + $0x48] sm:$0xff]
      %v189 = vld [vmem:[%s168 + $0x50] sm:$0xff]
      %v190 = vld [vmem:[%s168 + $0x58] sm:$0xff]
      %v191 = vld [vmem:[%s168 + $0x60] sm:$0xff]
      %v192 = vld [vmem:[%s168 + $0x68] sm:$0xff]
      %v193 = vld [vmem:[%s168 + $0x70] sm:$0xff]
      %v194 = vld [vmem:[%s168 + $0x78] sm:$0xff]
      %v195 = vld [vmem:[%s168 + $0x80] sm:$0xff]
      %v196 = vld [vmem:[%s168 + $0x88] sm:$0xff]
      %v197 = vld [vmem:[%s168 + $0x90] sm:$0xff]
      %v198 = vld [vmem:[%s168 + $0x98] sm:$0xff]
      %v199 = vld [vmem:[%s168 + $0xa0] sm:$0xff]
      %v200 = vld [vmem:[%s168 + $0xa8] sm:$0xff]
      %v201 = vld [vmem:[%s168 + $0xb0] sm:$0xff]
      %v202 = vld [vmem:[%s168 + $0xb8] sm:$0xff]
      %v203 = vld [vmem:[%s168 + $0xc0] sm:$0xff]
      %v204 = vld [vmem:[%s168 + $0xc8] sm:$0xff]
      %v205 = vld [vmem:[%s168 + $0xd0] sm:$0xff]
      %v206 = vld [vmem:[%s168 + $0xd8] sm:$0xff]
      %v207 = vld [vmem:[%s168 + $0xe0] sm:$0xff]
      %v208 = vld [vmem:[%s168 + $0xe8] sm:$0xff]
      %v209 = vld [vmem:[%s168 + $0xf0] sm:$0xff]
      %v210 = vld [vmem:[%s168 + $0xf8] sm:$0xff]
      %v243 = vunpack.c.l.b16 %v179
      %v244 = vunpack.c.h.b16 %v179
      %v245 = vunpack.c.l.b16 %v180
      %v246 = vunpack.c.h.b16 %v180
      %v247 = vunpack.c.l.b16 %v181
      %v248 = vunpack.c.h.b16 %v181
      %v249 = vunpack.c.l.b16 %v182
      %v250 = vunpack.c.h.b16 %v182
      %v251 = vunpack.c.l.b16 %v183
      %v252 = vunpack.c.h.b16 %v183
      %v253 = vunpack.c.l.b16 %v184
      %v254 = vunpack.c.h.b16 %v184
      %v255 = vunpack.c.l.b16 %v185
      %v256 = vunpack.c.h.b16 %v185
      %v257 = vunpack.c.l.b16 %v186
      %v258 = vunpack.c.h.b16 %v186
      %v259 = vunpack.c.l.b16 %v187
      %v260 = vunpack.c.h.b16 %v187
      %v261 = vunpack.c.l.b16 %v188
      %v262 = vunpack.c.h.b16 %v188
      %v263 = vunpack.c.l.b16 %v189
      %v264 = vunpack.c.h.b16 %v189
      %v265 = vunpack.c.l.b16 %v190
      %v266 = vunpack.c.h.b16 %v190
      %v267 = vunpack.c.l.b16 %v191
      %v268 = vunpack.c.h.b16 %v191
      %v269 = vunpack.c.l.b16 %v192
      %v270 = vunpack.c.h.b16 %v192
      %v271 = vunpack.c.l.b16 %v193
      %v272 = vunpack.c.h.b16 %v193
      %v273 = vunpack.c.l.b16 %v194
      %v274 = vunpack.c.h.b16 %v194
      %v275 = vunpack.c.l.b16 %v195
      %v276 = vunpack.c.h.b16 %v195
      %v277 = vunpack.c.l.b16 %v196
      %v278 = vunpack.c.h.b16 %v196
      %v279 = vunpack.c.l.b16 %v197
      %v280 = vunpack.c.h.b16 %v197
      %v281 = vunpack.c.l.b16 %v198
      %v282 = vunpack.c.h.b16 %v198
      %v283 = vunpack.c.l.b16 %v199
      %v284 = vunpack.c.h.b16 %v199
      %v285 = vunpack.c.l.b16 %v200
      %v286 = vunpack.c.h.b16 %v200
      %v287 = vunpack.c.l.b16 %v201
      %v288 = vunpack.c.h.b16 %v201
      %v289 = vunpack.c.l.b16 %v202
      %v290 = vunpack.c.h.b16 %v202
      %v291 = vunpack.c.l.b16 %v203
      %v292 = vunpack.c.h.b16 %v203
      %v293 = vunpack.c.l.b16 %v204
      %v294 = vunpack.c.h.b16 %v204
      %v295 = vunpack.c.l.b16 %v205
      %v296 = vunpack.c.h.b16 %v205
      %v297 = vunpack.c.l.b16 %v206
      %v298 = vunpack.c.h.b16 %v206
      %v299 = vunpack.c.l.b16 %v207
      %v300 = vunpack.c.h.b16 %v207
      %v301 = vunpack.c.l.b16 %v208
      %v302 = vunpack.c.h.b16 %v208
      %v303 = vunpack.c.l.b16 %v209
      %v304 = vunpack.c.h.b16 %v209
      %v305 = vunpack.c.l.b16 %v210
      %v306 = vunpack.c.h.b16 %v210
      %v307 = vpack.c.b16 %v247, %v243
      %v308 = vpack.c.b16 %v248, %v244
      %v309 = vpack.c.b16 %v249, %v245
      %v310 = vpack.c.b16 %v250, %v246
      %v311 = vpack.c.b16 %v255, %v251
      %v312 = vpack.c.b16 %v256, %v252
      %v313 = vpack.c.b16 %v257, %v253
      %v314 = vpack.c.b16 %v258, %v254
      %v315 = vpack.c.b16 %v263, %v259
      %v316 = vpack.c.b16 %v264, %v260
      %v317 = vpack.c.b16 %v265, %v261
      %v318 = vpack.c.b16 %v266, %v262
      %v319 = vpack.c.b16 %v271, %v267
      %v320 = vpack.c.b16 %v272, %v268
      %v321 = vpack.c.b16 %v273, %v269
      %v322 = vpack.c.b16 %v274, %v270
      %v323 = vpack.c.b16 %v279, %v275
      %v324 = vpack.c.b16 %v280, %v276
      %v325 = vpack.c.b16 %v281, %v277
      %v326 = vpack.c.b16 %v282, %v278
      %v327 = vpack.c.b16 %v287, %v283
      %v328 = vpack.c.b16 %v288, %v284
      %v329 = vpack.c.b16 %v289, %v285
      %v330 = vpack.c.b16 %v290, %v286
      %v331 = vpack.c.b16 %v295, %v291
      %v332 = vpack.c.b16 %v296, %v292
      %v333 = vpack.c.b16 %v297, %v293
      %v334 = vpack.c.b16 %v298, %v294
      %v335 = vpack.c.b16 %v303, %v299
      %v336 = vpack.c.b16 %v304, %v300
      %v337 = vpack.c.b16 %v305, %v301
      %v338 = vpack.c.b16 %v306, %v302
      %371 = vmatprep.subr.bf16.mxu0 %v308
      %372 = vmatpush1.bf16.msra.mxu0 %v307
      %373 = vmatprep.subr.bf16.mxu0 %v312
      %374 = vmatpush1.bf16.msra.mxu0 %v311
      %375 = vmatprep.subr.bf16.mxu0 %v316
      %376 = vmatpush1.bf16.msra.mxu0 %v315
      %377 = vmatprep.subr.bf16.mxu0 %v320
      %378 = vmatpush1.bf16.msra.mxu0 %v319
      %379 = vmatprep.subr.bf16.mxu0 %v324
      %380 = vmatpush1.bf16.msra.mxu0 %v323
      %381 = vmatprep.subr.bf16.mxu0 %v328
      %382 = vmatpush1.bf16.msra.mxu0 %v327
      %383 = vmatprep.subr.bf16.mxu0 %v332
      %384 = vmatpush1.bf16.msra.mxu0 %v331
      %385 = vmatprep.subr.bf16.mxu0 %v336
      %386 = vmatpush1.bf16.msra.mxu0 %v335
      %387 = vmatprep.subr.bf16.mxu0 0
      %388 = vmatpush1.bf16.msra.mxu0 0
      %389 = vmatprep.subr.bf16.mxu0 0
      %390 = vmatpush1.bf16.msra.mxu0 0
      %391 = vmatprep.subr.bf16.mxu0 0
      %392 = vmatpush1.bf16.msra.mxu0 0
      %393 = vmatprep.subr.bf16.mxu0 0
      %394 = vmatpush1.bf16.msra.mxu0 0
      %395 = vmatprep.subr.bf16.mxu0 0
      %396 = vmatpush1.bf16.msra.mxu0 0
      %397 = vmatprep.subr.bf16.mxu0 0
      %398 = vmatpush1.bf16.msra.mxu0 0
      %399 = vmatprep.subr.bf16.mxu0 0
      %400 = vmatpush1.bf16.msra.mxu0 0
      %401 = vmatprep.subr.bf16.mxu0 0
      %402 = vmatpush1.bf16.msra.mxu0 0
      %403 = vmatprep.mubr.bf16.mxu0 0
      %404 = vmatmul.mubr.bf16.gmra.mrb[0].mxu0 0
      %v405 = vpop.f32.mrb[0].mxu0
      %v406 = vadd.f32 0.0, %v405
      %v407 = vpop.f32.mrb[0].mxu0
      %v408 = vadd.f32 0.0, %v407
      %v409 = vpop.f32.mrb[0].mxu0
      %v410 = vpop.f32.mrb[0].mxu0
      %411 = vdwg.mxu0
      %412 = vmatprep.subr.bf16.mxu0 %v310
      %413 = vmatpush1.bf16.msra.mxu0 %v309
      %414 = vmatprep.subr.bf16.mxu0 %v314
      %415 = vmatpush1.bf16.msra.mxu0 %v313
      %416 = vmatprep.subr.bf16.mxu0 %v318
      %417 = vmatpush1.bf16.msra.mxu0 %v317
      %418 = vmatprep.subr.bf16.mxu0 %v322
      %419 = vmatpush1.bf16.msra.mxu0 %v321
      %420 = vmatprep.subr.bf16.mxu0 %v326
      %421 = vmatpush1.bf16.msra.mxu0 %v325
      %422 = vmatprep.subr.bf16.mxu0 %v330
      %423 = vmatpush1.bf16.msra.mxu0 %v329
      %424 = vmatprep.subr.bf16.mxu0 %v334
      %425 = vmatpush1.bf16.msra.mxu0 %v333
      %426 = vmatprep.subr.bf16.mxu0 %v338
      %427 = vmatpush1.bf16.msra.mxu0 %v337
      %428 = vmatprep.subr.bf16.mxu0 0
      %429 = vmatpush1.bf16.msra.mxu0 0
      %430 = vmatprep.subr.bf16.mxu0 0
      %431 = vmatpush1.bf16.msra.mxu0 0
      %432 = vmatprep.subr.bf16.mxu0 0
      %433 = vmatpush1.bf16.msra.mxu0 0
      %434 = vmatprep.subr.bf16.mxu0 0
      %435 = vmatpush1.bf16.msra.mxu0 0
      %436 = vmatprep.subr.bf16.mxu0 0
      %437 = vmatpush1.bf16.msra.mxu0 0
      %438 = vmatprep.subr.bf16.mxu0 0
      %439 = vmatpush1.bf16.msra.mxu0 0
      %440 = vmatprep.subr.bf16.mxu0 0
      %441 = vmatpush1.bf16.msra.mxu0 0
      %442 = vmatprep.subr.bf16.mxu0 0
      %443 = vmatpush1.bf16.msra.mxu0 0
      %444 = vmatprep.mubr.bf16.mxu0 0
      %445 = vmatmul.mubr.bf16.gmra.mrb[0].mxu0 0
      %v446 = vpop.f32.mrb[0].mxu0
      %v447 = vadd.f32 0.0, %v446
      %v448 = vpop.f32.mrb[0].mxu0
      %v449 = vadd.f32 0.0, %v448
      %v450 = vpop.f32.mrb[0].mxu0
      %v451 = vpop.f32.mrb[0].mxu0
      %452 = vdwg.mxu0
      %v457 = vcombine.low %v406, %v408
      %v458 = vcombine.low %v447, %v449
      %v460 = vunpack.c.l.s4 1983009808
      %v461 = vunpack.c.0.s8 %v460
      %v462 = vlaneseq
      %v463 = vshrl.u32 %v462, 7
      %v464 = vsub.s32 %v461, %v463
      %v465 = vrot.slane %v457, %v464
      %v467 = vunpack.c.l.s4 1983009808
      %v468 = vunpack.c.0.s8 %v467
      %v469 = vlaneseq
      %v470 = vshrl.u32 %v469, 7
      %v471 = vsub.s32 %v468, %v470
      %v472 = vrot.slane %v458, %v471
      %v473 = vcombine.low %v465, %v472
      %v475 = vadd.f32 %v178, %v473
      %v476 = vxor.u32 %v475, 2147483648
      %v477 = vmul.f32 %v476, 1.442695
      %v478 = vpow.pop %v477
      %v479 = vadd.f32 %v478, 1.0
      %v480 = vrcp.pop %v479
      %v481 = vmul.f32 1.0, %v480
      %v483 = vrot.slane %v475, 2
      %v485 = vxor.u32 %v483, 2147483648
      %v486 = vmul.f32 %v485, 1.442695
      %v487 = vpow.pop %v486
      %v488 = vadd.f32 %v487, 1.0
      %v489 = vrcp.pop %v488
      %v490 = vmul.f32 1.0, %v489
      %v491 = vrot.slane %v475, 4
      %v493 = vtanh.pop %v491
      %v494 = vrot.slane %v475, 6
      %v496 = vxor.u32 %v494, 2147483648
      %v497 = vmul.f32 %v496, 1.442695
      %v498 = vpow.pop %v497
      %v499 = vadd.f32 %v498, 1.0
      %v500 = vrcp.pop %v499
      %v501 = vmul.f32 1.0, %v500
      %v502 = vmul.f32 %v490, 0.0
      %v503 = vmul.f32 %v481, %v493
      %v504 = vadd.f32 %v502, %v503
      %v505 = vtanh.pop %v504
      %v506 = vmul.f32 %v501, %v505
      %s507 = scalar_lea.vmem %s161, 120
      %v508 = vld [vmem:[%s507] sm:$0xff]
      %s509 = scalar_lea.vmem %s168, 256
      %v510 = vld [vmem:[%s509] sm:$0xff]
      %v511 = vld [vmem:[%s509 + $0x8] sm:$0xff]
      %v512 = vld [vmem:[%s509 + $0x10] sm:$0xff]
      %v513 = vld [vmem:[%s509 + $0x18] sm:$0xff]
      %v514 = vld [vmem:[%s509 + $0x20] sm:$0xff]
      %v515 = vld [vmem:[%s509 + $0x28] sm:$0xff]
      %v516 = vld [vmem:[%s509 + $0x30] sm:$0xff]
      %v517 = vld [vmem:[%s509 + $0x38] sm:$0xff]
      %v518 = vld [vmem:[%s509 + $0x40] sm:$0xff]
      %v519 = vld [vmem:[%s509 + $0x48] sm:$0xff]
      %v520 = vld [vmem:[%s509 + $0x50] sm:$0xff]
      %v521 = vld [vmem:[%s509 + $0x58] sm:$0xff]
      %v522 = vld [vmem:[%s509 + $0x60] sm:$0xff]
      %v523 = vld [vmem:[%s509 + $0x68] sm:$0xff]
      %v524 = vld [vmem:[%s509 + $0x70] sm:$0xff]
      %v525 = vld [vmem:[%s509 + $0x78] sm:$0xff]
      %v526 = vld [vmem:[%s509 + $0x80] sm:$0xff]
      %v527 = vld [vmem:[%s509 + $0x88] sm:$0xff]
      %v528 = vld [vmem:[%s509 + $0x90] sm:$0xff]
      %v529 = vld [vmem:[%s509 + $0x98] sm:$0xff]
      %v530 = vld [vmem:[%s509 + $0xa0] sm:$0xff]
      %v531 = vld [vmem:[%s509 + $0xa8] sm:$0xff]
      %v532 = vld [vmem:[%s509 + $0xb0] sm:$0xff]
      %v533 = vld [vmem:[%s509 + $0xb8] sm:$0xff]
      %v534 = vld [vmem:[%s509 + $0xc0] sm:$0xff]
      %v535 = vld [vmem:[%s509 + $0xc8] sm:$0xff]
      %v536 = vld [vmem:[%s509 + $0xd0] sm:$0xff]
      %v537 = vld [vmem:[%s509 + $0xd8] sm:$0xff]
      %v538 = vld [vmem:[%s509 + $0xe0] sm:$0xff]
      %v539 = vld [vmem:[%s509 + $0xe8] sm:$0xff]
      %v540 = vld [vmem:[%s509 + $0xf0] sm:$0xff]
      %v541 = vld [vmem:[%s509 + $0xf8] sm:$0xff]
      %v574 = vunpack.c.l.b16 %v510
      %v575 = vunpack.c.h.b16 %v510
      %v576 = vunpack.c.l.b16 %v511
      %v577 = vunpack.c.h.b16 %v511
      %v578 = vunpack.c.l.b16 %v512
      %v579 = vunpack.c.h.b16 %v512
      %v580 = vunpack.c.l.b16 %v513
      %v581 = vunpack.c.h.b16 %v513
      %v582 = vunpack.c.l.b16 %v514
      %v583 = vunpack.c.h.b16 %v514
      %v584 = vunpack.c.l.b16 %v515
      %v585 = vunpack.c.h.b16 %v515
      %v586 = vunpack.c.l.b16 %v516
      %v587 = vunpack.c.h.b16 %v516
      %v588 = vunpack.c.l.b16 %v517
      %v589 = vunpack.c.h.b16 %v517
      %v590 = vunpack.c.l.b16 %v518
      %v591 = vunpack.c.h.b16 %v518
      %v592 = vunpack.c.l.b16 %v519
      %v593 = vunpack.c.h.b16 %v519
      %v594 = vunpack.c.l.b16 %v520
      %v595 = vunpack.c.h.b16 %v520
      %v596 = vunpack.c.l.b16 %v521
      %v597 = vunpack.c.h.b16 %v521
      %v598 = vunpack.c.l.b16 %v522
      %v599 = vunpack.c.h.b16 %v522
      %v600 = vunpack.c.l.b16 %v523
      %v601 = vunpack.c.h.b16 %v523
      %v602 = vunpack.c.l.b16 %v524
      %v603 = vunpack.c.h.b16 %v524
      %v604 = vunpack.c.l.b16 %v525
      %v605 = vunpack.c.h.b16 %v525
      %v606 = vunpack.c.l.b16 %v526
      %v607 = vunpack.c.h.b16 %v526
      %v608 = vunpack.c.l.b16 %v527
      %v609 = vunpack.c.h.b16 %v527
      %v610 = vunpack.c.l.b16 %v528
      %v611 = vunpack.c.h.b16 %v528
      %v612 = vunpack.c.l.b16 %v529
      %v613 = vunpack.c.h.b16 %v529
      %v614 = vunpack.c.l.b16 %v530
      %v615 = vunpack.c.h.b16 %v530
      %v616 = vunpack.c.l.b16 %v531
      %v617 = vunpack.c.h.b16 %v531
      %v618 = vunpack.c.l.b16 %v532
      %v619 = vunpack.c.h.b16 %v532
      %v620 = vunpack.c.l.b16 %v533
      %v621 = vunpack.c.h.b16 %v533
      %v622 = vunpack.c.l.b16 %v534
      %v623 = vunpack.c.h.b16 %v534
      %v624 = vunpack.c.l.b16 %v535
      %v625 = vunpack.c.h.b16 %v535
      %v626 = vunpack.c.l.b16 %v536
      %v627 = vunpack.c.h.b16 %v536
      %v628 = vunpack.c.l.b16 %v537
      %v629 = vunpack.c.h.b16 %v537
      %v630 = vunpack.c.l.b16 %v538
      %v631 = vunpack.c.h.b16 %v538
      %v632 = vunpack.c.l.b16 %v539
      %v633 = vunpack.c.h.b16 %v539
      %v634 = vunpack.c.l.b16 %v540
      %v635 = vunpack.c.h.b16 %v540
      %v636 = vunpack.c.l.b16 %v541
      %v637 = vunpack.c.h.b16 %v541
      %v638 = vpack.c.b16 %v578, %v574
      %v639 = vpack.c.b16 %v579, %v575
      %v640 = vpack.c.b16 %v580, %v576
      %v641 = vpack.c.b16 %v581, %v577
      %v642 = vpack.c.b16 %v586, %v582
      %v643 = vpack.c.b16 %v587, %v583
      %v644 = vpack.c.b16 %v588, %v584
      %v645 = vpack.c.b16 %v589, %v585
      %v646 = vpack.c.b16 %v594, %v590
      %v647 = vpack.c.b16 %v595, %v591
      %v648 = vpack.c.b16 %v596, %v592
      %v649 = vpack.c.b16 %v597, %v593
      %v650 = vpack.c.b16 %v602, %v598
      %v651 = vpack.c.b16 %v603, %v599
      %v652 = vpack.c.b16 %v604, %v600
      %v653 = vpack.c.b16 %v605, %v601
      %v654 = vpack.c.b16 %v610, %v606
      %v655 = vpack.c.b16 %v611, %v607
      %v656 = vpack.c.b16 %v612, %v608
      %v657 = vpack.c.b16 %v613, %v609
      %v658 = vpack.c.b16 %v618, %v614
      %v659 = vpack.c.b16 %v619, %v615
      %v660 = vpack.c.b16 %v620, %v616
      %v661 = vpack.c.b16 %v621, %v617
      %v662 = vpack.c.b16 %v626, %v622
      %v663 = vpack.c.b16 %v627, %v623
      %v664 = vpack.c.b16 %v628, %v624
      %v665 = vpack.c.b16 %v629, %v625
      %v666 = vpack.c.b16 %v634, %v630
      %v667 = vpack.c.b16 %v635, %v631
      %v668 = vpack.c.b16 %v636, %v632
      %v669 = vpack.c.b16 %v637, %v633
      %702 = vmatprep.subr.bf16.mxu0 %v639
      %703 = vmatpush1.bf16.msra.mxu0 %v638
      %704 = vmatprep.subr.bf16.mxu0 %v643
      %705 = vmatpush1.bf16.msra.mxu0 %v642
      %706 = vmatprep.subr.bf16.mxu0 %v647
      %707 = vmatpush1.bf16.msra.mxu0 %v646
      %708 = vmatprep.subr.bf16.mxu0 %v651
      %709 = vmatpush1.bf16.msra.mxu0 %v650
      %710 = vmatprep.subr.bf16.mxu0 %v655
      %711 = vmatpush1.bf16.msra.mxu0 %v654
      %712 = vmatprep.subr.bf16.mxu0 %v659
      %713 = vmatpush1.bf16.msra.mxu0 %v658
      %714 = vmatprep.subr.bf16.mxu0 %v663
      %715 = vmatpush1.bf16.msra.mxu0 %v662
      %716 = vmatprep.subr.bf16.mxu0 %v667
      %717 = vmatpush1.bf16.msra.mxu0 %v666
      %718 = vmatprep.subr.bf16.mxu0 0
      %719 = vmatpush1.bf16.msra.mxu0 0
      %720 = vmatprep.subr.bf16.mxu0 0
      %721 = vmatpush1.bf16.msra.mxu0 0
      %722 = vmatprep.subr.bf16.mxu0 0
      %723 = vmatpush1.bf16.msra.mxu0 0
      %724 = vmatprep.subr.bf16.mxu0 0
      %725 = vmatpush1.bf16.msra.mxu0 0
      %726 = vmatprep.subr.bf16.mxu0 0
      %727 = vmatpush1.bf16.msra.mxu0 0
      %728 = vmatprep.subr.bf16.mxu0 0
      %729 = vmatpush1.bf16.msra.mxu0 0
      %730 = vmatprep.subr.bf16.mxu0 0
      %731 = vmatpush1.bf16.msra.mxu0 0
      %732 = vmatprep.subr.bf16.mxu0 0
      %733 = vmatpush1.bf16.msra.mxu0 0
      %734 = vmatprep.mubr.bf16.mxu0 0
      %735 = vmatmul.mubr.bf16.gmra.mrb[0].mxu0 0
      %v736 = vpop.f32.mrb[0].mxu0
      %v737 = vadd.f32 0.0, %v736
      %v738 = vpop.f32.mrb[0].mxu0
      %v739 = vadd.f32 0.0, %v738
      %v740 = vpop.f32.mrb[0].mxu0
      %v741 = vpop.f32.mrb[0].mxu0
      %742 = vdwg.mxu0
      %743 = vmatprep.subr.bf16.mxu0 %v641
      %744 = vmatpush1.bf16.msra.mxu0 %v640
      %745 = vmatprep.subr.bf16.mxu0 %v645
      %746 = vmatpush1.bf16.msra.mxu0 %v644
      %747 = vmatprep.subr.bf16.mxu0 %v649
      %748 = vmatpush1.bf16.msra.mxu0 %v648
      %749 = vmatprep.subr.bf16.mxu0 %v653
      %750 = vmatpush1.bf16.msra.mxu0 %v652
      %751 = vmatprep.subr.bf16.mxu0 %v657
      %752 = vmatpush1.bf16.msra.mxu0 %v656
      %753 = vmatprep.subr.bf16.mxu0 %v661
      %754 = vmatpush1.bf16.msra.mxu0 %v660
      %755 = vmatprep.subr.bf16.mxu0 %v665
      %756 = vmatpush1.bf16.msra.mxu0 %v664
      %757 = vmatprep.subr.bf16.mxu0 %v669
      %758 = vmatpush1.bf16.msra.mxu0 %v668
      %759 = vmatprep.subr.bf16.mxu0 0
      %760 = vmatpush1.bf16.msra.mxu0 0
      %761 = vmatprep.subr.bf16.mxu0 0
      %762 = vmatpush1.bf16.msra.mxu0 0
      %763 = vmatprep.subr.bf16.mxu0 0
      %764 = vmatpush1.bf16.msra.mxu0 0
      %765 = vmatprep.subr.bf16.mxu0 0
      %766 = vmatpush1.bf16.msra.mxu0 0
      %767 = vmatprep.subr.bf16.mxu0 0
      %768 = vmatpush1.bf16.msra.mxu0 0
      %769 = vmatprep.subr.bf16.mxu0 0
      %770 = vmatpush1.bf16.msra.mxu0 0
      %771 = vmatprep.subr.bf16.mxu0 0
      %772 = vmatpush1.bf16.msra.mxu0 0
      %773 = vmatprep.subr.bf16.mxu0 0
      %774 = vmatpush1.bf16.msra.mxu0 0
      %775 = vmatprep.mubr.bf16.mxu0 0
      %776 = vmatmul.mubr.bf16.gmra.mrb[0].mxu0 0
      %v777 = vpop.f32.mrb[0].mxu0
      %v778 = vadd.f32 0.0, %v777
      %v779 = vpop.f32.mrb[0].mxu0
      %v780 = vadd.f32 0.0, %v779
      %v781 = vpop.f32.mrb[0].mxu0
      %v782 = vpop.f32.mrb[0].mxu0
      %783 = vdwg.mxu0
      %v788 = vcombine.low %v737, %v739
      %v789 = vcombine.low %v778, %v780
      %v791 = vunpack.c.l.s4 1983009808
      %v792 = vunpack.c.0.s8 %v791
      %v793 = vlaneseq
      %v794 = vshrl.u32 %v793, 7
      %v795 = vsub.s32 %v792, %v794
      %v796 = vrot.slane %v788, %v795
      %v798 = vunpack.c.l.s4 1983009808
      %v799 = vunpack.c.0.s8 %v798
      %v800 = vlaneseq
      %v801 = vshrl.u32 %v800, 7
      %v802 = vsub.s32 %v799, %v801
      %v803 = vrot.slane %v789, %v802
      %v804 = vcombine.low %v796, %v803
      %v806 = vadd.f32 %v508, %v804
      %v807 = vxor.u32 %v806, 2147483648
      %v808 = vmul.f32 %v807, 1.442695
      %v809 = vpow.pop %v808
      %v810 = vadd.f32 %v809, 1.0
      %v811 = vrcp.pop %v810
      %v812 = vmul.f32 1.0, %v811
      %v814 = vrot.slane %v806, 2
      %v816 = vxor.u32 %v814, 2147483648
      %v817 = vmul.f32 %v816, 1.442695
      %v818 = vpow.pop %v817
      %v819 = vadd.f32 %v818, 1.0
      %v820 = vrcp.pop %v819
      %v821 = vmul.f32 1.0, %v820
      %v822 = vrot.slane %v806, 4
      %v824 = vtanh.pop %v822
      %v825 = vrot.slane %v806, 6
      %v827 = vxor.u32 %v825, 2147483648
      %v828 = vmul.f32 %v827, 1.442695
      %v829 = vpow.pop %v828
      %v830 = vadd.f32 %v829, 1.0
      %v831 = vrcp.pop %v830
      %v832 = vmul.f32 1.0, %v831
      %v833 = vmul.f32 %v821, 0.0
      %v834 = vmul.f32 %v812, %v824
      %v835 = vadd.f32 %v833, %v834
      %v836 = vtanh.pop %v835
      %v837 = vmul.f32 %v832, %v836
      %838 = vst [vmem:[%s175] sm:$0x3] %v506
      %s839 = scalar_lea.vmem %s175, 16
      %840 = vst [vmem:[%s839] sm:$0x3] %v837
      %s841 = scalar_lea.vmem %s161, 8
      %v842 = vld [vmem:[%s841] sm:$0xff]
      %v843 = vpack.c.bf16 %v506, %v506
      %v844 = vld [vmem:[%s168] sm:$0xff]
      %v845 = vld [vmem:[%s168 + $0x8] sm:$0xff]
      %v846 = vld [vmem:[%s168 + $0x10] sm:$0xff]
      %v847 = vld [vmem:[%s168 + $0x18] sm:$0xff]
      %v848 = vld [vmem:[%s168 + $0x20] sm:$0xff]
      %v849 = vld [vmem:[%s168 + $0x28] sm:$0xff]
      %v850 = vld [vmem:[%s168 + $0x30] sm:$0xff]
      %v851 = vld [vmem:[%s168 + $0x38] sm:$0xff]
      %v852 = vld [vmem:[%s168 + $0x40] sm:$0xff]
      %v853 = vld [vmem:[%s168 + $0x48] sm:$0xff]
      %v854 = vld [vmem:[%s168 + $0x50] sm:$0xff]
      %v855 = vld [vmem:[%s168 + $0x58] sm:$0xff]
      %v856 = vld [vmem:[%s168 + $0x60] sm:$0xff]
      %v857 = vld [vmem:[%s168 + $0x68] sm:$0xff]
      %v858 = vld [vmem:[%s168 + $0x70] sm:$0xff]
      %v859 = vld [vmem:[%s168 + $0x78] sm:$0xff]
      %v860 = vld [vmem:[%s168 + $0x80] sm:$0xff]
      %v861 = vld [vmem:[%s168 + $0x88] sm:$0xff]
      %v862 = vld [vmem:[%s168 + $0x90] sm:$0xff]
      %v863 = vld [vmem:[%s168 + $0x98] sm:$0xff]
      %v864 = vld [vmem:[%s168 + $0xa0] sm:$0xff]
      %v865 = vld [vmem:[%s168 + $0xa8] sm:$0xff]
      %v866 = vld [vmem:[%s168 + $0xb0] sm:$0xff]
      %v867 = vld [vmem:[%s168 + $0xb8] sm:$0xff]
      %v868 = vld [vmem:[%s168 + $0xc0] sm:$0xff]
      %v869 = vld [vmem:[%s168 + $0xc8] sm:$0xff]
      %v870 = vld [vmem:[%s168 + $0xd0] sm:$0xff]
      %v871 = vld [vmem:[%s168 + $0xd8] sm:$0xff]
      %v872 = vld [vmem:[%s168 + $0xe0] sm:$0xff]
      %v873 = vld [vmem:[%s168 + $0xe8] sm:$0xff]
      %v874 = vld [vmem:[%s168 + $0xf0] sm:$0xff]
      %v875 = vld [vmem:[%s168 + $0xf8] sm:$0xff]
      %v908 = vunpack.c.l.b16 %v844
      %v909 = vunpack.c.h.b16 %v844
      %v910 = vunpack.c.l.b16 %v845
      %v911 = vunpack.c.h.b16 %v845
      %v912 = vunpack.c.l.b16 %v846
      %v913 = vunpack.c.h.b16 %v846
      %v914 = vunpack.c.l.b16 %v847
      %v915 = vunpack.c.h.b16 %v847
      %v916 = vunpack.c.l.b16 %v848
      %v917 = vunpack.c.h.b16 %v848
      %v918 = vunpack.c.l.b16 %v849
      %v919 = vunpack.c.h.b16 %v849
      %v920 = vunpack.c.l.b16 %v850
      %v921 = vunpack.c.h.b16 %v850
      %v922 = vunpack.c.l.b16 %v851
      %v923 = vunpack.c.h.b16 %v851
      %v924 = vunpack.c.l.b16 %v852
      %v925 = vunpack.c.h.b16 %v852
      %v926 = vunpack.c.l.b16 %v853
      %v927 = vunpack.c.h.b16 %v853
      %v928 = vunpack.c.l.b16 %v854
      %v929 = vunpack.c.h.b16 %v854
      %v930 = vunpack.c.l.b16 %v855
      %v931 = vunpack.c.h.b16 %v855
      %v932 = vunpack.c.l.b16 %v856
      %v933 = vunpack.c.h.b16 %v856
      %v934 = vunpack.c.l.b16 %v857
      %v935 = vunpack.c.h.b16 %v857
      %v936 = vunpack.c.l.b16 %v858
      %v937 = vunpack.c.h.b16 %v858
      %v938 = vunpack.c.l.b16 %v859
      %v939 = vunpack.c.h.b16 %v859
      %v940 = vunpack.c.l.b16 %v860
      %v941 = vunpack.c.h.b16 %v860
      %v942 = vunpack.c.l.b16 %v861
      %v943 = vunpack.c.h.b16 %v861
      %v944 = vunpack.c.l.b16 %v862
      %v945 = vunpack.c.h.b16 %v862
      %v946 = vunpack.c.l.b16 %v863
      %v947 = vunpack.c.h.b16 %v863
      %v948 = vunpack.c.l.b16 %v864
      %v949 = vunpack.c.h.b16 %v864
      %v950 = vunpack.c.l.b16 %v865
      %v951 = vunpack.c.h.b16 %v865
      %v952 = vunpack.c.l.b16 %v866
      %v953 = vunpack.c.h.b16 %v866
      %v954 = vunpack.c.l.b16 %v867
      %v955 = vunpack.c.h.b16 %v867
      %v956 = vunpack.c.l.b16 %v868
      %v957 = vunpack.c.h.b16 %v868
      %v958 = vunpack.c.l.b16 %v869
      %v959 = vunpack.c.h.b16 %v869
      %v960 = vunpack.c.l.b16 %v870
      %v961 = vunpack.c.h.b16 %v870
      %v962 = vunpack.c.l.b16 %v871
      %v963 = vunpack.c.h.b16 %v871
      %v964 = vunpack.c.l.b16 %v872
      %v965 = vunpack.c.h.b16 %v872
      %v966 = vunpack.c.l.b16 %v873
      %v967 = vunpack.c.h.b16 %v873
      %v968 = vunpack.c.l.b16 %v874
      %v969 = vunpack.c.h.b16 %v874
      %v970 = vunpack.c.l.b16 %v875
      %v971 = vunpack.c.h.b16 %v875
      %v972 = vpack.c.b16 %v912, %v908
      %v973 = vpack.c.b16 %v913, %v909
      %v974 = vpack.c.b16 %v914, %v910
      %v975 = vpack.c.b16 %v915, %v911
      %v976 = vpack.c.b16 %v920, %v916
      %v977 = vpack.c.b16 %v921, %v917
      %v978 = vpack.c.b16 %v922, %v918
      %v979 = vpack.c.b16 %v923, %v919
      %v980 = vpack.c.b16 %v928, %v924
      %v981 = vpack.c.b16 %v929, %v925
      %v982 = vpack.c.b16 %v930, %v926
      %v983 = vpack.c.b16 %v931, %v927
      %v984 = vpack.c.b16 %v936, %v932
      %v985 = vpack.c.b16 %v937, %v933
      %v986 = vpack.c.b16 %v938, %v934
      %v987 = vpack.c.b16 %v939, %v935
      %v988 = vpack.c.b16 %v944, %v940
      %v989 = vpack.c.b16 %v945, %v941
      %v990 = vpack.c.b16 %v946, %v942
      %v991 = vpack.c.b16 %v947, %v943
      %v992 = vpack.c.b16 %v952, %v948
      %v993 = vpack.c.b16 %v953, %v949
      %v994 = vpack.c.b16 %v954, %v950
      %v995 = vpack.c.b16 %v955, %v951
      %v996 = vpack.c.b16 %v960, %v956
      %v997 = vpack.c.b16 %v961, %v957
      %v998 = vpack.c.b16 %v962, %v958
      %v999 = vpack.c.b16 %v963, %v959
      %v1000 = vpack.c.b16 %v968, %v964
      %v1001 = vpack.c.b16 %v969, %v965
      %v1002 = vpack.c.b16 %v970, %v966
      %v1003 = vpack.c.b16 %v971, %v967
      %1036 = vmatprep.subr.bf16.mxu0 %v973
      %1037 = vmatpush1.bf16.msra.mxu0 %v972
      %1038 = vmatprep.subr.bf16.mxu0 %v977
      %1039 = vmatpush1.bf16.msra.mxu0 %v976
      %1040 = vmatprep.subr.bf16.mxu0 %v981
      %1041 = vmatpush1.bf16.msra.mxu0 %v980
      %1042 = vmatprep.subr.bf16.mxu0 %v985
      %1043 = vmatpush1.bf16.msra.mxu0 %v984
      %1044 = vmatprep.subr.bf16.mxu0 %v989
      %1045 = vmatpush1.bf16.msra.mxu0 %v988
      %1046 = vmatprep.subr.bf16.mxu0 %v993
      %1047 = vmatpush1.bf16.msra.mxu0 %v992
      %1048 = vmatprep.subr.bf16.mxu0 %v997
      %1049 = vmatpush1.bf16.msra.mxu0 %v996
      %1050 = vmatprep.subr.bf16.mxu0 %v1001
      %1051 = vmatpush1.bf16.msra.mxu0 %v1000
      %1052 = vmatprep.subr.bf16.mxu0 0
      %1053 = vmatpush1.bf16.msra.mxu0 0
      %1054 = vmatprep.subr.bf16.mxu0 0
      %1055 = vmatpush1.bf16.msra.mxu0 0
      %1056 = vmatprep.subr.bf16.mxu0 0
      %1057 = vmatpush1.bf16.msra.mxu0 0
      %1058 = vmatprep.subr.bf16.mxu0 0
      %1059 = vmatpush1.bf16.msra.mxu0 0
      %1060 = vmatprep.subr.bf16.mxu0 0
      %1061 = vmatpush1.bf16.msra.mxu0 0
      %1062 = vmatprep.subr.bf16.mxu0 0
      %1063 = vmatpush1.bf16.msra.mxu0 0
      %1064 = vmatprep.subr.bf16.mxu0 0
      %1065 = vmatpush1.bf16.msra.mxu0 0
      %1066 = vmatprep.subr.bf16.mxu0 0
      %1067 = vmatpush1.bf16.msra.mxu0 0
      %1068 = vmatprep.mubr.bf16.mxu0 0
      %1069 = vmatmul.mubr.bf16.gmra.mrb[0].mxu0 %v843
      %v1070 = vpop.f32.mrb[0].mxu0
      %v1071 = vadd.f32 0.0, %v1070
      %v1072 = vpop.f32.mrb[0].mxu0
      %v1073 = vadd.f32 0.0, %v1072
      %v1074 = vpop.f32.mrb[0].mxu0
      %v1075 = vpop.f32.mrb[0].mxu0
      %1076 = vdwg.mxu0
      %1077 = vmatprep.subr.bf16.mxu0 %v975
      %1078 = vmatpush1.bf16.msra.mxu0 %v974
      %1079 = vmatprep.subr.bf16.mxu0 %v979
      %1080 = vmatpush1.bf16.msra.mxu0 %v978
      %1081 = vmatprep.subr.bf16.mxu0 %v983
      %1082 = vmatpush1.bf16.msra.mxu0 %v982
      %1083 = vmatprep.subr.bf16.mxu0 %v987
      %1084 = vmatpush1.bf16.msra.mxu0 %v986
      %1085 = vmatprep.subr.bf16.mxu0 %v991
      %1086 = vmatpush1.bf16.msra.mxu0 %v990
      %1087 = vmatprep.subr.bf16.mxu0 %v995
      %1088 = vmatpush1.bf16.msra.mxu0 %v994
      %1089 = vmatprep.subr.bf16.mxu0 %v999
      %1090 = vmatpush1.bf16.msra.mxu0 %v998
      %1091 = vmatprep.subr.bf16.mxu0 %v1003
      %1092 = vmatpush1.bf16.msra.mxu0 %v1002
      %1093 = vmatprep.subr.bf16.mxu0 0
      %1094 = vmatpush1.bf16.msra.mxu0 0
      %1095 = vmatprep.subr.bf16.mxu0 0
      %1096 = vmatpush1.bf16.msra.mxu0 0
      %1097 = vmatprep.subr.bf16.mxu0 0
      %1098 = vmatpush1.bf16.msra.mxu0 0
      %1099 = vmatprep.subr.bf16.mxu0 0
      %1100 = vmatpush1.bf16.msra.mxu0 0
      %1101 = vmatprep.subr.bf16.mxu0 0
      %1102 = vmatpush1.bf16.msra.mxu0 0
      %1103 = vmatprep.subr.bf16.mxu0 0
      %1104 = vmatpush1.bf16.msra.mxu0 0
      %1105 = vmatprep.subr.bf16.mxu0 0
      %1106 = vmatpush1.bf16.msra.mxu0 0
      %1107 = vmatprep.subr.bf16.mxu0 0
      %1108 = vmatpush1.bf16.msra.mxu0 0
      %1109 = vmatprep.mubr.bf16.mxu0 0
      %1110 = vmatmul.mubr.bf16.gmra.mrb[0].mxu0 %v843
      %v1111 = vpop.f32.mrb[0].mxu0
      %v1112 = vadd.f32 0.0, %v1111
      %v1113 = vpop.f32.mrb[0].mxu0
      %v1114 = vadd.f32 0.0, %v1113
      %v1115 = vpop.f32.mrb[0].mxu0
      %v1116 = vpop.f32.mrb[0].mxu0
      %1117 = vdwg.mxu0
      %v1122 = vcombine.low %v1071, %v1073
      %v1123 = vcombine.low %v1112, %v1114
      %v1125 = vunpack.c.l.s4 1983009808
      %v1126 = vunpack.c.0.s8 %v1125
      %v1127 = vlaneseq
      %v1128 = vshrl.u32 %v1127, 7
      %v1129 = vsub.s32 %v1126, %v1128
      %v1130 = vrot.slane %v1122, %v1129
      %v1132 = vunpack.c.l.s4 1983009808
      %v1133 = vunpack.c.0.s8 %v1132
      %v1134 = vlaneseq
      %v1135 = vshrl.u32 %v1134, 7
      %v1136 = vsub.s32 %v1133, %v1135
      %v1137 = vrot.slane %v1123, %v1136
      %v1138 = vcombine.low %v1130, %v1137
      %v1140 = vadd.f32 %v842, %v1138
      %v1141 = vxor.u32 %v1140, 2147483648
      %v1142 = vmul.f32 %v1141, 1.442695
      %v1143 = vpow.pop %v1142
      %v1144 = vadd.f32 %v1143, 1.0
      %v1145 = vrcp.pop %v1144
      %v1146 = vmul.f32 1.0, %v1145
      %v1148 = vrot.slane %v1140, 2
      %v1150 = vxor.u32 %v1148, 2147483648
      %v1151 = vmul.f32 %v1150, 1.442695
      %v1152 = vpow.pop %v1151
      %v1153 = vadd.f32 %v1152, 1.0
      %v1154 = vrcp.pop %v1153
      %v1155 = vmul.f32 1.0, %v1154
      %v1156 = vrot.slane %v1140, 4
      %v1158 = vtanh.pop %v1156
      %v1159 = vrot.slane %v1140, 6
      %v1161 = vxor.u32 %v1159, 2147483648
      %v1162 = vmul.f32 %v1161, 1.442695
      %v1163 = vpow.pop %v1162
      %v1164 = vadd.f32 %v1163, 1.0
      %v1165 = vrcp.pop %v1164
      %v1166 = vmul.f32 1.0, %v1165
      %v1167 = vmul.f32 %v1155, %v504
      %v1168 = vmul.f32 %v1146, %v1158
      %v1169 = vadd.f32 %v1167, %v1168
      %v1170 = vtanh.pop %v1169
      %v1171 = vmul.f32 %v1166, %v1170
      %s1172 = scalar_lea.vmem %s161, 112
      %v1173 = vld [vmem:[%s1172] sm:$0xff]
      %v1174 = vpack.c.bf16 %v837, %v837
      %v1175 = vld [vmem:[%s509] sm:$0xff]
      %v1176 = vld [vmem:[%s509 + $0x8] sm:$0xff]
      %v1177 = vld [vmem:[%s509 + $0x10] sm:$0xff]
      %v1178 = vld [vmem:[%s509 + $0x18] sm:$0xff]
      %v1179 = vld [vmem:[%s509 + $0x20] sm:$0xff]
      %v1180 = vld [vmem:[%s509 + $0x28] sm:$0xff]
      %v1181 = vld [vmem:[%s509 + $0x30] sm:$0xff]
      %v1182 = vld [vmem:[%s509 + $0x38] sm:$0xff]
      %v1183 = vld [vmem:[%s509 + $0x40] sm:$0xff]
      %v1184 = vld [vmem:[%s509 + $0x48] sm:$0xff]
      %v1185 = vld [vmem:[%s509 + $0x50] sm:$0xff]
      %v1186 = vld [vmem:[%s509 + $0x58] sm:$0xff]
      %v1187 = vld [vmem:[%s509 + $0x60] sm:$0xff]
      %v1188 = vld [vmem:[%s509 + $0x68] sm:$0xff]
      %v1189 = vld [vmem:[%s509 + $0x70] sm:$0xff]
      %v1190 = vld [vmem:[%s509 + $0x78] sm:$0xff]
      %v1191 = vld [vmem:[%s509 + $0x80] sm:$0xff]
      %v1192 = vld [vmem:[%s509 + $0x88] sm:$0xff]
      %v1193 = vld [vmem:[%s509 + $0x90] sm:$0xff]
      %v1194 = vld [vmem:[%s509 + $0x98] sm:$0xff]
      %v1195 = vld [vmem:[%s509 + $0xa0] sm:$0xff]
      %v1196 = vld [vmem:[%s509 + $0xa8] sm:$0xff]
      %v1197 = vld [vmem:[%s509 + $0xb0] sm:$0xff]
      %v1198 = vld [vmem:[%s509 + $0xb8] sm:$0xff]
      %v1199 = vld [vmem:[%s509 + $0xc0] sm:$0xff]
      %v1200 = vld [vmem:[%s509 + $0xc8] sm:$0xff]
      %v1201 = vld [vmem:[%s509 + $0xd0] sm:$0xff]
      %v1202 = vld [vmem:[%s509 + $0xd8] sm:$0xff]
      %v1203 = vld [vmem:[%s509 + $0xe0] sm:$0xff]
      %v1204 = vld [vmem:[%s509 + $0xe8] sm:$0xff]
      %v1205 = vld [vmem:[%s509 + $0xf0] sm:$0xff]
      %v1206 = vld [vmem:[%s509 + $0xf8] sm:$0xff]
      %v1239 = vunpack.c.l.b16 %v1175
      %v1240 = vunpack.c.h.b16 %v1175
      %v1241 = vunpack.c.l.b16 %v1176
      %v1242 = vunpack.c.h.b16 %v1176
      %v1243 = vunpack.c.l.b16 %v1177
      %v1244 = vunpack.c.h.b16 %v1177
      %v1245 = vunpack.c.l.b16 %v1178
      %v1246 = vunpack.c.h.b16 %v1178
      %v1247 = vunpack.c.l.b16 %v1179
      %v1248 = vunpack.c.h.b16 %v1179
      %v1249 = vunpack.c.l.b16 %v1180
      %v1250 = vunpack.c.h.b16 %v1180
      %v1251 = vunpack.c.l.b16 %v1181
      %v1252 = vunpack.c.h.b16 %v1181
      %v1253 = vunpack.c.l.b16 %v1182
      %v1254 = vunpack.c.h.b16 %v1182
      %v1255 = vunpack.c.l.b16 %v1183
      %v1256 = vunpack.c.h.b16 %v1183
      %v1257 = vunpack.c.l.b16 %v1184
      %v1258 = vunpack.c.h.b16 %v1184
      %v1259 = vunpack.c.l.b16 %v1185
      %v1260 = vunpack.c.h.b16 %v1185
      %v1261 = vunpack.c.l.b16 %v1186
      %v1262 = vunpack.c.h.b16 %v1186
      %v1263 = vunpack.c.l.b16 %v1187
      %v1264 = vunpack.c.h.b16 %v1187
      %v1265 = vunpack.c.l.b16 %v1188
      %v1266 = vunpack.c.h.b16 %v1188
      %v1267 = vunpack.c.l.b16 %v1189
      %v1268 = vunpack.c.h.b16 %v1189
      %v1269 = vunpack.c.l.b16 %v1190
      %v1270 = vunpack.c.h.b16 %v1190
      %v1271 = vunpack.c.l.b16 %v1191
      %v1272 = vunpack.c.h.b16 %v1191
      %v1273 = vunpack.c.l.b16 %v1192
      %v1274 = vunpack.c.h.b16 %v1192
      %v1275 = vunpack.c.l.b16 %v1193
      %v1276 = vunpack.c.h.b16 %v1193
      %v1277 = vunpack.c.l.b16 %v1194
      %v1278 = vunpack.c.h.b16 %v1194
      %v1279 = vunpack.c.l.b16 %v1195
      %v1280 = vunpack.c.h.b16 %v1195
      %v1281 = vunpack.c.l.b16 %v1196
      %v1282 = vunpack.c.h.b16 %v1196
      %v1283 = vunpack.c.l.b16 %v1197
      %v1284 = vunpack.c.h.b16 %v1197
      %v1285 = vunpack.c.l.b16 %v1198
      %v1286 = vunpack.c.h.b16 %v1198
      %v1287 = vunpack.c.l.b16 %v1199
      %v1288 = vunpack.c.h.b16 %v1199
      %v1289 = vunpack.c.l.b16 %v1200
      %v1290 = vunpack.c.h.b16 %v1200
      %v1291 = vunpack.c.l.b16 %v1201
      %v1292 = vunpack.c.h.b16 %v1201
      %v1293 = vunpack.c.l.b16 %v1202
      %v1294 = vunpack.c.h.b16 %v1202
      %v1295 = vunpack.c.l.b16 %v1203
      %v1296 = vunpack.c.h.b16 %v1203
      %v1297 = vunpack.c.l.b16 %v1204
      %v1298 = vunpack.c.h.b16 %v1204
      %v1299 = vunpack.c.l.b16 %v1205
      %v1300 = vunpack.c.h.b16 %v1205
      %v1301 = vunpack.c.l.b16 %v1206
      %v1302 = vunpack.c.h.b16 %v1206
      %v1303 = vpack.c.b16 %v1243, %v1239
      %v1304 = vpack.c.b16 %v1244, %v1240
      %v1305 = vpack.c.b16 %v1245, %v1241
      %v1306 = vpack.c.b16 %v1246, %v1242
      %v1307 = vpack.c.b16 %v1251, %v1247
      %v1308 = vpack.c.b16 %v1252, %v1248
      %v1309 = vpack.c.b16 %v1253, %v1249
      %v1310 = vpack.c.b16 %v1254, %v1250
      %v1311 = vpack.c.b16 %v1259, %v1255
      %v1312 = vpack.c.b16 %v1260, %v1256
      %v1313 = vpack.c.b16 %v1261, %v1257
      %v1314 = vpack.c.b16 %v1262, %v1258
      %v1315 = vpack.c.b16 %v1267, %v1263
      %v1316 = vpack.c.b16 %v1268, %v1264
      %v1317 = vpack.c.b16 %v1269, %v1265
      %v1318 = vpack.c.b16 %v1270, %v1266
      %v1319 = vpack.c.b16 %v1275, %v1271
      %v1320 = vpack.c.b16 %v1276, %v1272
      %v1321 = vpack.c.b16 %v1277, %v1273
      %v1322 = vpack.c.b16 %v1278, %v1274
      %v1323 = vpack.c.b16 %v1283, %v1279
      %v1324 = vpack.c.b16 %v1284, %v1280
      %v1325 = vpack.c.b16 %v1285, %v1281
      %v1326 = vpack.c.b16 %v1286, %v1282
      %v1327 = vpack.c.b16 %v1291, %v1287
      %v1328 = vpack.c.b16 %v1292, %v1288
      %v1329 = vpack.c.b16 %v1293, %v1289
      %v1330 = vpack.c.b16 %v1294, %v1290
      %v1331 = vpack.c.b16 %v1299, %v1295
      %v1332 = vpack.c.b16 %v1300, %v1296
      %v1333 = vpack.c.b16 %v1301, %v1297
      %v1334 = vpack.c.b16 %v1302, %v1298
      %1367 = vmatprep.subr.bf16.mxu0 %v1304
      %1368 = vmatpush1.bf16.msra.mxu0 %v1303
      %1369 = vmatprep.subr.bf16.mxu0 %v1308
      %1370 = vmatpush1.bf16.msra.mxu0 %v1307
      %1371 = vmatprep.subr.bf16.mxu0 %v1312
      %1372 = vmatpush1.bf16.msra.mxu0 %v1311
      %1373 = vmatprep.subr.bf16.mxu0 %v1316
      %1374 = vmatpush1.bf16.msra.mxu0 %v1315
      %1375 = vmatprep.subr.bf16.mxu0 %v1320
      %1376 = vmatpush1.bf16.msra.mxu0 %v1319
      %1377 = vmatprep.subr.bf16.mxu0 %v1324
      %1378 = vmatpush1.bf16.msra.mxu0 %v1323
      %1379 = vmatprep.subr.bf16.mxu0 %v1328
      %1380 = vmatpush1.bf16.msra.mxu0 %v1327
      %1381 = vmatprep.subr.bf16.mxu0 %v1332
      %1382 = vmatpush1.bf16.msra.mxu0 %v1331
      %1383 = vmatprep.subr.bf16.mxu0 0
      %1384 = vmatpush1.bf16.msra.mxu0 0
      %1385 = vmatprep.subr.bf16.mxu0 0
      %1386 = vmatpush1.bf16.msra.mxu0 0
      %1387 = vmatprep.subr.bf16.mxu0 0
      %1388 = vmatpush1.bf16.msra.mxu0 0
      %1389 = vmatprep.subr.bf16.mxu0 0
      %1390 = vmatpush1.bf16.msra.mxu0 0
      %1391 = vmatprep.subr.bf16.mxu0 0
      %1392 = vmatpush1.bf16.msra.mxu0 0
      %1393 = vmatprep.subr.bf16.mxu0 0
      %1394 = vmatpush1.bf16.msra.mxu0 0
      %1395 = vmatprep.subr.bf16.mxu0 0
      %1396 = vmatpush1.bf16.msra.mxu0 0
      %1397 = vmatprep.subr.bf16.mxu0 0
      %1398 = vmatpush1.bf16.msra.mxu0 0
      %1399 = vmatprep.mubr.bf16.mxu0 0
      %1400 = vmatmul.mubr.bf16.gmra.mrb[0].mxu0 %v1174
      %v1401 = vpop.f32.mrb[0].mxu0
      %v1402 = vadd.f32 0.0, %v1401
      %v1403 = vpop.f32.mrb[0].mxu0
      %v1404 = vadd.f32 0.0, %v1403
      %v1405 = vpop.f32.mrb[0].mxu0
      %v1406 = vpop.f32.mrb[0].mxu0
      %1407 = vdwg.mxu0
      %1408 = vmatprep.subr.bf16.mxu0 %v1306
      %1409 = vmatpush1.bf16.msra.mxu0 %v1305
      %1410 = vmatprep.subr.bf16.mxu0 %v1310
      %1411 = vmatpush1.bf16.msra.mxu0 %v1309
      %1412 = vmatprep.subr.bf16.mxu0 %v1314
      %1413 = vmatpush1.bf16.msra.mxu0 %v1313
      %1414 = vmatprep.subr.bf16.mxu0 %v1318
      %1415 = vmatpush1.bf16.msra.mxu0 %v1317
      %1416 = vmatprep.subr.bf16.mxu0 %v1322
      %1417 = vmatpush1.bf16.msra.mxu0 %v1321
      %1418 = vmatprep.subr.bf16.mxu0 %v1326
      %1419 = vmatpush1.bf16.msra.mxu0 %v1325
      %1420 = vmatprep.subr.bf16.mxu0 %v1330
      %1421 = vmatpush1.bf16.msra.mxu0 %v1329
      %1422 = vmatprep.subr.bf16.mxu0 %v1334
      %1423 = vmatpush1.bf16.msra.mxu0 %v1333
      %1424 = vmatprep.subr.bf16.mxu0 0
      %1425 = vmatpush1.bf16.msra.mxu0 0
      %1426 = vmatprep.subr.bf16.mxu0 0
      %1427 = vmatpush1.bf16.msra.mxu0 0
      %1428 = vmatprep.subr.bf16.mxu0 0
      %1429 = vmatpush1.bf16.msra.mxu0 0
      %1430 = vmatprep.subr.bf16.mxu0 0
      %1431 = vmatpush1.bf16.msra.mxu0 0
      %1432 = vmatprep.subr.bf16.mxu0 0
      %1433 = vmatpush1.bf16.msra.mxu0 0
      %1434 = vmatprep.subr.bf16.mxu0 0
      %1435 = vmatpush1.bf16.msra.mxu0 0
      %1436 = vmatprep.subr.bf16.mxu0 0
      %1437 = vmatpush1.bf16.msra.mxu0 0
      %1438 = vmatprep.subr.bf16.mxu0 0
      %1439 = vmatpush1.bf16.msra.mxu0 0
      %1440 = vmatprep.mubr.bf16.mxu0 0
      %1441 = vmatmul.mubr.bf16.gmra.mrb[0].mxu0 %v1174
      %v1442 = vpop.f32.mrb[0].mxu0
      %v1443 = vadd.f32 0.0, %v1442
      %v1444 = vpop.f32.mrb[0].mxu0
      %v1445 = vadd.f32 0.0, %v1444
      %v1446 = vpop.f32.mrb[0].mxu0
      %v1447 = vpop.f32.mrb[0].mxu0
      %1448 = vdwg.mxu0
      %v1453 = vcombine.low %v1402, %v1404
      %v1454 = vcombine.low %v1443, %v1445
      %v1456 = vunpack.c.l.s4 1983009808
      %v1457 = vunpack.c.0.s8 %v1456
      %v1458 = vlaneseq
      %v1459 = vshrl.u32 %v1458, 7
      %v1460 = vsub.s32 %v1457, %v1459
      %v1461 = vrot.slane %v1453, %v1460
      %v1463 = vunpack.c.l.s4 1983009808
      %v1464 = vunpack.c.0.s8 %v1463
      %v1465 = vlaneseq
      %v1466 = vshrl.u32 %v1465, 7
      %v1467 = vsub.s32 %v1464, %v1466
      %v1468 = vrot.slane %v1454, %v1467
      %v1469 = vcombine.low %v1461, %v1468
      %v1471 = vadd.f32 %v1173, %v1469
      %v1472 = vxor.u32 %v1471, 2147483648
      %v1473 = vmul.f32 %v1472, 1.442695
      %v1474 = vpow.pop %v1473
      %v1475 = vadd.f32 %v1474, 1.0
      %v1476 = vrcp.pop %v1475
      %v1477 = vmul.f32 1.0, %v1476
      %v1479 = vrot.slane %v1471, 2
      %v1481 = vxor.u32 %v1479, 2147483648
      %v1482 = vmul.f32 %v1481, 1.442695
      %v1483 = vpow.pop %v1482
      %v1484 = vadd.f32 %v1483, 1.0
      %v1485 = vrcp.pop %v1484
      %v1486 = vmul.f32 1.0, %v1485
      %v1487 = vrot.slane %v1471, 4
      %v1489 = vtanh.pop %v1487
      %v1490 = vrot.slane %v1471, 6
      %v1492 = vxor.u32 %v1490, 2147483648
      %v1493 = vmul.f32 %v1492, 1.442695
      %v1494 = vpow.pop %v1493
      %v1495 = vadd.f32 %v1494, 1.0
      %v1496 = vrcp.pop %v1495
      %v1497 = vmul.f32 1.0, %v1496
      %v1498 = vmul.f32 %v1486, %v835
      %v1499 = vmul.f32 %v1477, %v1489
      %v1500 = vadd.f32 %v1498, %v1499
      %v1501 = vtanh.pop %v1500
      %v1502 = vmul.f32 %v1497, %v1501
      %s1503 = scalar_lea.vmem %s175, 2
      %1504 = vst [vmem:[%s1503] sm:$0x3] %v1171
      %s1505 = scalar_lea.vmem %s175, 18
      %1506 = vst [vmem:[%s1505] sm:$0x3] %v1502
      %s1507 = scalar_lea.vmem %s161, 16
      %v1508 = vld [vmem:[%s1507] sm:$0xff]
      %v1509 = vpack.c.bf16 %v1171, %v1171
      %v1510 = vld [vmem:[%s168] sm:$0xff]
      %v1511 = vld [vmem:[%s168 + $0x8] sm:$0xff]
      %v1512 = vld [vmem:[%s168 + $0x10] sm:$0xff]
      %v1513 = vld [vmem:[%s168 + $0x18] sm:$0xff]
      %v1514 = vld [vmem:[%s168 + $0x20] sm:$0xff]
      %v1515 = vld [vmem:[%s168 + $0x28] sm:$0xff]
      %v1516 = vld [vmem:[%s168 + $0x30] sm:$0xff]
      %v1517 = vld [vmem:[%s168 + $0x38] sm:$0xff]
      %v1518 = vld [vmem:[%s168 + $0x40] sm:$0xff]
      %v1519 = vld [vmem:[%s168 + $0x48] sm:$0xff]
      %v1520 = vld [vmem:[%s168 + $0x50] sm:$0xff]
      %v1521 = vld [vmem:[%s168 + $0x58] sm:$0xff]
      %v1522 = vld [vmem:[%s168 + $0x60] sm:$0xff]
      %v1523 = vld [vmem:[%s168 + $0x68] sm:$0xff]
      %v1524 = vld [vmem:[%s168 + $0x70] sm:$0xff]
      %v1525 = vld [vmem:[%s168 + $0x78] sm:$0xff]
      %v1526 = vld [vmem:[%s168 + $0x80] sm:$0xff]
      %v1527 = vld [vmem:[%s168 + $0x88] sm:$0xff]
      %v1528 = vld [vmem:[%s168 + $0x90] sm:$0xff]
      %v1529 = vld [vmem:[%s168 + $0x98] sm:$0xff]
      %v1530 = vld [vmem:[%s168 + $0xa0] sm:$0xff]
      %v1531 = vld [vmem:[%s168 + $0xa8] sm:$0xff]
      %v1532 = vld [vmem:[%s168 + $0xb0] sm:$0xff]
      %v1533 = vld [vmem:[%s168 + $0xb8] sm:$0xff]
      %v1534 = vld [vmem:[%s168 + $0xc0] sm:$0xff]
      %v1535 = vld [vmem:[%s168 + $0xc8] sm:$0xff]
      %v1536 = vld [vmem:[%s168 + $0xd0] sm:$0xff]
      %v1537 = vld [vmem:[%s168 + $0xd8] sm:$0xff]
      %v1538 = vld [vmem:[%s168 + $0xe0] sm:$0xff]
      %v1539 = vld [vmem:[%s168 + $0xe8] sm:$0xff]
      %v1540 = vld [vmem:[%s168 + $0xf0] sm:$0xff]
      %v1541 = vld [vmem:[%s168 + $0xf8] sm:$0xff]
      %v1574 = vunpack.c.l.b16 %v1510
      %v1575 = vunpack.c.h.b16 %v1510
      %v1576 = vunpack.c.l.b16 %v1511
      %v1577 = vunpack.c.h.b16 %v1511
      %v1578 = vunpack.c.l.b16 %v1512
      %v1579 = vunpack.c.h.b16 %v1512
      %v1580 = vunpack.c.l.b16 %v1513
      %v1581 = vunpack.c.h.b16 %v1513
      %v1582 = vunpack.c.l.b16 %v1514
      %v1583 = vunpack.c.h.b16 %v1514
      %v1584 = vunpack.c.l.b16 %v1515
      %v1585 = vunpack.c.h.b16 %v1515
      %v1586 = vunpack.c.l.b16 %v1516
      %v1587 = vunpack.c.h.b16 %v1516
      %v1588 = vunpack.c.l.b16 %v1517
      %v1589 = vunpack.c.h.b16 %v1517
      %v1590 = vunpack.c.l.b16 %v1518
      %v1591 = vunpack.c.h.b16 %v1518
      %v1592 = vunpack.c.l.b16 %v1519
      %v1593 = vunpack.c.h.b16 %v1519
      %v1594 = vunpack.c.l.b16 %v1520
      %v1595 = vunpack.c.h.b16 %v1520
      %v1596 = vunpack.c.l.b16 %v1521
      %v1597 = vunpack.c.h.b16 %v1521
      %v1598 = vunpack.c.l.b16 %v1522
      %v1599 = vunpack.c.h.b16 %v1522
      %v1600 = vunpack.c.l.b16 %v1523
      %v1601 = vunpack.c.h.b16 %v1523
      %v1602 = vunpack.c.l.b16 %v1524
      %v1603 = vunpack.c.h.b16 %v1524
      %v1604 = vunpack.c.l.b16 %v1525
      %v1605 = vunpack.c.h.b16 %v1525
      %v1606 = vunpack.c.l.b16 %v1526
      %v1607 = vunpack.c.h.b16 %v1526
      %v1608 = vunpack.c.l.b16 %v1527
      %v1609 = vunpack.c.h.b16 %v1527
      %v1610 = vunpack.c.l.b16 %v1528
      %v1611 = vunpack.c.h.b16 %v1528
      %v1612 = vunpack.c.l.b16 %v1529
      %v1613 = vunpack.c.h.b16 %v1529
      %v1614 = vunpack.c.l.b16 %v1530
      %v1615 = vunpack.c.h.b16 %v1530
      %v1616 = vunpack.c.l.b16 %v1531
      %v1617 = vunpack.c.h.b16 %v1531
      %v1618 = vunpack.c.l.b16 %v1532
      %v1619 = vunpack.c.h.b16 %v1532
      %v1620 = vunpack.c.l.b16 %v1533
      %v1621 = vunpack.c.h.b16 %v1533
      %v1622 = vunpack.c.l.b16 %v1534
      %v1623 = vunpack.c.h.b16 %v1534
      %v1624 = vunpack.c.l.b16 %v1535
      %v1625 = vunpack.c.h.b16 %v1535
      %v1626 = vunpack.c.l.b16 %v1536
      %v1627 = vunpack.c.h.b16 %v1536
      %v1628 = vunpack.c.l.b16 %v1537
      %v1629 = vunpack.c.h.b16 %v1537
      %v1630 = vunpack.c.l.b16 %v1538
      %v1631 = vunpack.c.h.b16 %v1538
      %v1632 = vunpack.c.l.b16 %v1539
      %v1633 = vunpack.c.h.b16 %v1539
      %v1634 = vunpack.c.l.b16 %v1540
      %v1635 = vunpack.c.h.b16 %v1540
      %v1636 = vunpack.c.l.b16 %v1541
      %v1637 = vunpack.c.h.b16 %v1541
      %v1638 = vpack.c.b16 %v1578, %v1574
      %v1639 = vpack.c.b16 %v1579, %v1575
      %v1640 = vpack.c.b16 %v1580, %v1576
      %v1641 = vpack.c.b16 %v1581, %v1577
      %v1642 = vpack.c.b16 %v1586, %v1582
      %v1643 = vpack.c.b16 %v1587, %v1583
      %v1644 = vpack.c.b16 %v1588, %v1584
      %v1645 = vpack.c.b16 %v1589, %v1585
      %v1646 = vpack.c.b16 %v1594, %v1590
      %v1647 = vpack.c.b16 %v1595, %v1591
      %v1648 = vpack.c.b16 %v1596, %v1592
      %v1649 = vpack.c.b16 %v1597, %v1593
      %v1650 = vpack.c.b16 %v1602, %v1598
      %v1651 = vpack.c.b16 %v1603, %v1599
      %v1652 = vpack.c.b16 %v1604, %v1600
      %v1653 = vpack.c.b16 %v1605, %v1601
      %v1654 = vpack.c.b16 %v1610, %v1606
      %v1655 = vpack.c.b16 %v1611, %v1607
      %v1656 = vpack.c.b16 %v1612, %v1608
      %v1657 = vpack.c.b16 %v1613, %v1609
      %v1658 = vpack.c.b16 %v1618, %v1614
      %v1659 = vpack.c.b16 %v1619, %v1615
      %v1660 = vpack.c.b16 %v1620, %v1616
      %v1661 = vpack.c.b16 %v1621, %v1617
      %v1662 = vpack.c.b16 %v1626, %v1622
      %v1663 = vpack.c.b16 %v1627, %v1623
      %v1664 = vpack.c.b16 %v1628, %v1624
      %v1665 = vpack.c.b16 %v1629, %v1625
      %v1666 = vpack.c.b16 %v1634, %v1630
      %v1667 = vpack.c.b16 %v1635, %v1631
      %v1668 = vpack.c.b16 %v1636, %v1632
      %v1669 = vpack.c.b16 %v1637, %v1633
      %1702 = vmatprep.subr.bf16.mxu0 %v1639
      %1703 = vmatpush1.bf16.msra.mxu0 %v1638
      %1704 = vmatprep.subr.bf16.mxu0 %v1643
      %1705 = vmatpush1.bf16.msra.mxu0 %v1642
      %1706 = vmatprep.subr.bf16.mxu0 %v1647
      %1707 = vmatpush1.bf16.msra.mxu0 %v1646
      %1708 = vmatprep.subr.bf16.mxu0 %v1651
      %1709 = vmatpush1.bf16.msra.mxu0 %v1650
      %1710 = vmatprep.subr.bf16.mxu0 %v1655
      %1711 = vmatpush1.bf16.msra.mxu0 %v1654
      %1712 = vmatprep.subr.bf16.mxu0 %v1659
      %1713 = vmatpush1.bf16.msra.mxu0 %v1658
      %1714 = vmatprep.subr.bf16.mxu0 %v1663
      %1715 = vmatpush1.bf16.msra.mxu0 %v1662
      %1716 = vmatprep.subr.bf16.mxu0 %v1667
      %1717 = vmatpush1.bf16.msra.mxu0 %v1666
      %1718 = vmatprep.subr.bf16.mxu0 0
      %1719 = vmatpush1.bf16.msra.mxu0 0
      %1720 = vmatprep.subr.bf16.mxu0 0
      %1721 = vmatpush1.bf16.msra.mxu0 0
      %1722 = vmatprep.subr.bf16.mxu0 0
      %1723 = vmatpush1.bf16.msra.mxu0 0
      %1724 = vmatprep.subr.bf16.mxu0 0
      %1725 = vmatpush1.bf16.msra.mxu0 0
      %1726 = vmatprep.subr.bf16.mxu0 0
      %1727 = vmatpush1.bf16.msra.mxu0 0
      %1728 = vmatprep.subr.bf16.mxu0 0
      %1729 = vmatpush1.bf16.msra.mxu0 0
      %1730 = vmatprep.subr.bf16.mxu0 0
      %1731 = vmatpush1.bf16.msra.mxu0 0
      %1732 = vmatprep.subr.bf16.mxu0 0
      %1733 = vmatpush1.bf16.msra.mxu0 0
      %1734 = vmatprep.mubr.bf16.mxu0 0
      %1735 = vmatmul.mubr.bf16.gmra.mrb[0].mxu0 %v1509
      %v1736 = vpop.f32.mrb[0].mxu0
      %v1737 = vadd.f32 0.0, %v1736
      %v1738 = vpop.f32.mrb[0].mxu0
      %v1739 = vadd.f32 0.0, %v1738
      %v1740 = vpop.f32.mrb[0].mxu0
      %v1741 = vpop.f32.mrb[0].mxu0
      %1742 = vdwg.mxu0
      %1743 = vmatprep.subr.bf16.mxu0 %v1641
      %1744 = vmatpush1.bf16.msra.mxu0 %v1640
      %1745 = vmatprep.subr.bf16.mxu0 %v1645
      %1746 = vmatpush1.bf16.msra.mxu0 %v1644
      %1747 = vmatprep.subr.bf16.mxu0 %v1649
      %1748 = vmatpush1.bf16.msra.mxu0 %v1648
      %1749 = vmatprep.subr.bf16.mxu0 %v1653
      %1750 = vmatpush1.bf16.msra.mxu0 %v1652
      %1751 = vmatprep.subr.bf16.mxu0 %v1657
      %1752 = vmatpush1.bf16.msra.mxu0 %v1656
      %1753 = vmatprep.subr.bf16.mxu0 %v1661
      %1754 = vmatpush1.bf16.msra.mxu0 %v1660
      %1755 = vmatprep.subr.bf16.mxu0 %v1665
      %1756 = vmatpush1.bf16.msra.mxu0 %v1664
      %1757 = vmatprep.subr.bf16.mxu0 %v1669
      %1758 = vmatpush1.bf16.msra.mxu0 %v1668
      %1759 = vmatprep.subr.bf16.mxu0 0
      %1760 = vmatpush1.bf16.msra.mxu0 0
      %1761 = vmatprep.subr.bf16.mxu0 0
      %1762 = vmatpush1.bf16.msra.mxu0 0
      %1763 = vmatprep.subr.bf16.mxu0 0
      %1764 = vmatpush1.bf16.msra.mxu0 0
      %1765 = vmatprep.subr.bf16.mxu0 0
      %1766 = vmatpush1.bf16.msra.mxu0 0
      %1767 = vmatprep.subr.bf16.mxu0 0
      %1768 = vmatpush1.bf16.msra.mxu0 0
      %1769 = vmatprep.subr.bf16.mxu0 0
      %1770 = vmatpush1.bf16.msra.mxu0 0
      %1771 = vmatprep.subr.bf16.mxu0 0
      %1772 = vmatpush1.bf16.msra.mxu0 0
      %1773 = vmatprep.subr.bf16.mxu0 0
      %1774 = vmatpush1.bf16.msra.mxu0 0
      %1775 = vmatprep.mubr.bf16.mxu0 0
      %1776 = vmatmul.mubr.bf16.gmra.mrb[0].mxu0 %v1509
      %v1777 = vpop.f32.mrb[0].mxu0
      %v1778 = vadd.f32 0.0, %v1777
      %v1779 = vpop.f32.mrb[0].mxu0
      %v1780 = vadd.f32 0.0, %v1779
      %v1781 = vpop.f32.mrb[0].mxu0
      %v1782 = vpop.f32.mrb[0].mxu0
      %1783 = vdwg.mxu0
      %v1788 = vcombine.low %v1737, %v1739
      %v1789 = vcombine.low %v1778, %v1780
      %v1791 = vunpack.c.l.s4 1983009808
      %v1792 = vunpack.c.0.s8 %v1791
      %v1793 = vlaneseq
      %v1794 = vshrl.u32 %v1793, 7
      %v1795 = vsub.s32 %v1792, %v1794
      %v1796 = vrot.slane %v1788, %v1795
      %v1798 = vunpack.c.l.s4 1983009808
      %v1799 = vunpack.c.0.s8 %v1798
      %v1800 = vlaneseq
      %v1801 = vshrl.u32 %v1800, 7
      %v1802 = vsub.s32 %v1799, %v1801
      %v1803 = vrot.slane %v1789, %v1802
      %v1804 = vcombine.low %v1796, %v1803
      %v1806 = vadd.f32 %v1508, %v1804
      %v1807 = vxor.u32 %v1806, 2147483648
      %v1808 = vmul.f32 %v1807, 1.442695
      %v1809 = vpow.pop %v1808
      %v1810 = vadd.f32 %v1809, 1.0
      %v1811 = vrcp.pop %v1810
      %v1812 = vmul.f32 1.0, %v1811
      %v1814 = vrot.slane %v1806, 2
      %v1816 = vxor.u32 %v1814, 2147483648
      %v1817 = vmul.f32 %v1816, 1.442695
      %v1818 = vpow.pop %v1817
      %v1819 = vadd.f32 %v1818, 1.0
      %v1820 = vrcp.pop %v1819
      %v1821 = vmul.f32 1.0, %v1820
      %v1822 = vrot.slane %v1806, 4
      %v1824 = vtanh.pop %v1822
      %v1825 = vrot.slane %v1806, 6
      %v1827 = vxor.u32 %v1825, 2147483648
      %v1828 = vmul.f32 %v1827, 1.442695
      %v1829 = vpow.pop %v1828
      %v1830 = vadd.f32 %v1829, 1.0
      %v1831 = vrcp.pop %v1830
      %v1832 = vmul.f32 1.0, %v1831
      %v1833 = vmul.f32 %v1821, %v1169
      %v1834 = vmul.f32 %v1812, %v1824
      %v1835 = vadd.f32 %v1833, %v1834
      %v1836 = vtanh.pop %v1835
      %v1837 = vmul.f32 %v1832, %v1836
      %s1838 = scalar_lea.vmem %s161, 104
      %v1839 = vld [vmem:[%s1838] sm:$0xff]
      %v1840 = vpack.c.bf16 %v1502, %v1502
      %v1841 = vld [vmem:[%s509] sm:$0xff]
      %v1842 = vld [vmem:[%s509 + $0x8] sm:$0xff]
      %v1843 = vld [vmem:[%s509 + $0x10] sm:$0xff]
      %v1844 = vld [vmem:[%s509 + $0x18] sm:$0xff]
      %v1845 = vld [vmem:[%s509 + $0x20] sm:$0xff]
      %v1846 = vld [vmem:[%s509 + $0x28] sm:$0xff]
      %v1847 = vld [vmem:[%s509 + $0x30] sm:$0xff]
      %v1848 = vld [vmem:[%s509 + $0x38] sm:$0xff]
      %v1849 = vld [vmem:[%s509 + $0x40] sm:$0xff]
      %v1850 = vld [vmem:[%s509 + $0x48] sm:$0xff]
      %v1851 = vld [vmem:[%s509 + $0x50] sm:$0xff]
      %v1852 = vld [vmem:[%s509 + $0x58] sm:$0xff]
      %v1853 = vld [vmem:[%s509 + $0x60] sm:$0xff]
      %v1854 = vld [vmem:[%s509 + $0x68] sm:$0xff]
      %v1855 = vld [vmem:[%s509 + $0x70] sm:$0xff]
      %v1856 = vld [vmem:[%s509 + $0x78] sm:$0xff]
      %v1857 = vld [vmem:[%s509 + $0x80] sm:$0xff]
      %v1858 = vld [vmem:[%s509 + $0x88] sm:$0xff]
      %v1859 = vld [vmem:[%s509 + $0x90] sm:$0xff]
      %v1860 = vld [vmem:[%s509 + $0x98] sm:$0xff]
      %v1861 = vld [vmem:[%s509 + $0xa0] sm:$0xff]
      %v1862 = vld [vmem:[%s509 + $0xa8] sm:$0xff]
      %v1863 = vld [vmem:[%s509 + $0xb0] sm:$0xff]
      %v1864 = vld [vmem:[%s509 + $0xb8] sm:$0xff]
      %v1865 = vld [vmem:[%s509 + $0xc0] sm:$0xff]
      %v1866 = vld [vmem:[%s509 + $0xc8] sm:$0xff]
      %v1867 = vld [vmem:[%s509 + $0xd0] sm:$0xff]
      %v1868 = vld [vmem:[%s509 + $0xd8] sm:$0xff]
      %v1869 = vld [vmem:[%s509 + $0xe0] sm:$0xff]
      %v1870 = vld [vmem:[%s509 + $0xe8] sm:$0xff]
      %v1871 = vld [vmem:[%s509 + $0xf0] sm:$0xff]
      %v1872 = vld [vmem:[%s509 + $0xf8] sm:$0xff]
      %v1905 = vunpack.c.l.b16 %v1841
      %v1906 = vunpack.c.h.b16 %v1841
      %v1907 = vunpack.c.l.b16 %v1842
      %v1908 = vunpack.c.h.b16 %v1842
      %v1909 = vunpack.c.l.b16 %v1843
      %v1910 = vunpack.c.h.b16 %v1843
      %v1911 = vunpack.c.l.b16 %v1844
      %v1912 = vunpack.c.h.b16 %v1844
      %v1913 = vunpack.c.l.b16 %v1845
      %v1914 = vunpack.c.h.b16 %v1845
      %v1915 = vunpack.c.l.b16 %v1846
      %v1916 = vunpack.c.h.b16 %v1846
      %v1917 = vunpack.c.l.b16 %v1847
      %v1918 = vunpack.c.h.b16 %v1847
      %v1919 = vunpack.c.l.b16 %v1848
      %v1920 = vunpack.c.h.b16 %v1848
      %v1921 = vunpack.c.l.b16 %v1849
      %v1922 = vunpack.c.h.b16 %v1849
      %v1923 = vunpack.c.l.b16 %v1850
      %v1924 = vunpack.c.h.b16 %v1850
      %v1925 = vunpack.c.l.b16 %v1851
      %v1926 = vunpack.c.h.b16 %v1851
      %v1927 = vunpack.c.l.b16 %v1852
      %v1928 = vunpack.c.h.b16 %v1852
      %v1929 = vunpack.c.l.b16 %v1853
      %v1930 = vunpack.c.h.b16 %v1853
      %v1931 = vunpack.c.l.b16 %v1854
      %v1932 = vunpack.c.h.b16 %v1854
      %v1933 = vunpack.c.l.b16 %v1855
      %v1934 = vunpack.c.h.b16 %v1855
      %v1935 = vunpack.c.l.b16 %v1856
      %v1936 = vunpack.c.h.b16 %v1856
      %v1937 = vunpack.c.l.b16 %v1857
      %v1938 = vunpack.c.h.b16 %v1857
      %v1939 = vunpack.c.l.b16 %v1858
      %v1940 = vunpack.c.h.b16 %v1858
      %v1941 = vunpack.c.l.b16 %v1859
      %v1942 = vunpack.c.h.b16 %v1859
      %v1943 = vunpack.c.l.b16 %v1860
      %v1944 = vunpack.c.h.b16 %v1860
      %v1945 = vunpack.c.l.b16 %v1861
      %v1946 = vunpack.c.h.b16 %v1861
      %v1947 = vunpack.c.l.b16 %v1862
      %v1948 = vunpack.c.h.b16 %v1862
      %v1949 = vunpack.c.l.b16 %v1863
      %v1950 = vunpack.c.h.b16 %v1863
      %v1951 = vunpack.c.l.b16 %v1864
      %v1952 = vunpack.c.h.b16 %v1864
      %v1953 = vunpack.c.l.b16 %v1865
      %v1954 = vunpack.c.h.b16 %v1865
      %v1955 = vunpack.c.l.b16 %v1866
      %v1956 = vunpack.c.h.b16 %v1866
      %v1957 = vunpack.c.l.b16 %v1867
      %v1958 = vunpack.c.h.b16 %v1867
      %v1959 = vunpack.c.l.b16 %v1868
      %v1960 = vunpack.c.h.b16 %v1868
      %v1961 = vunpack.c.l.b16 %v1869
      %v1962 = vunpack.c.h.b16 %v1869
      %v1963 = vunpack.c.l.b16 %v1870
      %v1964 = vunpack.c.h.b16 %v1870
      %v1965 = vunpack.c.l.b16 %v1871
      %v1966 = vunpack.c.h.b16 %v1871
      %v1967 = vunpack.c.l.b16 %v1872
      %v1968 = vunpack.c.h.b16 %v1872
      %v1969 = vpack.c.b16 %v1909, %v1905
      %v1970 = vpack.c.b16 %v1910, %v1906
      %v1971 = vpack.c.b16 %v1911, %v1907
      %v1972 = vpack.c.b16 %v1912, %v1908
      %v1973 = vpack.c.b16 %v1917, %v1913
      %v1974 = vpack.c.b16 %v1918, %v1914
      %v1975 = vpack.c.b16 %v1919, %v1915
      %v1976 = vpack.c.b16 %v1920, %v1916
      %v1977 = vpack.c.b16 %v1925, %v1921
      %v1978 = vpack.c.b16 %v1926, %v1922
      %v1979 = vpack.c.b16 %v1927, %v1923
      %v1980 = vpack.c.b16 %v1928, %v1924
      %v1981 = vpack.c.b16 %v1933, %v1929
      %v1982 = vpack.c.b16 %v1934, %v1930
      %v1983 = vpack.c.b16 %v1935, %v1931
      %v1984 = vpack.c.b16 %v1936, %v1932
      %v1985 = vpack.c.b16 %v1941, %v1937
      %v1986 = vpack.c.b16 %v1942, %v1938
      %v1987 = vpack.c.b16 %v1943, %v1939
      %v1988 = vpack.c.b16 %v1944, %v1940
      %v1989 = vpack.c.b16 %v1949, %v1945
      %v1990 = vpack.c.b16 %v1950, %v1946
      %v1991 = vpack.c.b16 %v1951, %v1947
      %v1992 = vpack.c.b16 %v1952, %v1948
      %v1993 = vpack.c.b16 %v1957, %v1953
      %v1994 = vpack.c.b16 %v1958, %v1954
      %v1995 = vpack.c.b16 %v1959, %v1955
      %v1996 = vpack.c.b16 %v1960, %v1956
      %v1997 = vpack.c.b16 %v1965, %v1961
      %v1998 = vpack.c.b16 %v1966, %v1962
      %v1999 = vpack.c.b16 %v1967, %v1963
      %v2000 = vpack.c.b16 %v1968, %v1964
      %2033 = vmatprep.subr.bf16.mxu0 %v1970
      %2034 = vmatpush1.bf16.msra.mxu0 %v1969
      %2035 = vmatprep.subr.bf16.mxu0 %v1974
      %2036 = vmatpush1.bf16.msra.mxu0 %v1973
      %2037 = vmatprep.subr.bf16.mxu0 %v1978
      %2038 = vmatpush1.bf16.msra.mxu0 %v1977
      %2039 = vmatprep.subr.bf16.mxu0 %v1982
      %2040 = vmatpush1.bf16.msra.mxu0 %v1981
      %2041 = vmatprep.subr.bf16.mxu0 %v1986
      %2042 = vmatpush1.bf16.msra.mxu0 %v1985
      %2043 = vmatprep.subr.bf16.mxu0 %v1990
      %2044 = vmatpush1.bf16.msra.mxu0 %v1989
      %2045 = vmatprep.subr.bf16.mxu0 %v1994
      %2046 = vmatpush1.bf16.msra.mxu0 %v1993
      %2047 = vmatprep.subr.bf16.mxu0 %v1998
      %2048 = vmatpush1.bf16.msra.mxu0 %v1997
      %2049 = vmatprep.subr.bf16.mxu0 0
      %2050 = vmatpush1.bf16.msra.mxu0 0
      %2051 = vmatprep.subr.bf16.mxu0 0
      %2052 = vmatpush1.bf16.msra.mxu0 0
      %2053 = vmatprep.subr.bf16.mxu0 0
      %2054 = vmatpush1.bf16.msra.mxu0 0
      %2055 = vmatprep.subr.bf16.mxu0 0
      %2056 = vmatpush1.bf16.msra.mxu0 0
      %2057 = vmatprep.subr.bf16.mxu0 0
      %2058 = vmatpush1.bf16.msra.mxu0 0
      %2059 = vmatprep.subr.bf16.mxu0 0
      %2060 = vmatpush1.bf16.msra.mxu0 0
      %2061 = vmatprep.subr.bf16.mxu0 0
      %2062 = vmatpush1.bf16.msra.mxu0 0
      %2063 = vmatprep.subr.bf16.mxu0 0
      %2064 = vmatpush1.bf16.msra.mxu0 0
      %2065 = vmatprep.mubr.bf16.mxu0 0
      %2066 = vmatmul.mubr.bf16.gmra.mrb[0].mxu0 %v1840
      %v2067 = vpop.f32.mrb[0].mxu0
      %v2068 = vadd.f32 0.0, %v2067
      %v2069 = vpop.f32.mrb[0].mxu0
      %v2070 = vadd.f32 0.0, %v2069
      %v2071 = vpop.f32.mrb[0].mxu0
      %v2072 = vpop.f32.mrb[0].mxu0
      %2073 = vdwg.mxu0
      %2074 = vmatprep.subr.bf16.mxu0 %v1972
      %2075 = vmatpush1.bf16.msra.mxu0 %v1971
      %2076 = vmatprep.subr.bf16.mxu0 %v1976
      %2077 = vmatpush1.bf16.msra.mxu0 %v1975
      %2078 = vmatprep.subr.bf16.mxu0 %v1980
      %2079 = vmatpush1.bf16.msra.mxu0 %v1979
      %2080 = vmatprep.subr.bf16.mxu0 %v1984
      %2081 = vmatpush1.bf16.msra.mxu0 %v1983
      %2082 = vmatprep.subr.bf16.mxu0 %v1988
      %2083 = vmatpush1.bf16.msra.mxu0 %v1987
      %2084 = vmatprep.subr.bf16.mxu0 %v1992
      %2085 = vmatpush1.bf16.msra.mxu0 %v1991
      %2086 = vmatprep.subr.bf16.mxu0 %v1996
      %2087 = vmatpush1.bf16.msra.mxu0 %v1995
      %2088 = vmatprep.subr.bf16.mxu0 %v2000
      %2089 = vmatpush1.bf16.msra.mxu0 %v1999
      %2090 = vmatprep.subr.bf16.mxu0 0
      %2091 = vmatpush1.bf16.msra.mxu0 0
      %2092 = vmatprep.subr.bf16.mxu0 0
      %2093 = vmatpush1.bf16.msra.mxu0 0
      %2094 = vmatprep.subr.bf16.mxu0 0
      %2095 = vmatpush1.bf16.msra.mxu0 0
      %2096 = vmatprep.subr.bf16.mxu0 0
      %2097 = vmatpush1.bf16.msra.mxu0 0
      %2098 = vmatprep.subr.bf16.mxu0 0
      %2099 = vmatpush1.bf16.msra.mxu0 0
      %2100 = vmatprep.subr.bf16.mxu0 0
      %2101 = vmatpush1.bf16.msra.mxu0 0
      %2102 = vmatprep.subr.bf16.mxu0 0
      %2103 = vmatpush1.bf16.msra.mxu0 0
      %2104 = vmatprep.subr.bf16.mxu0 0
      %2105 = vmatpush1.bf16.msra.mxu0 0
      %2106 = vmatprep.mubr.bf16.mxu0 0
      %2107 = vmatmul.mubr.bf16.gmra.mrb[0].mxu0 %v1840
      %v2108 = vpop.f32.mrb[0].mxu0
      %v2109 = vadd.f32 0.0, %v2108
      %v2110 = vpop.f32.mrb[0].mxu0
      %v2111 = vadd.f32 0.0, %v2110
      %v2112 = vpop.f32.mrb[0].mxu0
      %v2113 = vpop.f32.mrb[0].mxu0
      %2114 = vdwg.mxu0
      %v2119 = vcombine.low %v2068, %v2070
      %v2120 = vcombine.low %v2109, %v2111
      %v2122 = vunpack.c.l.s4 1983009808
      %v2123 = vunpack.c.0.s8 %v2122
      %v2124 = vlaneseq
      %v2125 = vshrl.u32 %v2124, 7
      %v2126 = vsub.s32 %v2123, %v2125
      %v2127 = vrot.slane %v2119, %v2126
      %v2129 = vunpack.c.l.s4 1983009808
      %v2130 = vunpack.c.0.s8 %v2129
      %v2131 = vlaneseq
      %v2132 = vshrl.u32 %v2131, 7
      %v2133 = vsub.s32 %v2130, %v2132
      %v2134 = vrot.slane %v2120, %v2133
      %v2135 = vcombine.low %v2127, %v2134
      %v2137 = vadd.f32 %v1839, %v2135
      %v2138 = vxor.u32 %v2137, 2147483648
      %v2139 = vmul.f32 %v2138, 1.442695
      %v2140 = vpow.pop %v2139
      %v2141 = vadd.f32 %v2140, 1.0
      %v2142 = vrcp.pop %v2141
      %v2143 = vmul.f32 1.0, %v2142
      %v2145 = vrot.slane %v2137, 2
      %v2147 = vxor.u32 %v2145, 2147483648
      %v2148 = vmul.f32 %v2147, 1.442695
      %v2149 = vpow.pop %v2148
      %v2150 = vadd.f32 %v2149, 1.0
      %v2151 = vrcp.pop %v2150
      %v2152 = vmul.f32 1.0, %v2151
      %v2153 = vrot.slane %v2137, 4
      %v2155 = vtanh.pop %v2153
      %v2156 = vrot.slane %v2137, 6
      %v2158 = vxor.u32 %v2156, 2147483648
      %v2159 = vmul.f32 %v2158, 1.442695
      %v2160 = vpow.pop %v2159
      %v2161 = vadd.f32 %v2160, 1.0
      %v2162 = vrcp.pop %v2161
      %v2163 = vmul.f32 1.0, %v2162
      %v2164 = vmul.f32 %v2152, %v1500
      %v2165 = vmul.f32 %v2143, %v2155
      %v2166 = vadd.f32 %v2164, %v2165
      %v2167 = vtanh.pop %v2166
      %v2168 = vmul.f32 %v2163, %v2167
      %s2169 = scalar_lea.vmem %s175, 4
      %2170 = vst [vmem:[%s2169] sm:$0x3] %v1837
      %s2171 = scalar_lea.vmem %s175, 20
      %2172 = vst [vmem:[%s2171] sm:$0x3] %v2168
      %s2173 = scalar_lea.vmem %s161, 24
      %v2174 = vld [vmem:[%s2173] sm:$0xff]
      %v2175 = vpack.c.bf16 %v1837, %v1837
      %v2176 = vld [vmem:[%s168] sm:$0xff]
      %v2177 = vld [vmem:[%s168 + $0x8] sm:$0xff]
      %v2178 = vld [vmem:[%s168 + $0x10] sm:$0xff]
      %v2179 = vld [vmem:[%s168 + $0x18] sm:$0xff]
      %v2180 = vld [vmem:[%s168 + $0x20] sm:$0xff]
      %v2181 = vld [vmem:[%s168 + $0x28] sm:$0xff]
      %v2182 = vld [vmem:[%s168 + $0x30] sm:$0xff]
      %v2183 = vld [vmem:[%s168 + $0x38] sm:$0xff]
      %v2184 = vld [vmem:[%s168 + $0x40] sm:$0xff]
      %v2185 = vld [vmem:[%s168 + $0x48] sm:$0xff]
      %v2186 = vld [vmem:[%s168 + $0x50] sm:$0xff]
      %v2187 = vld [vmem:[%s168 + $0x58] sm:$0xff]
      %v2188 = vld [vmem:[%s168 + $0x60] sm:$0xff]
      %v2189 = vld [vmem:[%s168 + $0x68] sm:$0xff]
      %v2190 = vld [vmem:[%s168 + $0x70] sm:$0xff]
      %v2191 = vld [vmem:[%s168 + $0x78] sm:$0xff]
      %v2192 = vld [vmem:[%s168 + $0x80] sm:$0xff]
      %v2193 = vld [vmem:[%s168 + $0x88] sm:$0xff]
      %v2194 = vld [vmem:[%s168 + $0x90] sm:$0xff]
      %v2195 = vld [vmem:[%s168 + $0x98] sm:$0xff]
      %v2196 = vld [vmem:[%s168 + $0xa0] sm:$0xff]
      %v2197 = vld [vmem:[%s168 + $0xa8] sm:$0xff]
      %v2198 = vld [vmem:[%s168 + $0xb0] sm:$0xff]
      %v2199 = vld [vmem:[%s168 + $0xb8] sm:$0xff]
      %v2200 = vld [vmem:[%s168 + $0xc0] sm:$0xff]
      %v2201 = vld [vmem:[%s168 + $0xc8] sm:$0xff]
      %v2202 = vld [vmem:[%s168 + $0xd0] sm:$0xff]
      %v2203 = vld [vmem:[%s168 + $0xd8] sm:$0xff]
      %v2204 = vld [vmem:[%s168 + $0xe0] sm:$0xff]
      %v2205 = vld [vmem:[%s168 + $0xe8] sm:$0xff]
      %v2206 = vld [vmem:[%s168 + $0xf0] sm:$0xff]
      %v2207 = vld [vmem:[%s168 + $0xf8] sm:$0xff]
      %v2240 = vunpack.c.l.b16 %v2176
      %v2241 = vunpack.c.h.b16 %v2176
      %v2242 = vunpack.c.l.b16 %v2177
      %v2243 = vunpack.c.h.b16 %v2177
      %v2244 = vunpack.c.l.b16 %v2178
      %v2245 = vunpack.c.h.b16 %v2178
      %v2246 = vunpack.c.l.b16 %v2179
      %v2247 = vunpack.c.h.b16 %v2179
      %v2248 = vunpack.c.l.b16 %v2180
      %v2249 = vunpack.c.h.b16 %v2180
      %v2250 = vunpack.c.l.b16 %v2181
      %v2251 = vunpack.c.h.b16 %v2181
      %v2252 = vunpack.c.l.b16 %v2182
      %v2253 = vunpack.c.h.b16 %v2182
      %v2254 = vunpack.c.l.b16 %v2183
      %v2255 = vunpack.c.h.b16 %v2183
      %v2256 = vunpack.c.l.b16 %v2184
      %v2257 = vunpack.c.h.b16 %v2184
      %v2258 = vunpack.c.l.b16 %v2185
      %v2259 = vunpack.c.h.b16 %v2185
      %v2260 = vunpack.c.l.b16 %v2186
      %v2261 = vunpack.c.h.b16 %v2186
      %v2262 = vunpack.c.l.b16 %v2187
      %v2263 = vunpack.c.h.b16 %v2187
      %v2264 = vunpack.c.l.b16 %v2188
      %v2265 = vunpack.c.h.b16 %v2188
      %v2266 = vunpack.c.l.b16 %v2189
      %v2267 = vunpack.c.h.b16 %v2189
      %v2268 = vunpack.c.l.b16 %v2190
      %v2269 = vunpack.c.h.b16 %v2190
      %v2270 = vunpack.c.l.b16 %v2191
      %v2271 = vunpack.c.h.b16 %v2191
      %v2272 = vunpack.c.l.b16 %v2192
      %v2273 = vunpack.c.h.b16 %v2192
      %v2274 = vunpack.c.l.b16 %v2193
      %v2275 = vunpack.c.h.b16 %v2193
      %v2276 = vunpack.c.l.b16 %v2194
      %v2277 = vunpack.c.h.b16 %v2194
      %v2278 = vunpack.c.l.b16 %v2195
      %v2279 = vunpack.c.h.b16 %v2195
      %v2280 = vunpack.c.l.b16 %v2196
      %v2281 = vunpack.c.h.b16 %v2196
      %v2282 = vunpack.c.l.b16 %v2197
      %v2283 = vunpack.c.h.b16 %v2197
      %v2284 = vunpack.c.l.b16 %v2198
      %v2285 = vunpack.c.h.b16 %v2198
      %v2286 = vunpack.c.l.b16 %v2199
      %v2287 = vunpack.c.h.b16 %v2199
      %v2288 = vunpack.c.l.b16 %v2200
      %v2289 = vunpack.c.h.b16 %v2200
      %v2290 = vunpack.c.l.b16 %v2201
      %v2291 = vunpack.c.h.b16 %v2201
      %v2292 = vunpack.c.l.b16 %v2202
      %v2293 = vunpack.c.h.b16 %v2202
      %v2294 = vunpack.c.l.b16 %v2203
      %v2295 = vunpack.c.h.b16 %v2203
      %v2296 = vunpack.c.l.b16 %v2204
      %v2297 = vunpack.c.h.b16 %v2204
      %v2298 = vunpack.c.l.b16 %v2205
      %v2299 = vunpack.c.h.b16 %v2205
      %v2300 = vunpack.c.l.b16 %v2206
      %v2301 = vunpack.c.h.b16 %v2206
      %v2302 = vunpack.c.l.b16 %v2207
      %v2303 = vunpack.c.h.b16 %v2207
      %v2304 = vpack.c.b16 %v2244, %v2240
      %v2305 = vpack.c.b16 %v2245, %v2241
      %v2306 = vpack.c.b16 %v2246, %v2242
      %v2307 = vpack.c.b16 %v2247, %v2243
      %v2308 = vpack.c.b16 %v2252, %v2248
      %v2309 = vpack.c.b16 %v2253, %v2249
      %v2310 = vpack.c.b16 %v2254, %v2250
      %v2311 = vpack.c.b16 %v2255, %v2251
      %v2312 = vpack.c.b16 %v2260, %v2256
      %v2313 = vpack.c.b16 %v2261, %v2257
      %v2314 = vpack.c.b16 %v2262, %v2258
      %v2315 = vpack.c.b16 %v2263, %v2259
      %v2316 = vpack.c.b16 %v2268, %v2264
      %v2317 = vpack.c.b16 %v2269, %v2265
      %v2318 = vpack.c.b16 %v2270, %v2266
      %v2319 = vpack.c.b16 %v2271, %v2267
      %v2320 = vpack.c.b16 %v2276, %v2272
      %v2321 = vpack.c.b16 %v2277, %v2273
      %v2322 = vpack.c.b16 %v2278, %v2274
      %v2323 = vpack.c.b16 %v2279, %v2275
      %v2324 = vpack.c.b16 %v2284, %v2280
      %v2325 = vpack.c.b16 %v2285, %v2281
      %v2326 = vpack.c.b16 %v2286, %v2282
      %v2327 = vpack.c.b16 %v2287, %v2283
      %v2328 = vpack.c.b16 %v2292, %v2288
      %v2329 = vpack.c.b16 %v2293, %v2289
      %v2330 = vpack.c.b16 %v2294, %v2290
      %v2331 = vpack.c.b16 %v2295, %v2291
      %v2332 = vpack.c.b16 %v2300, %v2296
      %v2333 = vpack.c.b16 %v2301, %v2297
      %v2334 = vpack.c.b16 %v2302, %v2298
      %v2335 = vpack.c.b16 %v2303, %v2299
      %2368 = vmatprep.subr.bf16.mxu0 %v2305
      %2369 = vmatpush1.bf16.msra.mxu0 %v2304
      %2370 = vmatprep.subr.bf16.mxu0 %v2309
      %2371 = vmatpush1.bf16.msra.mxu0 %v2308
      %2372 = vmatprep.subr.bf16.mxu0 %v2313
      %2373 = vmatpush1.bf16.msra.mxu0 %v2312
      %2374 = vmatprep.subr.bf16.mxu0 %v2317
      %2375 = vmatpush1.bf16.msra.mxu0 %v2316
      %2376 = vmatprep.subr.bf16.mxu0 %v2321
      %2377 = vmatpush1.bf16.msra.mxu0 %v2320
      %2378 = vmatprep.subr.bf16.mxu0 %v2325
      %2379 = vmatpush1.bf16.msra.mxu0 %v2324
      %2380 = vmatprep.subr.bf16.mxu0 %v2329
      %2381 = vmatpush1.bf16.msra.mxu0 %v2328
      %2382 = vmatprep.subr.bf16.mxu0 %v2333
      %2383 = vmatpush1.bf16.msra.mxu0 %v2332
      %2384 = vmatprep.subr.bf16.mxu0 0
      %2385 = vmatpush1.bf16.msra.mxu0 0
      %2386 = vmatprep.subr.bf16.mxu0 0
      %2387 = vmatpush1.bf16.msra.mxu0 0
      %2388 = vmatprep.subr.bf16.mxu0 0
      %2389 = vmatpush1.bf16.msra.mxu0 0
      %2390 = vmatprep.subr.bf16.mxu0 0
      %2391 = vmatpush1.bf16.msra.mxu0 0
      %2392 = vmatprep.subr.bf16.mxu0 0
      %2393 = vmatpush1.bf16.msra.mxu0 0
      %2394 = vmatprep.subr.bf16.mxu0 0
      %2395 = vmatpush1.bf16.msra.mxu0 0
      %2396 = vmatprep.subr.bf16.mxu0 0
      %2397 = vmatpush1.bf16.msra.mxu0 0
      %2398 = vmatprep.subr.bf16.mxu0 0
      %2399 = vmatpush1.bf16.msra.mxu0 0
      %2400 = vmatprep.mubr.bf16.mxu0 0
      %2401 = vmatmul.mubr.bf16.gmra.mrb[0].mxu0 %v2175
      %v2402 = vpop.f32.mrb[0].mxu0
      %v2403 = vadd.f32 0.0, %v2402
      %v2404 = vpop.f32.mrb[0].mxu0
      %v2405 = vadd.f32 0.0, %v2404
      %v2406 = vpop.f32.mrb[0].mxu0
      %v2407 = vpop.f32.mrb[0].mxu0
      %2408 = vdwg.mxu0
      %2409 = vmatprep.subr.bf16.mxu0 %v2307
      %2410 = vmatpush1.bf16.msra.mxu0 %v2306
      %2411 = vmatprep.subr.bf16.mxu0 %v2311
      %2412 = vmatpush1.bf16.msra.mxu0 %v2310
      %2413 = vmatprep.subr.bf16.mxu0 %v2315
      %2414 = vmatpush1.bf16.msra.mxu0 %v2314
      %2415 = vmatprep.subr.bf16.mxu0 %v2319
      %2416 = vmatpush1.bf16.msra.mxu0 %v2318
      %2417 = vmatprep.subr.bf16.mxu0 %v2323
      %2418 = vmatpush1.bf16.msra.mxu0 %v2322
      %2419 = vmatprep.subr.bf16.mxu0 %v2327
      %2420 = vmatpush1.bf16.msra.mxu0 %v2326
      %2421 = vmatprep.subr.bf16.mxu0 %v2331
      %2422 = vmatpush1.bf16.msra.mxu0 %v2330
      %2423 = vmatprep.subr.bf16.mxu0 %v2335
      %2424 = vmatpush1.bf16.msra.mxu0 %v2334
      %2425 = vmatprep.subr.bf16.mxu0 0
      %2426 = vmatpush1.bf16.msra.mxu0 0
      %2427 = vmatprep.subr.bf16.mxu0 0
      %2428 = vmatpush1.bf16.msra.mxu0 0
      %2429 = vmatprep.subr.bf16.mxu0 0
      %2430 = vmatpush1.bf16.msra.mxu0 0
      %2431 = vmatprep.subr.bf16.mxu0 0
      %2432 = vmatpush1.bf16.msra.mxu0 0
      %2433 = vmatprep.subr.bf16.mxu0 0
      %2434 = vmatpush1.bf16.msra.mxu0 0
      %2435 = vmatprep.subr.bf16.mxu0 0
      %2436 = vmatpush1.bf16.msra.mxu0 0
      %2437 = vmatprep.subr.bf16.mxu0 0
      %2438 = vmatpush1.bf16.msra.mxu0 0
      %2439 = vmatprep.subr.bf16.mxu0 0
      %2440 = vmatpush1.bf16.msra.mxu0 0
      %2441 = vmatprep.mubr.bf16.mxu0 0
      %2442 = vmatmul.mubr.bf16.gmra.mrb[0].mxu0 %v2175
      %v2443 = vpop.f32.mrb[0].mxu0
      %v2444 = vadd.f32 0.0, %v2443
      %v2445 = vpop.f32.mrb[0].mxu0
      %v2446 = vadd.f32 0.0, %v2445
      %v2447 = vpop.f32.mrb[0].mxu0
      %v2448 = vpop.f32.mrb[0].mxu0
      %2449 = vdwg.mxu0
      %v2454 = vcombine.low %v2403, %v2405
      %v2455 = vcombine.low %v2444, %v2446
      %v2457 = vunpack.c.l.s4 1983009808
      %v2458 = vunpack.c.0.s8 %v2457
      %v2459 = vlaneseq
      %v2460 = vshrl.u32 %v2459, 7
      %v2461 = vsub.s32 %v2458, %v2460
      %v2462 = vrot.slane %v2454, %v2461
      %v2464 = vunpack.c.l.s4 1983009808
      %v2465 = vunpack.c.0.s8 %v2464
      %v2466 = vlaneseq
      %v2467 = vshrl.u32 %v2466, 7
      %v2468 = vsub.s32 %v2465, %v2467
      %v2469 = vrot.slane %v2455, %v2468
      %v2470 = vcombine.low %v2462, %v2469
      %v2472 = vadd.f32 %v2174, %v2470
      %v2473 = vxor.u32 %v2472, 2147483648
      %v2474 = vmul.f32 %v2473, 1.442695
      %v2475 = vpow.pop %v2474
      %v2476 = vadd.f32 %v2475, 1.0
      %v2477 = vrcp.pop %v2476
      %v2478 = vmul.f32 1.0, %v2477
      %v2480 = vrot.slane %v2472, 2
      %v2482 = vxor.u32 %v2480, 2147483648
      %v2483 = vmul.f32 %v2482, 1.442695
      %v2484 = vpow.pop %v2483
      %v2485 = vadd.f32 %v2484, 1.0
      %v2486 = vrcp.pop %v2485
      %v2487 = vmul.f32 1.0, %v2486
      %v2488 = vrot.slane %v2472, 4
      %v2490 = vtanh.pop %v2488
      %v2491 = vrot.slane %v2472, 6
      %v2493 = vxor.u32 %v2491, 2147483648
      %v2494 = vmul.f32 %v2493, 1.442695
      %v2495 = vpow.pop %v2494
      %v2496 = vadd.f32 %v2495, 1.0
      %v2497 = vrcp.pop %v2496
      %v2498 = vmul.f32 1.0, %v2497
      %v2499 = vmul.f32 %v2487, %v1835
      %v2500 = vmul.f32 %v2478, %v2490
      %v2501 = vadd.f32 %v2499, %v2500
      %v2502 = vtanh.pop %v2501
      %v2503 = vmul.f32 %v2498, %v2502
      %s2504 = scalar_lea.vmem %s161, 96
      %v2505 = vld [vmem:[%s2504] sm:$0xff]
      %v2506 = vpack.c.bf16 %v2168, %v2168
      %v2507 = vld [vmem:[%s509] sm:$0xff]
      %v2508 = vld [vmem:[%s509 + $0x8] sm:$0xff]
      %v2509 = vld [vmem:[%s509 + $0x10] sm:$0xff]
      %v2510 = vld [vmem:[%s509 + $0x18] sm:$0xff]
      %v2511 = vld [vmem:[%s509 + $0x20] sm:$0xff]
      %v2512 = vld [vmem:[%s509 + $0x28] sm:$0xff]
      %v2513 = vld [vmem:[%s509 + $0x30] sm:$0xff]
      %v2514 = vld [vmem:[%s509 + $0x38] sm:$0xff]
      %v2515 = vld [vmem:[%s509 + $0x40] sm:$0xff]
      %v2516 = vld [vmem:[%s509 + $0x48] sm:$0xff]
      %v2517 = vld [vmem:[%s509 + $0x50] sm:$0xff]
      %v2518 = vld [vmem:[%s509 + $0x58] sm:$0xff]
      %v2519 = vld [vmem:[%s509 + $0x60] sm:$0xff]
      %v2520 = vld [vmem:[%s509 + $0x68] sm:$0xff]
      %v2521 = vld [vmem:[%s509 + $0x70] sm:$0xff]
      %v2522 = vld [vmem:[%s509 + $0x78] sm:$0xff]
      %v2523 = vld [vmem:[%s509 + $0x80] sm:$0xff]
      %v2524 = vld [vmem:[%s509 + $0x88] sm:$0xff]
      %v2525 = vld [vmem:[%s509 + $0x90] sm:$0xff]
      %v2526 = vld [vmem:[%s509 + $0x98] sm:$0xff]
      %v2527 = vld [vmem:[%s509 + $0xa0] sm:$0xff]
      %v2528 = vld [vmem:[%s509 + $0xa8] sm:$0xff]
      %v2529 = vld [vmem:[%s509 + $0xb0] sm:$0xff]
      %v2530 = vld [vmem:[%s509 + $0xb8] sm:$0xff]
      %v2531 = vld [vmem:[%s509 + $0xc0] sm:$0xff]
      %v2532 = vld [vmem:[%s509 + $0xc8] sm:$0xff]
      %v2533 = vld [vmem:[%s509 + $0xd0] sm:$0xff]
      %v2534 = vld [vmem:[%s509 + $0xd8] sm:$0xff]
      %v2535 = vld [vmem:[%s509 + $0xe0] sm:$0xff]
      %v2536 = vld [vmem:[%s509 + $0xe8] sm:$0xff]
      %v2537 = vld [vmem:[%s509 + $0xf0] sm:$0xff]
      %v2538 = vld [vmem:[%s509 + $0xf8] sm:$0xff]
      %v2571 = vunpack.c.l.b16 %v2507
      %v2572 = vunpack.c.h.b16 %v2507
      %v2573 = vunpack.c.l.b16 %v2508
      %v2574 = vunpack.c.h.b16 %v2508
      %v2575 = vunpack.c.l.b16 %v2509
      %v2576 = vunpack.c.h.b16 %v2509
      %v2577 = vunpack.c.l.b16 %v2510
      %v2578 = vunpack.c.h.b16 %v2510
      %v2579 = vunpack.c.l.b16 %v2511
      %v2580 = vunpack.c.h.b16 %v2511
      %v2581 = vunpack.c.l.b16 %v2512
      %v2582 = vunpack.c.h.b16 %v2512
      %v2583 = vunpack.c.l.b16 %v2513
      %v2584 = vunpack.c.h.b16 %v2513
      %v2585 = vunpack.c.l.b16 %v2514
      %v2586 = vunpack.c.h.b16 %v2514
      %v2587 = vunpack.c.l.b16 %v2515
      %v2588 = vunpack.c.h.b16 %v2515
      %v2589 = vunpack.c.l.b16 %v2516
      %v2590 = vunpack.c.h.b16 %v2516
      %v2591 = vunpack.c.l.b16 %v2517
      %v2592 = vunpack.c.h.b16 %v2517
      %v2593 = vunpack.c.l.b16 %v2518
      %v2594 = vunpack.c.h.b16 %v2518
      %v2595 = vunpack.c.l.b16 %v2519
      %v2596 = vunpack.c.h.b16 %v2519
      %v2597 = vunpack.c.l.b16 %v2520
      %v2598 = vunpack.c.h.b16 %v2520
      %v2599 = vunpack.c.l.b16 %v2521
      %v2600 = vunpack.c.h.b16 %v2521
      %v2601 = vunpack.c.l.b16 %v2522
      %v2602 = vunpack.c.h.b16 %v2522
      %v2603 = vunpack.c.l.b16 %v2523
      %v2604 = vunpack.c.h.b16 %v2523
      %v2605 = vunpack.c.l.b16 %v2524
      %v2606 = vunpack.c.h.b16 %v2524
      %v2607 = vunpack.c.l.b16 %v2525
      %v2608 = vunpack.c.h.b16 %v2525
      %v2609 = vunpack.c.l.b16 %v2526
      %v2610 = vunpack.c.h.b16 %v2526
      %v2611 = vunpack.c.l.b16 %v2527
      %v2612 = vunpack.c.h.b16 %v2527
      %v2613 = vunpack.c.l.b16 %v2528
      %v2614 = vunpack.c.h.b16 %v2528
      %v2615 = vunpack.c.l.b16 %v2529
      %v2616 = vunpack.c.h.b16 %v2529
      %v2617 = vunpack.c.l.b16 %v2530
      %v2618 = vunpack.c.h.b16 %v2530
      %v2619 = vunpack.c.l.b16 %v2531
      %v2620 = vunpack.c.h.b16 %v2531
      %v2621 = vunpack.c.l.b16 %v2532
      %v2622 = vunpack.c.h.b16 %v2532
      %v2623 = vunpack.c.l.b16 %v2533
      %v2624 = vunpack.c.h.b16 %v2533
      %v2625 = vunpack.c.l.b16 %v2534
      %v2626 = vunpack.c.h.b16 %v2534
      %v2627 = vunpack.c.l.b16 %v2535
      %v2628 = vunpack.c.h.b16 %v2535
      %v2629 = vunpack.c.l.b16 %v2536
      %v2630 = vunpack.c.h.b16 %v2536
      %v2631 = vunpack.c.l.b16 %v2537
      %v2632 = vunpack.c.h.b16 %v2537
      %v2633 = vunpack.c.l.b16 %v2538
      %v2634 = vunpack.c.h.b16 %v2538
      %v2635 = vpack.c.b16 %v2575, %v2571
      %v2636 = vpack.c.b16 %v2576, %v2572
      %v2637 = vpack.c.b16 %v2577, %v2573
      %v2638 = vpack.c.b16 %v2578, %v2574
      %v2639 = vpack.c.b16 %v2583, %v2579
      %v2640 = vpack.c.b16 %v2584, %v2580
      %v2641 = vpack.c.b16 %v2585, %v2581
      %v2642 = vpack.c.b16 %v2586, %v2582
      %v2643 = vpack.c.b16 %v2591, %v2587
      %v2644 = vpack.c.b16 %v2592, %v2588
      %v2645 = vpack.c.b16 %v2593, %v2589
      %v2646 = vpack.c.b16 %v2594, %v2590
      %v2647 = vpack.c.b16 %v2599, %v2595
      %v2648 = vpack.c.b16 %v2600, %v2596
      %v2649 = vpack.c.b16 %v2601, %v2597
      %v2650 = vpack.c.b16 %v2602, %v2598
      %v2651 = vpack.c.b16 %v2607, %v2603
      %v2652 = vpack.c.b16 %v2608, %v2604
      %v2653 = vpack.c.b16 %v2609, %v2605
      %v2654 = vpack.c.b16 %v2610, %v2606
      %v2655 = vpack.c.b16 %v2615, %v2611
      %v2656 = vpack.c.b16 %v2616, %v2612
      %v2657 = vpack.c.b16 %v2617, %v2613
      %v2658 = vpack.c.b16 %v2618, %v2614
      %v2659 = vpack.c.b16 %v2623, %v2619
      %v2660 = vpack.c.b16 %v2624, %v2620
      %v2661 = vpack.c.b16 %v2625, %v2621
      %v2662 = vpack.c.b16 %v2626, %v2622
      %v2663 = vpack.c.b16 %v2631, %v2627
      %v2664 = vpack.c.b16 %v2632, %v2628
      %v2665 = vpack.c.b16 %v2633, %v2629
      %v2666 = vpack.c.b16 %v2634, %v2630
      %2699 = vmatprep.subr.bf16.mxu0 %v2636
      %2700 = vmatpush1.bf16.msra.mxu0 %v2635
      %2701 = vmatprep.subr.bf16.mxu0 %v2640
      %2702 = vmatpush1.bf16.msra.mxu0 %v2639
      %2703 = vmatprep.subr.bf16.mxu0 %v2644
      %2704 = vmatpush1.bf16.msra.mxu0 %v2643
      %2705 = vmatprep.subr.bf16.mxu0 %v2648
      %2706 = vmatpush1.bf16.msra.mxu0 %v2647
      %2707 = vmatprep.subr.bf16.mxu0 %v2652
      %2708 = vmatpush1.bf16.msra.mxu0 %v2651
      %2709 = vmatprep.subr.bf16.mxu0 %v2656
      %2710 = vmatpush1.bf16.msra.mxu0 %v2655
      %2711 = vmatprep.subr.bf16.mxu0 %v2660
      %2712 = vmatpush1.bf16.msra.mxu0 %v2659
      %2713 = vmatprep.subr.bf16.mxu0 %v2664
      %2714 = vmatpush1.bf16.msra.mxu0 %v2663
      %2715 = vmatprep.subr.bf16.mxu0 0
      %2716 = vmatpush1.bf16.msra.mxu0 0
      %2717 = vmatprep.subr.bf16.mxu0 0
      %2718 = vmatpush1.bf16.msra.mxu0 0
      %2719 = vmatprep.subr.bf16.mxu0 0
      %2720 = vmatpush1.bf16.msra.mxu0 0
      %2721 = vmatprep.subr.bf16.mxu0 0
      %2722 = vmatpush1.bf16.msra.mxu0 0
      %2723 = vmatprep.subr.bf16.mxu0 0
      %2724 = vmatpush1.bf16.msra.mxu0 0
      %2725 = vmatprep.subr.bf16.mxu0 0
      %2726 = vmatpush1.bf16.msra.mxu0 0
      %2727 = vmatprep.subr.bf16.mxu0 0
      %2728 = vmatpush1.bf16.msra.mxu0 0
      %2729 = vmatprep.subr.bf16.mxu0 0
      %2730 = vmatpush1.bf16.msra.mxu0 0
      %2731 = vmatprep.mubr.bf16.mxu0 0
      %2732 = vmatmul.mubr.bf16.gmra.mrb[0].mxu0 %v2506
      %v2733 = vpop.f32.mrb[0].mxu0
      %v2734 = vadd.f32 0.0, %v2733
      %v2735 = vpop.f32.mrb[0].mxu0
      %v2736 = vadd.f32 0.0, %v2735
      %v2737 = vpop.f32.mrb[0].mxu0
      %v2738 = vpop.f32.mrb[0].mxu0
      %2739 = vdwg.mxu0
      %2740 = vmatprep.subr.bf16.mxu0 %v2638
      %2741 = vmatpush1.bf16.msra.mxu0 %v2637
      %2742 = vmatprep.subr.bf16.mxu0 %v2642
      %2743 = vmatpush1.bf16.msra.mxu0 %v2641
      %2744 = vmatprep.subr.bf16.mxu0 %v2646
      %2745 = vmatpush1.bf16.msra.mxu0 %v2645
      %2746 = vmatprep.subr.bf16.mxu0 %v2650
      %2747 = vmatpush1.bf16.msra.mxu0 %v2649
      %2748 = vmatprep.subr.bf16.mxu0 %v2654
      %2749 = vmatpush1.bf16.msra.mxu0 %v2653
      %2750 = vmatprep.subr.bf16.mxu0 %v2658
      %2751 = vmatpush1.bf16.msra.mxu0 %v2657
      %2752 = vmatprep.subr.bf16.mxu0 %v2662
      %2753 = vmatpush1.bf16.msra.mxu0 %v2661
      %2754 = vmatprep.subr.bf16.mxu0 %v2666
      %2755 = vmatpush1.bf16.msra.mxu0 %v2665
      %2756 = vmatprep.subr.bf16.mxu0 0
      %2757 = vmatpush1.bf16.msra.mxu0 0
      %2758 = vmatprep.subr.bf16.mxu0 0
      %2759 = vmatpush1.bf16.msra.mxu0 0
      %2760 = vmatprep.subr.bf16.mxu0 0
      %2761 = vmatpush1.bf16.msra.mxu0 0
      %2762 = vmatprep.subr.bf16.mxu0 0
      %2763 = vmatpush1.bf16.msra.mxu0 0
      %2764 = vmatprep.subr.bf16.mxu0 0
      %2765 = vmatpush1.bf16.msra.mxu0 0
      %2766 = vmatprep.subr.bf16.mxu0 0
      %2767 = vmatpush1.bf16.msra.mxu0 0
      %2768 = vmatprep.subr.bf16.mxu0 0
      %2769 = vmatpush1.bf16.msra.mxu0 0
      %2770 = vmatprep.subr.bf16.mxu0 0
      %2771 = vmatpush1.bf16.msra.mxu0 0
      %2772 = vmatprep.mubr.bf16.mxu0 0
      %2773 = vmatmul.mubr.bf16.gmra.mrb[0].mxu0 %v2506
      %v2774 = vpop.f32.mrb[0].mxu0
      %v2775 = vadd.f32 0.0, %v2774
      %v2776 = vpop.f32.mrb[0].mxu0
      %v2777 = vadd.f32 0.0, %v2776
      %v2778 = vpop.f32.mrb[0].mxu0
      %v2779 = vpop.f32.mrb[0].mxu0
      %2780 = vdwg.mxu0
      %v2785 = vcombine.low %v2734, %v2736
      %v2786 = vcombine.low %v2775, %v2777
      %v2788 = vunpack.c.l.s4 1983009808
      %v2789 = vunpack.c.0.s8 %v2788
      %v2790 = vlaneseq
      %v2791 = vshrl.u32 %v2790, 7
      %v2792 = vsub.s32 %v2789, %v2791
      %v2793 = vrot.slane %v2785, %v2792
      %v2795 = vunpack.c.l.s4 1983009808
      %v2796 = vunpack.c.0.s8 %v2795
      %v2797 = vlaneseq
      %v2798 = vshrl.u32 %v2797, 7
      %v2799 = vsub.s32 %v2796, %v2798
      %v2800 = vrot.slane %v2786, %v2799
      %v2801 = vcombine.low %v2793, %v2800
      %v2803 = vadd.f32 %v2505, %v2801
      %v2804 = vxor.u32 %v2803, 2147483648
      %v2805 = vmul.f32 %v2804, 1.442695
      %v2806 = vpow.pop %v2805
      %v2807 = vadd.f32 %v2806, 1.0
      %v2808 = vrcp.pop %v2807
      %v2809 = vmul.f32 1.0, %v2808
      %v2811 = vrot.slane %v2803, 2
      %v2813 = vxor.u32 %v2811, 2147483648
      %v2814 = vmul.f32 %v2813, 1.442695
      %v2815 = vpow.pop %v2814
      %v2816 = vadd.f32 %v2815, 1.0
      %v2817 = vrcp.pop %v2816
      %v2818 = vmul.f32 1.0, %v2817
      %v2819 = vrot.slane %v2803, 4
      %v2821 = vtanh.pop %v2819
      %v2822 = vrot.slane %v2803, 6
      %v2824 = vxor.u32 %v2822, 2147483648
      %v2825 = vmul.f32 %v2824, 1.442695
      %v2826 = vpow.pop %v2825
      %v2827 = vadd.f32 %v2826, 1.0
      %v2828 = vrcp.pop %v2827
      %v2829 = vmul.f32 1.0, %v2828
      %v2830 = vmul.f32 %v2818, %v2166
      %v2831 = vmul.f32 %v2809, %v2821
      %v2832 = vadd.f32 %v2830, %v2831
      %v2833 = vtanh.pop %v2832
      %v2834 = vmul.f32 %v2829, %v2833
      %s2835 = scalar_lea.vmem %s175, 6
      %2836 = vst [vmem:[%s2835] sm:$0x3] %v2503
      %s2837 = scalar_lea.vmem %s175, 22
      %2838 = vst [vmem:[%s2837] sm:$0x3] %v2834
      %s2839 = scalar_lea.vmem %s161, 32
      %v2840 = vld [vmem:[%s2839] sm:$0xff]
      %v2841 = vpack.c.bf16 %v2503, %v2503
      %v2842 = vld [vmem:[%s168] sm:$0xff]
      %v2843 = vld [vmem:[%s168 + $0x8] sm:$0xff]
      %v2844 = vld [vmem:[%s168 + $0x10] sm:$0xff]
      %v2845 = vld [vmem:[%s168 + $0x18] sm:$0xff]
      %v2846 = vld [vmem:[%s168 + $0x20] sm:$0xff]
      %v2847 = vld [vmem:[%s168 + $0x28] sm:$0xff]
      %v2848 = vld [vmem:[%s168 + $0x30] sm:$0xff]
      %v2849 = vld [vmem:[%s168 + $0x38] sm:$0xff]
      %v2850 = vld [vmem:[%s168 + $0x40] sm:$0xff]
      %v2851 = vld [vmem:[%s168 + $0x48] sm:$0xff]
      %v2852 = vld [vmem:[%s168 + $0x50] sm:$0xff]
      %v2853 = vld [vmem:[%s168 + $0x58] sm:$0xff]
      %v2854 = vld [vmem:[%s168 + $0x60] sm:$0xff]
      %v2855 = vld [vmem:[%s168 + $0x68] sm:$0xff]
      %v2856 = vld [vmem:[%s168 + $0x70] sm:$0xff]
      %v2857 = vld [vmem:[%s168 + $0x78] sm:$0xff]
      %v2858 = vld [vmem:[%s168 + $0x80] sm:$0xff]
      %v2859 = vld [vmem:[%s168 + $0x88] sm:$0xff]
      %v2860 = vld [vmem:[%s168 + $0x90] sm:$0xff]
      %v2861 = vld [vmem:[%s168 + $0x98] sm:$0xff]
      %v2862 = vld [vmem:[%s168 + $0xa0] sm:$0xff]
      %v2863 = vld [vmem:[%s168 + $0xa8] sm:$0xff]
      %v2864 = vld [vmem:[%s168 + $0xb0] sm:$0xff]
      %v2865 = vld [vmem:[%s168 + $0xb8] sm:$0xff]
      %v2866 = vld [vmem:[%s168 + $0xc0] sm:$0xff]
      %v2867 = vld [vmem:[%s168 + $0xc8] sm:$0xff]
      %v2868 = vld [vmem:[%s168 + $0xd0] sm:$0xff]
      %v2869 = vld [vmem:[%s168 + $0xd8] sm:$0xff]
      %v2870 = vld [vmem:[%s168 + $0xe0] sm:$0xff]
      %v2871 = vld [vmem:[%s168 + $0xe8] sm:$0xff]
      %v2872 = vld [vmem:[%s168 + $0xf0] sm:$0xff]
      %v2873 = vld [vmem:[%s168 + $0xf8] sm:$0xff]
      %v2906 = vunpack.c.l.b16 %v2842
      %v2907 = vunpack.c.h.b16 %v2842
      %v2908 = vunpack.c.l.b16 %v2843
      %v2909 = vunpack.c.h.b16 %v2843
      %v2910 = vunpack.c.l.b16 %v2844
      %v2911 = vunpack.c.h.b16 %v2844
      %v2912 = vunpack.c.l.b16 %v2845
      %v2913 = vunpack.c.h.b16 %v2845
      %v2914 = vunpack.c.l.b16 %v2846
      %v2915 = vunpack.c.h.b16 %v2846
      %v2916 = vunpack.c.l.b16 %v2847
      %v2917 = vunpack.c.h.b16 %v2847
      %v2918 = vunpack.c.l.b16 %v2848
      %v2919 = vunpack.c.h.b16 %v2848
      %v2920 = vunpack.c.l.b16 %v2849
      %v2921 = vunpack.c.h.b16 %v2849
      %v2922 = vunpack.c.l.b16 %v2850
      %v2923 = vunpack.c.h.b16 %v2850
      %v2924 = vunpack.c.l.b16 %v2851
      %v2925 = vunpack.c.h.b16 %v2851
      %v2926 = vunpack.c.l.b16 %v2852
      %v2927 = vunpack.c.h.b16 %v2852
      %v2928 = vunpack.c.l.b16 %v2853
      %v2929 = vunpack.c.h.b16 %v2853
      %v2930 = vunpack.c.l.b16 %v2854
      %v2931 = vunpack.c.h.b16 %v2854
      %v2932 = vunpack.c.l.b16 %v2855
      %v2933 = vunpack.c.h.b16 %v2855
      %v2934 = vunpack.c.l.b16 %v2856
      %v2935 = vunpack.c.h.b16 %v2856
      %v2936 = vunpack.c.l.b16 %v2857
      %v2937 = vunpack.c.h.b16 %v2857
      %v2938 = vunpack.c.l.b16 %v2858
      %v2939 = vunpack.c.h.b16 %v2858
      %v2940 = vunpack.c.l.b16 %v2859
      %v2941 = vunpack.c.h.b16 %v2859
      %v2942 = vunpack.c.l.b16 %v2860
      %v2943 = vunpack.c.h.b16 %v2860
      %v2944 = vunpack.c.l.b16 %v2861
      %v2945 = vunpack.c.h.b16 %v2861
      %v2946 = vunpack.c.l.b16 %v2862
      %v2947 = vunpack.c.h.b16 %v2862
      %v2948 = vunpack.c.l.b16 %v2863
      %v2949 = vunpack.c.h.b16 %v2863
      %v2950 = vunpack.c.l.b16 %v2864
      %v2951 = vunpack.c.h.b16 %v2864
      %v2952 = vunpack.c.l.b16 %v2865
      %v2953 = vunpack.c.h.b16 %v2865
      %v2954 = vunpack.c.l.b16 %v2866
      %v2955 = vunpack.c.h.b16 %v2866
      %v2956 = vunpack.c.l.b16 %v2867
      %v2957 = vunpack.c.h.b16 %v2867
      %v2958 = vunpack.c.l.b16 %v2868
      %v2959 = vunpack.c.h.b16 %v2868
      %v2960 = vunpack.c.l.b16 %v2869
      %v2961 = vunpack.c.h.b16 %v2869
      %v2962 = vunpack.c.l.b16 %v2870
      %v2963 = vunpack.c.h.b16 %v2870
      %v2964 = vunpack.c.l.b16 %v2871
      %v2965 = vunpack.c.h.b16 %v2871
      %v2966 = vunpack.c.l.b16 %v2872
      %v2967 = vunpack.c.h.b16 %v2872
      %v2968 = vunpack.c.l.b16 %v2873
      %v2969 = vunpack.c.h.b16 %v2873
      %v2970 = vpack.c.b16 %v2910, %v2906
      %v2971 = vpack.c.b16 %v2911, %v2907
      %v2972 = vpack.c.b16 %v2912, %v2908
      %v2973 = vpack.c.b16 %v2913, %v2909
      %v2974 = vpack.c.b16 %v2918, %v2914
      %v2975 = vpack.c.b16 %v2919, %v2915
      %v2976 = vpack.c.b16 %v2920, %v2916
      %v2977 = vpack.c.b16 %v2921, %v2917
      %v2978 = vpack.c.b16 %v2926, %v2922
      %v2979 = vpack.c.b16 %v2927, %v2923
      %v2980 = vpack.c.b16 %v2928, %v2924
      %v2981 = vpack.c.b16 %v2929, %v2925
      %v2982 = vpack.c.b16 %v2934, %v2930
      %v2983 = vpack.c.b16 %v2935, %v2931
      %v2984 = vpack.c.b16 %v2936, %v2932
      %v2985 = vpack.c.b16 %v2937, %v2933
      %v2986 = vpack.c.b16 %v2942, %v2938
      %v2987 = vpack.c.b16 %v2943, %v2939
      %v2988 = vpack.c.b16 %v2944, %v2940
      %v2989 = vpack.c.b16 %v2945, %v2941
      %v2990 = vpack.c.b16 %v2950, %v2946
      %v2991 = vpack.c.b16 %v2951, %v2947
      %v2992 = vpack.c.b16 %v2952, %v2948
      %v2993 = vpack.c.b16 %v2953, %v2949
      %v2994 = vpack.c.b16 %v2958, %v2954
      %v2995 = vpack.c.b16 %v2959, %v2955
      %v2996 = vpack.c.b16 %v2960, %v2956
      %v2997 = vpack.c.b16 %v2961, %v2957
      %v2998 = vpack.c.b16 %v2966, %v2962
      %v2999 = vpack.c.b16 %v2967, %v2963
      %v3000 = vpack.c.b16 %v2968, %v2964
      %v3001 = vpack.c.b16 %v2969, %v2965
      %3034 = vmatprep.subr.bf16.mxu0 %v2971
      %3035 = vmatpush1.bf16.msra.mxu0 %v2970
      %3036 = vmatprep.subr.bf16.mxu0 %v2975
      %3037 = vmatpush1.bf16.msra.mxu0 %v2974
      %3038 = vmatprep.subr.bf16.mxu0 %v2979
      %3039 = vmatpush1.bf16.msra.mxu0 %v2978
      %3040 = vmatprep.subr.bf16.mxu0 %v2983
      %3041 = vmatpush1.bf16.msra.mxu0 %v2982
      %3042 = vmatprep.subr.bf16.mxu0 %v2987
      %3043 = vmatpush1.bf16.msra.mxu0 %v2986
      %3044 = vmatprep.subr.bf16.mxu0 %v2991
      %3045 = vmatpush1.bf16.msra.mxu0 %v2990
      %3046 = vmatprep.subr.bf16.mxu0 %v2995
      %3047 = vmatpush1.bf16.msra.mxu0 %v2994
      %3048 = vmatprep.subr.bf16.mxu0 %v2999
      %3049 = vmatpush1.bf16.msra.mxu0 %v2998
      %3050 = vmatprep.subr.bf16.mxu0 0
      %3051 = vmatpush1.bf16.msra.mxu0 0
      %3052 = vmatprep.subr.bf16.mxu0 0
      %3053 = vmatpush1.bf16.msra.mxu0 0
      %3054 = vmatprep.subr.bf16.mxu0 0
      %3055 = vmatpush1.bf16.msra.mxu0 0
      %3056 = vmatprep.subr.bf16.mxu0 0
      %3057 = vmatpush1.bf16.msra.mxu0 0
      %3058 = vmatprep.subr.bf16.mxu0 0
      %3059 = vmatpush1.bf16.msra.mxu0 0
      %3060 = vmatprep.subr.bf16.mxu0 0
      %3061 = vmatpush1.bf16.msra.mxu0 0
      %3062 = vmatprep.subr.bf16.mxu0 0
      %3063 = vmatpush1.bf16.msra.mxu0 0
      %3064 = vmatprep.subr.bf16.mxu0 0
      %3065 = vmatpush1.bf16.msra.mxu0 0
      %3066 = vmatprep.mubr.bf16.mxu0 0
      %3067 = vmatmul.mubr.bf16.gmra.mrb[0].mxu0 %v2841
      %v3068 = vpop.f32.mrb[0].mxu0
      %v3069 = vadd.f32 0.0, %v3068
      %v3070 = vpop.f32.mrb[0].mxu0
      %v3071 = vadd.f32 0.0, %v3070
      %v3072 = vpop.f32.mrb[0].mxu0
      %v3073 = vpop.f32.mrb[0].mxu0
      %3074 = vdwg.mxu0
      %3075 = vmatprep.subr.bf16.mxu0 %v2973
      %3076 = vmatpush1.bf16.msra.mxu0 %v2972
      %3077 = vmatprep.subr.bf16.mxu0 %v2977
      %3078 = vmatpush1.bf16.msra.mxu0 %v2976
      %3079 = vmatprep.subr.bf16.mxu0 %v2981
      %3080 = vmatpush1.bf16.msra.mxu0 %v2980
      %3081 = vmatprep.subr.bf16.mxu0 %v2985
      %3082 = vmatpush1.bf16.msra.mxu0 %v2984
      %3083 = vmatprep.subr.bf16.mxu0 %v2989
      %3084 = vmatpush1.bf16.msra.mxu0 %v2988
      %3085 = vmatprep.subr.bf16.mxu0 %v2993
      %3086 = vmatpush1.bf16.msra.mxu0 %v2992
      %3087 = vmatprep.subr.bf16.mxu0 %v2997
      %3088 = vmatpush1.bf16.msra.mxu0 %v2996
      %3089 = vmatprep.subr.bf16.mxu0 %v3001
      %3090 = vmatpush1.bf16.msra.mxu0 %v3000
      %3091 = vmatprep.subr.bf16.mxu0 0
      %3092 = vmatpush1.bf16.msra.mxu0 0
      %3093 = vmatprep.subr.bf16.mxu0 0
      %3094 = vmatpush1.bf16.msra.mxu0 0
      %3095 = vmatprep.subr.bf16.mxu0 0
      %3096 = vmatpush1.bf16.msra.mxu0 0
      %3097 = vmatprep.subr.bf16.mxu0 0
      %3098 = vmatpush1.bf16.msra.mxu0 0
      %3099 = vmatprep.subr.bf16.mxu0 0
      %3100 = vmatpush1.bf16.msra.mxu0 0
      %3101 = vmatprep.subr.bf16.mxu0 0
      %3102 = vmatpush1.bf16.msra.mxu0 0
      %3103 = vmatprep.subr.bf16.mxu0 0
      %3104 = vmatpush1.bf16.msra.mxu0 0
      %3105 = vmatprep.subr.bf16.mxu0 0
      %3106 = vmatpush1.bf16.msra.mxu0 0
      %3107 = vmatprep.mubr.bf16.mxu0 0
      %3108 = vmatmul.mubr.bf16.gmra.mrb[0].mxu0 %v2841
      %v3109 = vpop.f32.mrb[0].mxu0
      %v3110 = vadd.f32 0.0, %v3109
      %v3111 = vpop.f32.mrb[0].mxu0
      %v3112 = vadd.f32 0.0, %v3111
      %v3113 = vpop.f32.mrb[0].mxu0
      %v3114 = vpop.f32.mrb[0].mxu0
      %3115 = vdwg.mxu0
      %v3120 = vcombine.low %v3069, %v3071
      %v3121 = vcombine.low %v3110, %v3112
      %v3123 = vunpack.c.l.s4 1983009808
      %v3124 = vunpack.c.0.s8 %v3123
      %v3125 = vlaneseq
      %v3126 = vshrl.u32 %v3125, 7
      %v3127 = vsub.s32 %v3124, %v3126
      %v3128 = vrot.slane %v3120, %v3127
      %v3130 = vunpack.c.l.s4 1983009808
      %v3131 = vunpack.c.0.s8 %v3130
      %v3132 = vlaneseq
      %v3133 = vshrl.u32 %v3132, 7
      %v3134 = vsub.s32 %v3131, %v3133
      %v3135 = vrot.slane %v3121, %v3134
      %v3136 = vcombine.low %v3128, %v3135
      %v3138 = vadd.f32 %v2840, %v3136
      %v3139 = vxor.u32 %v3138, 2147483648
      %v3140 = vmul.f32 %v3139, 1.442695
      %v3141 = vpow.pop %v3140
      %v3142 = vadd.f32 %v3141, 1.0
      %v3143 = vrcp.pop %v3142
      %v3144 = vmul.f32 1.0, %v3143
      %v3146 = vrot.slane %v3138, 2
      %v3148 = vxor.u32 %v3146, 2147483648
      %v3149 = vmul.f32 %v3148, 1.442695
      %v3150 = vpow.pop %v3149
      %v3151 = vadd.f32 %v3150, 1.0
      %v3152 = vrcp.pop %v3151
      %v3153 = vmul.f32 1.0, %v3152
      %v3154 = vrot.slane %v3138, 4
      %v3156 = vtanh.pop %v3154
      %v3157 = vrot.slane %v3138, 6
      %v3159 = vxor.u32 %v3157, 2147483648
      %v3160 = vmul.f32 %v3159, 1.442695
      %v3161 = vpow.pop %v3160
      %v3162 = vadd.f32 %v3161, 1.0
      %v3163 = vrcp.pop %v3162
      %v3164 = vmul.f32 1.0, %v3163
      %v3165 = vmul.f32 %v3153, %v2501
      %v3166 = vmul.f32 %v3144, %v3156
      %v3167 = vadd.f32 %v3165, %v3166
      %v3168 = vtanh.pop %v3167
      %v3169 = vmul.f32 %v3164, %v3168
      %s3170 = scalar_lea.vmem %s161, 88
      %v3171 = vld [vmem:[%s3170] sm:$0xff]
      %v3172 = vpack.c.bf16 %v2834, %v2834
      %v3173 = vld [vmem:[%s509] sm:$0xff]
      %v3174 = vld [vmem:[%s509 + $0x8] sm:$0xff]
      %v3175 = vld [vmem:[%s509 + $0x10] sm:$0xff]
      %v3176 = vld [vmem:[%s509 + $0x18] sm:$0xff]
      %v3177 = vld [vmem:[%s509 + $0x20] sm:$0xff]
      %v3178 = vld [vmem:[%s509 + $0x28] sm:$0xff]
      %v3179 = vld [vmem:[%s509 + $0x30] sm:$0xff]
      %v3180 = vld [vmem:[%s509 + $0x38] sm:$0xff]
      %v3181 = vld [vmem:[%s509 + $0x40] sm:$0xff]
      %v3182 = vld [vmem:[%s509 + $0x48] sm:$0xff]
      %v3183 = vld [vmem:[%s509 + $0x50] sm:$0xff]
      %v3184 = vld [vmem:[%s509 + $0x58] sm:$0xff]
      %v3185 = vld [vmem:[%s509 + $0x60] sm:$0xff]
      %v3186 = vld [vmem:[%s509 + $0x68] sm:$0xff]
      %v3187 = vld [vmem:[%s509 + $0x70] sm:$0xff]
      %v3188 = vld [vmem:[%s509 + $0x78] sm:$0xff]
      %v3189 = vld [vmem:[%s509 + $0x80] sm:$0xff]
      %v3190 = vld [vmem:[%s509 + $0x88] sm:$0xff]
      %v3191 = vld [vmem:[%s509 + $0x90] sm:$0xff]
      %v3192 = vld [vmem:[%s509 + $0x98] sm:$0xff]
      %v3193 = vld [vmem:[%s509 + $0xa0] sm:$0xff]
      %v3194 = vld [vmem:[%s509 + $0xa8] sm:$0xff]
      %v3195 = vld [vmem:[%s509 + $0xb0] sm:$0xff]
      %v3196 = vld [vmem:[%s509 + $0xb8] sm:$0xff]
      %v3197 = vld [vmem:[%s509 + $0xc0] sm:$0xff]
      %v3198 = vld [vmem:[%s509 + $0xc8] sm:$0xff]
      %v3199 = vld [vmem:[%s509 + $0xd0] sm:$0xff]
      %v3200 = vld [vmem:[%s509 + $0xd8] sm:$0xff]
      %v3201 = vld [vmem:[%s509 + $0xe0] sm:$0xff]
      %v3202 = vld [vmem:[%s509 + $0xe8] sm:$0xff]
      %v3203 = vld [vmem:[%s509 + $0xf0] sm:$0xff]
      %v3204 = vld [vmem:[%s509 + $0xf8] sm:$0xff]
      %v3237 = vunpack.c.l.b16 %v3173
      %v3238 = vunpack.c.h.b16 %v3173
      %v3239 = vunpack.c.l.b16 %v3174
      %v3240 = vunpack.c.h.b16 %v3174
      %v3241 = vunpack.c.l.b16 %v3175
      %v3242 = vunpack.c.h.b16 %v3175
      %v3243 = vunpack.c.l.b16 %v3176
      %v3244 = vunpack.c.h.b16 %v3176
      %v3245 = vunpack.c.l.b16 %v3177
      %v3246 = vunpack.c.h.b16 %v3177
      %v3247 = vunpack.c.l.b16 %v3178
      %v3248 = vunpack.c.h.b16 %v3178
      %v3249 = vunpack.c.l.b16 %v3179
      %v3250 = vunpack.c.h.b16 %v3179
      %v3251 = vunpack.c.l.b16 %v3180
      %v3252 = vunpack.c.h.b16 %v3180
      %v3253 = vunpack.c.l.b16 %v3181
      %v3254 = vunpack.c.h.b16 %v3181
      %v3255 = vunpack.c.l.b16 %v3182
      %v3256 = vunpack.c.h.b16 %v3182
      %v3257 = vunpack.c.l.b16 %v3183
      %v3258 = vunpack.c.h.b16 %v3183
      %v3259 = vunpack.c.l.b16 %v3184
      %v3260 = vunpack.c.h.b16 %v3184
      %v3261 = vunpack.c.l.b16 %v3185
      %v3262 = vunpack.c.h.b16 %v3185
      %v3263 = vunpack.c.l.b16 %v3186
      %v3264 = vunpack.c.h.b16 %v3186
      %v3265 = vunpack.c.l.b16 %v3187
      %v3266 = vunpack.c.h.b16 %v3187
      %v3267 = vunpack.c.l.b16 %v3188
      %v3268 = vunpack.c.h.b16 %v3188
      %v3269 = vunpack.c.l.b16 %v3189
      %v3270 = vunpack.c.h.b16 %v3189
      %v3271 = vunpack.c.l.b16 %v3190
      %v3272 = vunpack.c.h.b16 %v3190
      %v3273 = vunpack.c.l.b16 %v3191
      %v3274 = vunpack.c.h.b16 %v3191
      %v3275 = vunpack.c.l.b16 %v3192
      %v3276 = vunpack.c.h.b16 %v3192
      %v3277 = vunpack.c.l.b16 %v3193
      %v3278 = vunpack.c.h.b16 %v3193
      %v3279 = vunpack.c.l.b16 %v3194
      %v3280 = vunpack.c.h.b16 %v3194
      %v3281 = vunpack.c.l.b16 %v3195
      %v3282 = vunpack.c.h.b16 %v3195
      %v3283 = vunpack.c.l.b16 %v3196
      %v3284 = vunpack.c.h.b16 %v3196
      %v3285 = vunpack.c.l.b16 %v3197
      %v3286 = vunpack.c.h.b16 %v3197
      %v3287 = vunpack.c.l.b16 %v3198
      %v3288 = vunpack.c.h.b16 %v3198
      %v3289 = vunpack.c.l.b16 %v3199
      %v3290 = vunpack.c.h.b16 %v3199
      %v3291 = vunpack.c.l.b16 %v3200
      %v3292 = vunpack.c.h.b16 %v3200
      %v3293 = vunpack.c.l.b16 %v3201
      %v3294 = vunpack.c.h.b16 %v3201
      %v3295 = vunpack.c.l.b16 %v3202
      %v3296 = vunpack.c.h.b16 %v3202
      %v3297 = vunpack.c.l.b16 %v3203
      %v3298 = vunpack.c.h.b16 %v3203
      %v3299 = vunpack.c.l.b16 %v3204
      %v3300 = vunpack.c.h.b16 %v3204
      %v3301 = vpack.c.b16 %v3241, %v3237
      %v3302 = vpack.c.b16 %v3242, %v3238
      %v3303 = vpack.c.b16 %v3243, %v3239
      %v3304 = vpack.c.b16 %v3244, %v3240
      %v3305 = vpack.c.b16 %v3249, %v3245
      %v3306 = vpack.c.b16 %v3250, %v3246
      %v3307 = vpack.c.b16 %v3251, %v3247
      %v3308 = vpack.c.b16 %v3252, %v3248
      %v3309 = vpack.c.b16 %v3257, %v3253
      %v3310 = vpack.c.b16 %v3258, %v3254
      %v3311 = vpack.c.b16 %v3259, %v3255
      %v3312 = vpack.c.b16 %v3260, %v3256
      %v3313 = vpack.c.b16 %v3265, %v3261
      %v3314 = vpack.c.b16 %v3266, %v3262
      %v3315 = vpack.c.b16 %v3267, %v3263
      %v3316 = vpack.c.b16 %v3268, %v3264
      %v3317 = vpack.c.b16 %v3273, %v3269
      %v3318 = vpack.c.b16 %v3274, %v3270
      %v3319 = vpack.c.b16 %v3275, %v3271
      %v3320 = vpack.c.b16 %v3276, %v3272
      %v3321 = vpack.c.b16 %v3281, %v3277
      %v3322 = vpack.c.b16 %v3282, %v3278
      %v3323 = vpack.c.b16 %v3283, %v3279
      %v3324 = vpack.c.b16 %v3284, %v3280
      %v3325 = vpack.c.b16 %v3289, %v3285
      %v3326 = vpack.c.b16 %v3290, %v3286
      %v3327 = vpack.c.b16 %v3291, %v3287
      %v3328 = vpack.c.b16 %v3292, %v3288
      %v3329 = vpack.c.b16 %v3297, %v3293
      %v3330 = vpack.c.b16 %v3298, %v3294
      %v3331 = vpack.c.b16 %v3299, %v3295
      %v3332 = vpack.c.b16 %v3300, %v3296
      %3365 = vmatprep.subr.bf16.mxu0 %v3302
      %3366 = vmatpush1.bf16.msra.mxu0 %v3301
      %3367 = vmatprep.subr.bf16.mxu0 %v3306
      %3368 = vmatpush1.bf16.msra.mxu0 %v3305
      %3369 = vmatprep.subr.bf16.mxu0 %v3310
      %3370 = vmatpush1.bf16.msra.mxu0 %v3309
      %3371 = vmatprep.subr.bf16.mxu0 %v3314
      %3372 = vmatpush1.bf16.msra.mxu0 %v3313
      %3373 = vmatprep.subr.bf16.mxu0 %v3318
      %3374 = vmatpush1.bf16.msra.mxu0 %v3317
      %3375 = vmatprep.subr.bf16.mxu0 %v3322
      %3376 = vmatpush1.bf16.msra.mxu0 %v3321
      %3377 = vmatprep.subr.bf16.mxu0 %v3326
      %3378 = vmatpush1.bf16.msra.mxu0 %v3325
      %3379 = vmatprep.subr.bf16.mxu0 %v3330
      %3380 = vmatpush1.bf16.msra.mxu0 %v3329
      %3381 = vmatprep.subr.bf16.mxu0 0
      %3382 = vmatpush1.bf16.msra.mxu0 0
      %3383 = vmatprep.subr.bf16.mxu0 0
      %3384 = vmatpush1.bf16.msra.mxu0 0
      %3385 = vmatprep.subr.bf16.mxu0 0
      %3386 = vmatpush1.bf16.msra.mxu0 0
      %3387 = vmatprep.subr.bf16.mxu0 0
      %3388 = vmatpush1.bf16.msra.mxu0 0
      %3389 = vmatprep.subr.bf16.mxu0 0
      %3390 = vmatpush1.bf16.msra.mxu0 0
      %3391 = vmatprep.subr.bf16.mxu0 0
      %3392 = vmatpush1.bf16.msra.mxu0 0
      %3393 = vmatprep.subr.bf16.mxu0 0
      %3394 = vmatpush1.bf16.msra.mxu0 0
      %3395 = vmatprep.subr.bf16.mxu0 0
      %3396 = vmatpush1.bf16.msra.mxu0 0
      %3397 = vmatprep.mubr.bf16.mxu0 0
      %3398 = vmatmul.mubr.bf16.gmra.mrb[0].mxu0 %v3172
      %v3399 = vpop.f32.mrb[0].mxu0
      %v3400 = vadd.f32 0.0, %v3399
      %v3401 = vpop.f32.mrb[0].mxu0
      %v3402 = vadd.f32 0.0, %v3401
      %v3403 = vpop.f32.mrb[0].mxu0
      %v3404 = vpop.f32.mrb[0].mxu0
      %3405 = vdwg.mxu0
      %3406 = vmatprep.subr.bf16.mxu0 %v3304
      %3407 = vmatpush1.bf16.msra.mxu0 %v3303
      %3408 = vmatprep.subr.bf16.mxu0 %v3308
      %3409 = vmatpush1.bf16.msra.mxu0 %v3307
      %3410 = vmatprep.subr.bf16.mxu0 %v3312
      %3411 = vmatpush1.bf16.msra.mxu0 %v3311
      %3412 = vmatprep.subr.bf16.mxu0 %v3316
      %3413 = vmatpush1.bf16.msra.mxu0 %v3315
      %3414 = vmatprep.subr.bf16.mxu0 %v3320
      %3415 = vmatpush1.bf16.msra.mxu0 %v3319
      %3416 = vmatprep.subr.bf16.mxu0 %v3324
      %3417 = vmatpush1.bf16.msra.mxu0 %v3323
      %3418 = vmatprep.subr.bf16.mxu0 %v3328
      %3419 = vmatpush1.bf16.msra.mxu0 %v3327
      %3420 = vmatprep.subr.bf16.mxu0 %v3332
      %3421 = vmatpush1.bf16.msra.mxu0 %v3331
      %3422 = vmatprep.subr.bf16.mxu0 0
      %3423 = vmatpush1.bf16.msra.mxu0 0
      %3424 = vmatprep.subr.bf16.mxu0 0
      %3425 = vmatpush1.bf16.msra.mxu0 0
      %3426 = vmatprep.subr.bf16.mxu0 0
      %3427 = vmatpush1.bf16.msra.mxu0 0
      %3428 = vmatprep.subr.bf16.mxu0 0
      %3429 = vmatpush1.bf16.msra.mxu0 0
      %3430 = vmatprep.subr.bf16.mxu0 0
      %3431 = vmatpush1.bf16.msra.mxu0 0
      %3432 = vmatprep.subr.bf16.mxu0 0
      %3433 = vmatpush1.bf16.msra.mxu0 0
      %3434 = vmatprep.subr.bf16.mxu0 0
      %3435 = vmatpush1.bf16.msra.mxu0 0
      %3436 = vmatprep.subr.bf16.mxu0 0
      %3437 = vmatpush1.bf16.msra.mxu0 0
      %3438 = vmatprep.mubr.bf16.mxu0 0
      %3439 = vmatmul.mubr.bf16.gmra.mrb[0].mxu0 %v3172
      %v3440 = vpop.f32.mrb[0].mxu0
      %v3441 = vadd.f32 0.0, %v3440
      %v3442 = vpop.f32.mrb[0].mxu0
      %v3443 = vadd.f32 0.0, %v3442
      %v3444 = vpop.f32.mrb[0].mxu0
      %v3445 = vpop.f32.mrb[0].mxu0
      %3446 = vdwg.mxu0
      %v3451 = vcombine.low %v3400, %v3402
      %v3452 = vcombine.low %v3441, %v3443
      %v3454 = vunpack.c.l.s4 1983009808
      %v3455 = vunpack.c.0.s8 %v3454
      %v3456 = vlaneseq
      %v3457 = vshrl.u32 %v3456, 7
      %v3458 = vsub.s32 %v3455, %v3457
      %v3459 = vrot.slane %v3451, %v3458
      %v3461 = vunpack.c.l.s4 1983009808
      %v3462 = vunpack.c.0.s8 %v3461
      %v3463 = vlaneseq
      %v3464 = vshrl.u32 %v3463, 7
      %v3465 = vsub.s32 %v3462, %v3464
      %v3466 = vrot.slane %v3452, %v3465
      %v3467 = vcombine.low %v3459, %v3466
      %v3469 = vadd.f32 %v3171, %v3467
      %v3470 = vxor.u32 %v3469, 2147483648
      %v3471 = vmul.f32 %v3470, 1.442695
      %v3472 = vpow.pop %v3471
      %v3473 = vadd.f32 %v3472, 1.0
      %v3474 = vrcp.pop %v3473
      %v3475 = vmul.f32 1.0, %v3474
      %v3477 = vrot.slane %v3469, 2
      %v3479 = vxor.u32 %v3477, 2147483648
      %v3480 = vmul.f32 %v3479, 1.442695
      %v3481 = vpow.pop %v3480
      %v3482 = vadd.f32 %v3481, 1.0
      %v3483 = vrcp.pop %v3482
      %v3484 = vmul.f32 1.0, %v3483
      %v3485 = vrot.slane %v3469, 4
      %v3487 = vtanh.pop %v3485
      %v3488 = vrot.slane %v3469, 6
      %v3490 = vxor.u32 %v3488, 2147483648
      %v3491 = vmul.f32 %v3490, 1.442695
      %v3492 = vpow.pop %v3491
      %v3493 = vadd.f32 %v3492, 1.0
      %v3494 = vrcp.pop %v3493
      %v3495 = vmul.f32 1.0, %v3494
      %v3496 = vmul.f32 %v3484, %v2832
      %v3497 = vmul.f32 %v3475, %v3487
      %v3498 = vadd.f32 %v3496, %v3497
      %v3499 = vtanh.pop %v3498
      %v3500 = vmul.f32 %v3495, %v3499
      %s3501 = scalar_lea.vmem %s175, 8
      %3502 = vst [vmem:[%s3501] sm:$0x3] %v3169
      %s3503 = scalar_lea.vmem %s175, 24
      %3504 = vst [vmem:[%s3503] sm:$0x3] %v3500
      %s3505 = scalar_lea.vmem %s161, 40
      %v3506 = vld [vmem:[%s3505] sm:$0xff]
      %v3507 = vpack.c.bf16 %v3169, %v3169
      %v3508 = vld [vmem:[%s168] sm:$0xff]
      %v3509 = vld [vmem:[%s168 + $0x8] sm:$0xff]
      %v3510 = vld [vmem:[%s168 + $0x10] sm:$0xff]
      %v3511 = vld [vmem:[%s168 + $0x18] sm:$0xff]
      %v3512 = vld [vmem:[%s168 + $0x20] sm:$0xff]
      %v3513 = vld [vmem:[%s168 + $0x28] sm:$0xff]
      %v3514 = vld [vmem:[%s168 + $0x30] sm:$0xff]
      %v3515 = vld [vmem:[%s168 + $0x38] sm:$0xff]
      %v3516 = vld [vmem:[%s168 + $0x40] sm:$0xff]
      %v3517 = vld [vmem:[%s168 + $0x48] sm:$0xff]
      %v3518 = vld [vmem:[%s168 + $0x50] sm:$0xff]
      %v3519 = vld [vmem:[%s168 + $0x58] sm:$0xff]
      %v3520 = vld [vmem:[%s168 + $0x60] sm:$0xff]
      %v3521 = vld [vmem:[%s168 + $0x68] sm:$0xff]
      %v3522 = vld [vmem:[%s168 + $0x70] sm:$0xff]
      %v3523 = vld [vmem:[%s168 + $0x78] sm:$0xff]
      %v3524 = vld [vmem:[%s168 + $0x80] sm:$0xff]
      %v3525 = vld [vmem:[%s168 + $0x88] sm:$0xff]
      %v3526 = vld [vmem:[%s168 + $0x90] sm:$0xff]
      %v3527 = vld [vmem:[%s168 + $0x98] sm:$0xff]
      %v3528 = vld [vmem:[%s168 + $0xa0] sm:$0xff]
      %v3529 = vld [vmem:[%s168 + $0xa8] sm:$0xff]
      %v3530 = vld [vmem:[%s168 + $0xb0] sm:$0xff]
      %v3531 = vld [vmem:[%s168 + $0xb8] sm:$0xff]
      %v3532 = vld [vmem:[%s168 + $0xc0] sm:$0xff]
      %v3533 = vld [vmem:[%s168 + $0xc8] sm:$0xff]
      %v3534 = vld [vmem:[%s168 + $0xd0] sm:$0xff]
      %v3535 = vld [vmem:[%s168 + $0xd8] sm:$0xff]
      %v3536 = vld [vmem:[%s168 + $0xe0] sm:$0xff]
      %v3537 = vld [vmem:[%s168 + $0xe8] sm:$0xff]
      %v3538 = vld [vmem:[%s168 + $0xf0] sm:$0xff]
      %v3539 = vld [vmem:[%s168 + $0xf8] sm:$0xff]
      %v3572 = vunpack.c.l.b16 %v3508
      %v3573 = vunpack.c.h.b16 %v3508
      %v3574 = vunpack.c.l.b16 %v3509
      %v3575 = vunpack.c.h.b16 %v3509
      %v3576 = vunpack.c.l.b16 %v3510
      %v3577 = vunpack.c.h.b16 %v3510
      %v3578 = vunpack.c.l.b16 %v3511
      %v3579 = vunpack.c.h.b16 %v3511
      %v3580 = vunpack.c.l.b16 %v3512
      %v3581 = vunpack.c.h.b16 %v3512
      %v3582 = vunpack.c.l.b16 %v3513
      %v3583 = vunpack.c.h.b16 %v3513
      %v3584 = vunpack.c.l.b16 %v3514
      %v3585 = vunpack.c.h.b16 %v3514
      %v3586 = vunpack.c.l.b16 %v3515
      %v3587 = vunpack.c.h.b16 %v3515
      %v3588 = vunpack.c.l.b16 %v3516
      %v3589 = vunpack.c.h.b16 %v3516
      %v3590 = vunpack.c.l.b16 %v3517
      %v3591 = vunpack.c.h.b16 %v3517
      %v3592 = vunpack.c.l.b16 %v3518
      %v3593 = vunpack.c.h.b16 %v3518
      %v3594 = vunpack.c.l.b16 %v3519
      %v3595 = vunpack.c.h.b16 %v3519
      %v3596 = vunpack.c.l.b16 %v3520
      %v3597 = vunpack.c.h.b16 %v3520
      %v3598 = vunpack.c.l.b16 %v3521
      %v3599 = vunpack.c.h.b16 %v3521
      %v3600 = vunpack.c.l.b16 %v3522
      %v3601 = vunpack.c.h.b16 %v3522
      %v3602 = vunpack.c.l.b16 %v3523
      %v3603 = vunpack.c.h.b16 %v3523
      %v3604 = vunpack.c.l.b16 %v3524
      %v3605 = vunpack.c.h.b16 %v3524
      %v3606 = vunpack.c.l.b16 %v3525
      %v3607 = vunpack.c.h.b16 %v3525
      %v3608 = vunpack.c.l.b16 %v3526
      %v3609 = vunpack.c.h.b16 %v3526
      %v3610 = vunpack.c.l.b16 %v3527
      %v3611 = vunpack.c.h.b16 %v3527
      %v3612 = vunpack.c.l.b16 %v3528
      %v3613 = vunpack.c.h.b16 %v3528
      %v3614 = vunpack.c.l.b16 %v3529
      %v3615 = vunpack.c.h.b16 %v3529
      %v3616 = vunpack.c.l.b16 %v3530
      %v3617 = vunpack.c.h.b16 %v3530
      %v3618 = vunpack.c.l.b16 %v3531
      %v3619 = vunpack.c.h.b16 %v3531
      %v3620 = vunpack.c.l.b16 %v3532
      %v3621 = vunpack.c.h.b16 %v3532
      %v3622 = vunpack.c.l.b16 %v3533
      %v3623 = vunpack.c.h.b16 %v3533
      %v3624 = vunpack.c.l.b16 %v3534
      %v3625 = vunpack.c.h.b16 %v3534
      %v3626 = vunpack.c.l.b16 %v3535
      %v3627 = vunpack.c.h.b16 %v3535
      %v3628 = vunpack.c.l.b16 %v3536
      %v3629 = vunpack.c.h.b16 %v3536
      %v3630 = vunpack.c.l.b16 %v3537
      %v3631 = vunpack.c.h.b16 %v3537
      %v3632 = vunpack.c.l.b16 %v3538
      %v3633 = vunpack.c.h.b16 %v3538
      %v3634 = vunpack.c.l.b16 %v3539
      %v3635 = vunpack.c.h.b16 %v3539
      %v3636 = vpack.c.b16 %v3576, %v3572
      %v3637 = vpack.c.b16 %v3577, %v3573
      %v3638 = vpack.c.b16 %v3578, %v3574
      %v3639 = vpack.c.b16 %v3579, %v3575
      %v3640 = vpack.c.b16 %v3584, %v3580
      %v3641 = vpack.c.b16 %v3585, %v3581
      %v3642 = vpack.c.b16 %v3586, %v3582
      %v3643 = vpack.c.b16 %v3587, %v3583
      %v3644 = vpack.c.b16 %v3592, %v3588
      %v3645 = vpack.c.b16 %v3593, %v3589
      %v3646 = vpack.c.b16 %v3594, %v3590
      %v3647 = vpack.c.b16 %v3595, %v3591
      %v3648 = vpack.c.b16 %v3600, %v3596
      %v3649 = vpack.c.b16 %v3601, %v3597
      %v3650 = vpack.c.b16 %v3602, %v3598
      %v3651 = vpack.c.b16 %v3603, %v3599
      %v3652 = vpack.c.b16 %v3608, %v3604
      %v3653 = vpack.c.b16 %v3609, %v3605
      %v3654 = vpack.c.b16 %v3610, %v3606
      %v3655 = vpack.c.b16 %v3611, %v3607
      %v3656 = vpack.c.b16 %v3616, %v3612
      %v3657 = vpack.c.b16 %v3617, %v3613
      %v3658 = vpack.c.b16 %v3618, %v3614
      %v3659 = vpack.c.b16 %v3619, %v3615
      %v3660 = vpack.c.b16 %v3624, %v3620
      %v3661 = vpack.c.b16 %v3625, %v3621
      %v3662 = vpack.c.b16 %v3626, %v3622
      %v3663 = vpack.c.b16 %v3627, %v3623
      %v3664 = vpack.c.b16 %v3632, %v3628
      %v3665 = vpack.c.b16 %v3633, %v3629
      %v3666 = vpack.c.b16 %v3634, %v3630
      %v3667 = vpack.c.b16 %v3635, %v3631
      %3700 = vmatprep.subr.bf16.mxu0 %v3637
      %3701 = vmatpush1.bf16.msra.mxu0 %v3636
      %3702 = vmatprep.subr.bf16.mxu0 %v3641
      %3703 = vmatpush1.bf16.msra.mxu0 %v3640
      %3704 = vmatprep.subr.bf16.mxu0 %v3645
      %3705 = vmatpush1.bf16.msra.mxu0 %v3644
      %3706 = vmatprep.subr.bf16.mxu0 %v3649
      %3707 = vmatpush1.bf16.msra.mxu0 %v3648
      %3708 = vmatprep.subr.bf16.mxu0 %v3653
      %3709 = vmatpush1.bf16.msra.mxu0 %v3652
      %3710 = vmatprep.subr.bf16.mxu0 %v3657
      %3711 = vmatpush1.bf16.msra.mxu0 %v3656
      %3712 = vmatprep.subr.bf16.mxu0 %v3661
      %3713 = vmatpush1.bf16.msra.mxu0 %v3660
      %3714 = vmatprep.subr.bf16.mxu0 %v3665
      %3715 = vmatpush1.bf16.msra.mxu0 %v3664
      %3716 = vmatprep.subr.bf16.mxu0 0
      %3717 = vmatpush1.bf16.msra.mxu0 0
      %3718 = vmatprep.subr.bf16.mxu0 0
      %3719 = vmatpush1.bf16.msra.mxu0 0
      %3720 = vmatprep.subr.bf16.mxu0 0
      %3721 = vmatpush1.bf16.msra.mxu0 0
      %3722 = vmatprep.subr.bf16.mxu0 0
      %3723 = vmatpush1.bf16.msra.mxu0 0
      %3724 = vmatprep.subr.bf16.mxu0 0
      %3725 = vmatpush1.bf16.msra.mxu0 0
      %3726 = vmatprep.subr.bf16.mxu0 0
      %3727 = vmatpush1.bf16.msra.mxu0 0
      %3728 = vmatprep.subr.bf16.mxu0 0
      %3729 = vmatpush1.bf16.msra.mxu0 0
      %3730 = vmatprep.subr.bf16.mxu0 0
      %3731 = vmatpush1.bf16.msra.mxu0 0
      %3732 = vmatprep.mubr.bf16.mxu0 0
      %3733 = vmatmul.mubr.bf16.gmra.mrb[0].mxu0 %v3507
      %v3734 = vpop.f32.mrb[0].mxu0
      %v3735 = vadd.f32 0.0, %v3734
      %v3736 = vpop.f32.mrb[0].mxu0
      %v3737 = vadd.f32 0.0, %v3736
      %v3738 = vpop.f32.mrb[0].mxu0
      %v3739 = vpop.f32.mrb[0].mxu0
      %3740 = vdwg.mxu0
      %3741 = vmatprep.subr.bf16.mxu0 %v3639
      %3742 = vmatpush1.bf16.msra.mxu0 %v3638
      %3743 = vmatprep.subr.bf16.mxu0 %v3643
      %3744 = vmatpush1.bf16.msra.mxu0 %v3642
      %3745 = vmatprep.subr.bf16.mxu0 %v3647
      %3746 = vmatpush1.bf16.msra.mxu0 %v3646
      %3747 = vmatprep.subr.bf16.mxu0 %v3651
      %3748 = vmatpush1.bf16.msra.mxu0 %v3650
      %3749 = vmatprep.subr.bf16.mxu0 %v3655
      %3750 = vmatpush1.bf16.msra.mxu0 %v3654
      %3751 = vmatprep.subr.bf16.mxu0 %v3659
      %3752 = vmatpush1.bf16.msra.mxu0 %v3658
      %3753 = vmatprep.subr.bf16.mxu0 %v3663
      %3754 = vmatpush1.bf16.msra.mxu0 %v3662
      %3755 = vmatprep.subr.bf16.mxu0 %v3667
      %3756 = vmatpush1.bf16.msra.mxu0 %v3666
      %3757 = vmatprep.subr.bf16.mxu0 0
      %3758 = vmatpush1.bf16.msra.mxu0 0
      %3759 = vmatprep.subr.bf16.mxu0 0
      %3760 = vmatpush1.bf16.msra.mxu0 0
      %3761 = vmatprep.subr.bf16.mxu0 0
      %3762 = vmatpush1.bf16.msra.mxu0 0
      %3763 = vmatprep.subr.bf16.mxu0 0
      %3764 = vmatpush1.bf16.msra.mxu0 0
      %3765 = vmatprep.subr.bf16.mxu0 0
      %3766 = vmatpush1.bf16.msra.mxu0 0
      %3767 = vmatprep.subr.bf16.mxu0 0
      %3768 = vmatpush1.bf16.msra.mxu0 0
      %3769 = vmatprep.subr.bf16.mxu0 0
      %3770 = vmatpush1.bf16.msra.mxu0 0
      %3771 = vmatprep.subr.bf16.mxu0 0
      %3772 = vmatpush1.bf16.msra.mxu0 0
      %3773 = vmatprep.mubr.bf16.mxu0 0
      %3774 = vmatmul.mubr.bf16.gmra.mrb[0].mxu0 %v3507
      %v3775 = vpop.f32.mrb[0].mxu0
      %v3776 = vadd.f32 0.0, %v3775
      %v3777 = vpop.f32.mrb[0].mxu0
      %v3778 = vadd.f32 0.0, %v3777
      %v3779 = vpop.f32.mrb[0].mxu0
      %v3780 = vpop.f32.mrb[0].mxu0
      %3781 = vdwg.mxu0
      %v3786 = vcombine.low %v3735, %v3737
      %v3787 = vcombine.low %v3776, %v3778
      %v3789 = vunpack.c.l.s4 1983009808
      %v3790 = vunpack.c.0.s8 %v3789
      %v3791 = vlaneseq
      %v3792 = vshrl.u32 %v3791, 7
      %v3793 = vsub.s32 %v3790, %v3792
      %v3794 = vrot.slane %v3786, %v3793
      %v3796 = vunpack.c.l.s4 1983009808
      %v3797 = vunpack.c.0.s8 %v3796
      %v3798 = vlaneseq
      %v3799 = vshrl.u32 %v3798, 7
      %v3800 = vsub.s32 %v3797, %v3799
      %v3801 = vrot.slane %v3787, %v3800
      %v3802 = vcombine.low %v3794, %v3801
      %v3804 = vadd.f32 %v3506, %v3802
      %v3805 = vxor.u32 %v3804, 2147483648
      %v3806 = vmul.f32 %v3805, 1.442695
      %v3807 = vpow.pop %v3806
      %v3808 = vadd.f32 %v3807, 1.0
      %v3809 = vrcp.pop %v3808
      %v3810 = vmul.f32 1.0, %v3809
      %v3812 = vrot.slane %v3804, 2
      %v3814 = vxor.u32 %v3812, 2147483648
      %v3815 = vmul.f32 %v3814, 1.442695
      %v3816 = vpow.pop %v3815
      %v3817 = vadd.f32 %v3816, 1.0
      %v3818 = vrcp.pop %v3817
      %v3819 = vmul.f32 1.0, %v3818
      %v3820 = vrot.slane %v3804, 4
      %v3822 = vtanh.pop %v3820
      %v3823 = vrot.slane %v3804, 6
      %v3825 = vxor.u32 %v3823, 2147483648
      %v3826 = vmul.f32 %v3825, 1.442695
      %v3827 = vpow.pop %v3826
      %v3828 = vadd.f32 %v3827, 1.0
      %v3829 = vrcp.pop %v3828
      %v3830 = vmul.f32 1.0, %v3829
      %v3831 = vmul.f32 %v3819, %v3167
      %v3832 = vmul.f32 %v3810, %v3822
      %v3833 = vadd.f32 %v3831, %v3832
      %v3834 = vtanh.pop %v3833
      %v3835 = vmul.f32 %v3830, %v3834
      %s3836 = scalar_lea.vmem %s161, 80
      %v3837 = vld [vmem:[%s3836] sm:$0xff]
      %v3838 = vpack.c.bf16 %v3500, %v3500
      %v3839 = vld [vmem:[%s509] sm:$0xff]
      %v3840 = vld [vmem:[%s509 + $0x8] sm:$0xff]
      %v3841 = vld [vmem:[%s509 + $0x10] sm:$0xff]
      %v3842 = vld [vmem:[%s509 + $0x18] sm:$0xff]
      %v3843 = vld [vmem:[%s509 + $0x20] sm:$0xff]
      %v3844 = vld [vmem:[%s509 + $0x28] sm:$0xff]
      %v3845 = vld [vmem:[%s509 + $0x30] sm:$0xff]
      %v3846 = vld [vmem:[%s509 + $0x38] sm:$0xff]
      %v3847 = vld [vmem:[%s509 + $0x40] sm:$0xff]
      %v3848 = vld [vmem:[%s509 + $0x48] sm:$0xff]
      %v3849 = vld [vmem:[%s509 + $0x50] sm:$0xff]
      %v3850 = vld [vmem:[%s509 + $0x58] sm:$0xff]
      %v3851 = vld [vmem:[%s509 + $0x60] sm:$0xff]
      %v3852 = vld [vmem:[%s509 + $0x68] sm:$0xff]
      %v3853 = vld [vmem:[%s509 + $0x70] sm:$0xff]
      %v3854 = vld [vmem:[%s509 + $0x78] sm:$0xff]
      %v3855 = vld [vmem:[%s509 + $0x80] sm:$0xff]
      %v3856 = vld [vmem:[%s509 + $0x88] sm:$0xff]
      %v3857 = vld [vmem:[%s509 + $0x90] sm:$0xff]
      %v3858 = vld [vmem:[%s509 + $0x98] sm:$0xff]
      %v3859 = vld [vmem:[%s509 + $0xa0] sm:$0xff]
      %v3860 = vld [vmem:[%s509 + $0xa8] sm:$0xff]
      %v3861 = vld [vmem:[%s509 + $0xb0] sm:$0xff]
      %v3862 = vld [vmem:[%s509 + $0xb8] sm:$0xff]
      %v3863 = vld [vmem:[%s509 + $0xc0] sm:$0xff]
      %v3864 = vld [vmem:[%s509 + $0xc8] sm:$0xff]
      %v3865 = vld [vmem:[%s509 + $0xd0] sm:$0xff]
      %v3866 = vld [vmem:[%s509 + $0xd8] sm:$0xff]
      %v3867 = vld [vmem:[%s509 + $0xe0] sm:$0xff]
      %v3868 = vld [vmem:[%s509 + $0xe8] sm:$0xff]
      %v3869 = vld [vmem:[%s509 + $0xf0] sm:$0xff]
      %v3870 = vld [vmem:[%s509 + $0xf8] sm:$0xff]
      %v3903 = vunpack.c.l.b16 %v3839
      %v3904 = vunpack.c.h.b16 %v3839
      %v3905 = vunpack.c.l.b16 %v3840
      %v3906 = vunpack.c.h.b16 %v3840
      %v3907 = vunpack.c.l.b16 %v3841
      %v3908 = vunpack.c.h.b16 %v3841
      %v3909 = vunpack.c.l.b16 %v3842
      %v3910 = vunpack.c.h.b16 %v3842
      %v3911 = vunpack.c.l.b16 %v3843
      %v3912 = vunpack.c.h.b16 %v3843
      %v3913 = vunpack.c.l.b16 %v3844
      %v3914 = vunpack.c.h.b16 %v3844
      %v3915 = vunpack.c.l.b16 %v3845
      %v3916 = vunpack.c.h.b16 %v3845
      %v3917 = vunpack.c.l.b16 %v3846
      %v3918 = vunpack.c.h.b16 %v3846
      %v3919 = vunpack.c.l.b16 %v3847
      %v3920 = vunpack.c.h.b16 %v3847
      %v3921 = vunpack.c.l.b16 %v3848
      %v3922 = vunpack.c.h.b16 %v3848
      %v3923 = vunpack.c.l.b16 %v3849
      %v3924 = vunpack.c.h.b16 %v3849
      %v3925 = vunpack.c.l.b16 %v3850
      %v3926 = vunpack.c.h.b16 %v3850
      %v3927 = vunpack.c.l.b16 %v3851
      %v3928 = vunpack.c.h.b16 %v3851
      %v3929 = vunpack.c.l.b16 %v3852
      %v3930 = vunpack.c.h.b16 %v3852
      %v3931 = vunpack.c.l.b16 %v3853
      %v3932 = vunpack.c.h.b16 %v3853
      %v3933 = vunpack.c.l.b16 %v3854
      %v3934 = vunpack.c.h.b16 %v3854
      %v3935 = vunpack.c.l.b16 %v3855
      %v3936 = vunpack.c.h.b16 %v3855
      %v3937 = vunpack.c.l.b16 %v3856
      %v3938 = vunpack.c.h.b16 %v3856
      %v3939 = vunpack.c.l.b16 %v3857
      %v3940 = vunpack.c.h.b16 %v3857
      %v3941 = vunpack.c.l.b16 %v3858
      %v3942 = vunpack.c.h.b16 %v3858
      %v3943 = vunpack.c.l.b16 %v3859
      %v3944 = vunpack.c.h.b16 %v3859
      %v3945 = vunpack.c.l.b16 %v3860
      %v3946 = vunpack.c.h.b16 %v3860
      %v3947 = vunpack.c.l.b16 %v3861
      %v3948 = vunpack.c.h.b16 %v3861
      %v3949 = vunpack.c.l.b16 %v3862
      %v3950 = vunpack.c.h.b16 %v3862
      %v3951 = vunpack.c.l.b16 %v3863
      %v3952 = vunpack.c.h.b16 %v3863
      %v3953 = vunpack.c.l.b16 %v3864
      %v3954 = vunpack.c.h.b16 %v3864
      %v3955 = vunpack.c.l.b16 %v3865
      %v3956 = vunpack.c.h.b16 %v3865
      %v3957 = vunpack.c.l.b16 %v3866
      %v3958 = vunpack.c.h.b16 %v3866
      %v3959 = vunpack.c.l.b16 %v3867
      %v3960 = vunpack.c.h.b16 %v3867
      %v3961 = vunpack.c.l.b16 %v3868
      %v3962 = vunpack.c.h.b16 %v3868
      %v3963 = vunpack.c.l.b16 %v3869
      %v3964 = vunpack.c.h.b16 %v3869
      %v3965 = vunpack.c.l.b16 %v3870
      %v3966 = vunpack.c.h.b16 %v3870
      %v3967 = vpack.c.b16 %v3907, %v3903
      %v3968 = vpack.c.b16 %v3908, %v3904
      %v3969 = vpack.c.b16 %v3909, %v3905
      %v3970 = vpack.c.b16 %v3910, %v3906
      %v3971 = vpack.c.b16 %v3915, %v3911
      %v3972 = vpack.c.b16 %v3916, %v3912
      %v3973 = vpack.c.b16 %v3917, %v3913
      %v3974 = vpack.c.b16 %v3918, %v3914
      %v3975 = vpack.c.b16 %v3923, %v3919
      %v3976 = vpack.c.b16 %v3924, %v3920
      %v3977 = vpack.c.b16 %v3925, %v3921
      %v3978 = vpack.c.b16 %v3926, %v3922
      %v3979 = vpack.c.b16 %v3931, %v3927
      %v3980 = vpack.c.b16 %v3932, %v3928
      %v3981 = vpack.c.b16 %v3933, %v3929
      %v3982 = vpack.c.b16 %v3934, %v3930
      %v3983 = vpack.c.b16 %v3939, %v3935
      %v3984 = vpack.c.b16 %v3940, %v3936
      %v3985 = vpack.c.b16 %v3941, %v3937
      %v3986 = vpack.c.b16 %v3942, %v3938
      %v3987 = vpack.c.b16 %v3947, %v3943
      %v3988 = vpack.c.b16 %v3948, %v3944
      %v3989 = vpack.c.b16 %v3949, %v3945
      %v3990 = vpack.c.b16 %v3950, %v3946
      %v3991 = vpack.c.b16 %v3955, %v3951
      %v3992 = vpack.c.b16 %v3956, %v3952
      %v3993 = vpack.c.b16 %v3957, %v3953
      %v3994 = vpack.c.b16 %v3958, %v3954
      %v3995 = vpack.c.b16 %v3963, %v3959
      %v3996 = vpack.c.b16 %v3964, %v3960
      %v3997 = vpack.c.b16 %v3965, %v3961
      %v3998 = vpack.c.b16 %v3966, %v3962
      %4031 = vmatprep.subr.bf16.mxu0 %v3968
      %4032 = vmatpush1.bf16.msra.mxu0 %v3967
      %4033 = vmatprep.subr.bf16.mxu0 %v3972
      %4034 = vmatpush1.bf16.msra.mxu0 %v3971
      %4035 = vmatprep.subr.bf16.mxu0 %v3976
      %4036 = vmatpush1.bf16.msra.mxu0 %v3975
      %4037 = vmatprep.subr.bf16.mxu0 %v3980
      %4038 = vmatpush1.bf16.msra.mxu0 %v3979
      %4039 = vmatprep.subr.bf16.mxu0 %v3984
      %4040 = vmatpush1.bf16.msra.mxu0 %v3983
      %4041 = vmatprep.subr.bf16.mxu0 %v3988
      %4042 = vmatpush1.bf16.msra.mxu0 %v3987
      %4043 = vmatprep.subr.bf16.mxu0 %v3992
      %4044 = vmatpush1.bf16.msra.mxu0 %v3991
      %4045 = vmatprep.subr.bf16.mxu0 %v3996
      %4046 = vmatpush1.bf16.msra.mxu0 %v3995
      %4047 = vmatprep.subr.bf16.mxu0 0
      %4048 = vmatpush1.bf16.msra.mxu0 0
      %4049 = vmatprep.subr.bf16.mxu0 0
      %4050 = vmatpush1.bf16.msra.mxu0 0
      %4051 = vmatprep.subr.bf16.mxu0 0
      %4052 = vmatpush1.bf16.msra.mxu0 0
      %4053 = vmatprep.subr.bf16.mxu0 0
      %4054 = vmatpush1.bf16.msra.mxu0 0
      %4055 = vmatprep.subr.bf16.mxu0 0
      %4056 = vmatpush1.bf16.msra.mxu0 0
      %4057 = vmatprep.subr.bf16.mxu0 0
      %4058 = vmatpush1.bf16.msra.mxu0 0
      %4059 = vmatprep.subr.bf16.mxu0 0
      %4060 = vmatpush1.bf16.msra.mxu0 0
      %4061 = vmatprep.subr.bf16.mxu0 0
      %4062 = vmatpush1.bf16.msra.mxu0 0
      %4063 = vmatprep.mubr.bf16.mxu0 0
      %4064 = vmatmul.mubr.bf16.gmra.mrb[0].mxu0 %v3838
      %v4065 = vpop.f32.mrb[0].mxu0
      %v4066 = vadd.f32 0.0, %v4065
      %v4067 = vpop.f32.mrb[0].mxu0
      %v4068 = vadd.f32 0.0, %v4067
      %v4069 = vpop.f32.mrb[0].mxu0
      %v4070 = vpop.f32.mrb[0].mxu0
      %4071 = vdwg.mxu0
      %4072 = vmatprep.subr.bf16.mxu0 %v3970
      %4073 = vmatpush1.bf16.msra.mxu0 %v3969
      %4074 = vmatprep.subr.bf16.mxu0 %v3974
      %4075 = vmatpush1.bf16.msra.mxu0 %v3973
      %4076 = vmatprep.subr.bf16.mxu0 %v3978
      %4077 = vmatpush1.bf16.msra.mxu0 %v3977
      %4078 = vmatprep.subr.bf16.mxu0 %v3982
      %4079 = vmatpush1.bf16.msra.mxu0 %v3981
      %4080 = vmatprep.subr.bf16.mxu0 %v3986
      %4081 = vmatpush1.bf16.msra.mxu0 %v3985
      %4082 = vmatprep.subr.bf16.mxu0 %v3990
      %4083 = vmatpush1.bf16.msra.mxu0 %v3989
      %4084 = vmatprep.subr.bf16.mxu0 %v3994
      %4085 = vmatpush1.bf16.msra.mxu0 %v3993
      %4086 = vmatprep.subr.bf16.mxu0 %v3998
      %4087 = vmatpush1.bf16.msra.mxu0 %v3997
      %4088 = vmatprep.subr.bf16.mxu0 0
      %4089 = vmatpush1.bf16.msra.mxu0 0
      %4090 = vmatprep.subr.bf16.mxu0 0
      %4091 = vmatpush1.bf16.msra.mxu0 0
      %4092 = vmatprep.subr.bf16.mxu0 0
      %4093 = vmatpush1.bf16.msra.mxu0 0
      %4094 = vmatprep.subr.bf16.mxu0 0
      %4095 = vmatpush1.bf16.msra.mxu0 0
      %4096 = vmatprep.subr.bf16.mxu0 0
      %4097 = vmatpush1.bf16.msra.mxu0 0
      %4098 = vmatprep.subr.bf16.mxu0 0
      %4099 = vmatpush1.bf16.msra.mxu0 0
      %4100 = vmatprep.subr.bf16.mxu0 0
      %4101 = vmatpush1.bf16.msra.mxu0 0
      %4102 = vmatprep.subr.bf16.mxu0 0
      %4103 = vmatpush1.bf16.msra.mxu0 0
      %4104 = vmatprep.mubr.bf16.mxu0 0
      %4105 = vmatmul.mubr.bf16.gmra.mrb[0].mxu0 %v3838
      %v4106 = vpop.f32.mrb[0].mxu0
      %v4107 = vadd.f32 0.0, %v4106
      %v4108 = vpop.f32.mrb[0].mxu0
      %v4109 = vadd.f32 0.0, %v4108
      %v4110 = vpop.f32.mrb[0].mxu0
      %v4111 = vpop.f32.mrb[0].mxu0
      %4112 = vdwg.mxu0
      %v4117 = vcombine.low %v4066, %v4068
      %v4118 = vcombine.low %v4107, %v4109
      %v4120 = vunpack.c.l.s4 1983009808
      %v4121 = vunpack.c.0.s8 %v4120
      %v4122 = vlaneseq
      %v4123 = vshrl.u32 %v4122, 7
      %v4124 = vsub.s32 %v4121, %v4123
      %v4125 = vrot.slane %v4117, %v4124
      %v4127 = vunpack.c.l.s4 1983009808
      %v4128 = vunpack.c.0.s8 %v4127
      %v4129 = vlaneseq
      %v4130 = vshrl.u32 %v4129, 7
      %v4131 = vsub.s32 %v4128, %v4130
      %v4132 = vrot.slane %v4118, %v4131
      %v4133 = vcombine.low %v4125, %v4132
      %v4135 = vadd.f32 %v3837, %v4133
      %v4136 = vxor.u32 %v4135, 2147483648
      %v4137 = vmul.f32 %v4136, 1.442695
      %v4138 = vpow.pop %v4137
      %v4139 = vadd.f32 %v4138, 1.0
      %v4140 = vrcp.pop %v4139
      %v4141 = vmul.f32 1.0, %v4140
      %v4143 = vrot.slane %v4135, 2
      %v4145 = vxor.u32 %v4143, 2147483648
      %v4146 = vmul.f32 %v4145, 1.442695
      %v4147 = vpow.pop %v4146
      %v4148 = vadd.f32 %v4147, 1.0
      %v4149 = vrcp.pop %v4148
      %v4150 = vmul.f32 1.0, %v4149
      %v4151 = vrot.slane %v4135, 4
      %v4153 = vtanh.pop %v4151
      %v4154 = vrot.slane %v4135, 6
      %v4156 = vxor.u32 %v4154, 2147483648
      %v4157 = vmul.f32 %v4156, 1.442695
      %v4158 = vpow.pop %v4157
      %v4159 = vadd.f32 %v4158, 1.0
      %v4160 = vrcp.pop %v4159
      %v4161 = vmul.f32 1.0, %v4160
      %v4162 = vmul.f32 %v4150, %v3498
      %v4163 = vmul.f32 %v4141, %v4153
      %v4164 = vadd.f32 %v4162, %v4163
      %v4165 = vtanh.pop %v4164
      %v4166 = vmul.f32 %v4161, %v4165
      %s4167 = scalar_lea.vmem %s175, 10
      %4168 = vst [vmem:[%s4167] sm:$0x3] %v3835
      %s4169 = scalar_lea.vmem %s175, 26
      %4170 = vst [vmem:[%s4169] sm:$0x3] %v4166
      %s4171 = scalar_lea.vmem %s161, 48
      %v4172 = vld [vmem:[%s4171] sm:$0xff]
      %v4173 = vpack.c.bf16 %v3835, %v3835
      %v4174 = vld [vmem:[%s168] sm:$0xff]
      %v4175 = vld [vmem:[%s168 + $0x8] sm:$0xff]
      %v4176 = vld [vmem:[%s168 + $0x10] sm:$0xff]
      %v4177 = vld [vmem:[%s168 + $0x18] sm:$0xff]
      %v4178 = vld [vmem:[%s168 + $0x20] sm:$0xff]
      %v4179 = vld [vmem:[%s168 + $0x28] sm:$0xff]
      %v4180 = vld [vmem:[%s168 + $0x30] sm:$0xff]
      %v4181 = vld [vmem:[%s168 + $0x38] sm:$0xff]
      %v4182 = vld [vmem:[%s168 + $0x40] sm:$0xff]
      %v4183 = vld [vmem:[%s168 + $0x48] sm:$0xff]
      %v4184 = vld [vmem:[%s168 + $0x50] sm:$0xff]
      %v4185 = vld [vmem:[%s168 + $0x58] sm:$0xff]
      %v4186 = vld [vmem:[%s168 + $0x60] sm:$0xff]
      %v4187 = vld [vmem:[%s168 + $0x68] sm:$0xff]
      %v4188 = vld [vmem:[%s168 + $0x70] sm:$0xff]
      %v4189 = vld [vmem:[%s168 + $0x78] sm:$0xff]
      %v4190 = vld [vmem:[%s168 + $0x80] sm:$0xff]
      %v4191 = vld [vmem:[%s168 + $0x88] sm:$0xff]
      %v4192 = vld [vmem:[%s168 + $0x90] sm:$0xff]
      %v4193 = vld [vmem:[%s168 + $0x98] sm:$0xff]
      %v4194 = vld [vmem:[%s168 + $0xa0] sm:$0xff]
      %v4195 = vld [vmem:[%s168 + $0xa8] sm:$0xff]
      %v4196 = vld [vmem:[%s168 + $0xb0] sm:$0xff]
      %v4197 = vld [vmem:[%s168 + $0xb8] sm:$0xff]
      %v4198 = vld [vmem:[%s168 + $0xc0] sm:$0xff]
      %v4199 = vld [vmem:[%s168 + $0xc8] sm:$0xff]
      %v4200 = vld [vmem:[%s168 + $0xd0] sm:$0xff]
      %v4201 = vld [vmem:[%s168 + $0xd8] sm:$0xff]
      %v4202 = vld [vmem:[%s168 + $0xe0] sm:$0xff]
      %v4203 = vld [vmem:[%s168 + $0xe8] sm:$0xff]
      %v4204 = vld [vmem:[%s168 + $0xf0] sm:$0xff]
      %v4205 = vld [vmem:[%s168 + $0xf8] sm:$0xff]
      %v4238 = vunpack.c.l.b16 %v4174
      %v4239 = vunpack.c.h.b16 %v4174
      %v4240 = vunpack.c.l.b16 %v4175
      %v4241 = vunpack.c.h.b16 %v4175
      %v4242 = vunpack.c.l.b16 %v4176
      %v4243 = vunpack.c.h.b16 %v4176
      %v4244 = vunpack.c.l.b16 %v4177
      %v4245 = vunpack.c.h.b16 %v4177
      %v4246 = vunpack.c.l.b16 %v4178
      %v4247 = vunpack.c.h.b16 %v4178
      %v4248 = vunpack.c.l.b16 %v4179
      %v4249 = vunpack.c.h.b16 %v4179
      %v4250 = vunpack.c.l.b16 %v4180
      %v4251 = vunpack.c.h.b16 %v4180
      %v4252 = vunpack.c.l.b16 %v4181
      %v4253 = vunpack.c.h.b16 %v4181
      %v4254 = vunpack.c.l.b16 %v4182
      %v4255 = vunpack.c.h.b16 %v4182
      %v4256 = vunpack.c.l.b16 %v4183
      %v4257 = vunpack.c.h.b16 %v4183
      %v4258 = vunpack.c.l.b16 %v4184
      %v4259 = vunpack.c.h.b16 %v4184
      %v4260 = vunpack.c.l.b16 %v4185
      %v4261 = vunpack.c.h.b16 %v4185
      %v4262 = vunpack.c.l.b16 %v4186
      %v4263 = vunpack.c.h.b16 %v4186
      %v4264 = vunpack.c.l.b16 %v4187
      %v4265 = vunpack.c.h.b16 %v4187
      %v4266 = vunpack.c.l.b16 %v4188
      %v4267 = vunpack.c.h.b16 %v4188
      %v4268 = vunpack.c.l.b16 %v4189
      %v4269 = vunpack.c.h.b16 %v4189
      %v4270 = vunpack.c.l.b16 %v4190
      %v4271 = vunpack.c.h.b16 %v4190
      %v4272 = vunpack.c.l.b16 %v4191
      %v4273 = vunpack.c.h.b16 %v4191
      %v4274 = vunpack.c.l.b16 %v4192
      %v4275 = vunpack.c.h.b16 %v4192
      %v4276 = vunpack.c.l.b16 %v4193
      %v4277 = vunpack.c.h.b16 %v4193
      %v4278 = vunpack.c.l.b16 %v4194
      %v4279 = vunpack.c.h.b16 %v4194
      %v4280 = vunpack.c.l.b16 %v4195
      %v4281 = vunpack.c.h.b16 %v4195
      %v4282 = vunpack.c.l.b16 %v4196
      %v4283 = vunpack.c.h.b16 %v4196
      %v4284 = vunpack.c.l.b16 %v4197
      %v4285 = vunpack.c.h.b16 %v4197
      %v4286 = vunpack.c.l.b16 %v4198
      %v4287 = vunpack.c.h.b16 %v4198
      %v4288 = vunpack.c.l.b16 %v4199
      %v4289 = vunpack.c.h.b16 %v4199
      %v4290 = vunpack.c.l.b16 %v4200
      %v4291 = vunpack.c.h.b16 %v4200
      %v4292 = vunpack.c.l.b16 %v4201
      %v4293 = vunpack.c.h.b16 %v4201
      %v4294 = vunpack.c.l.b16 %v4202
      %v4295 = vunpack.c.h.b16 %v4202
      %v4296 = vunpack.c.l.b16 %v4203
      %v4297 = vunpack.c.h.b16 %v4203
      %v4298 = vunpack.c.l.b16 %v4204
      %v4299 = vunpack.c.h.b16 %v4204
      %v4300 = vunpack.c.l.b16 %v4205
      %v4301 = vunpack.c.h.b16 %v4205
      %v4302 = vpack.c.b16 %v4242, %v4238
      %v4303 = vpack.c.b16 %v4243, %v4239
      %v4304 = vpack.c.b16 %v4244, %v4240
      %v4305 = vpack.c.b16 %v4245, %v4241
      %v4306 = vpack.c.b16 %v4250, %v4246
      %v4307 = vpack.c.b16 %v4251, %v4247
      %v4308 = vpack.c.b16 %v4252, %v4248
      %v4309 = vpack.c.b16 %v4253, %v4249
      %v4310 = vpack.c.b16 %v4258, %v4254
      %v4311 = vpack.c.b16 %v4259, %v4255
      %v4312 = vpack.c.b16 %v4260, %v4256
      %v4313 = vpack.c.b16 %v4261, %v4257
      %v4314 = vpack.c.b16 %v4266, %v4262
      %v4315 = vpack.c.b16 %v4267, %v4263
      %v4316 = vpack.c.b16 %v4268, %v4264
      %v4317 = vpack.c.b16 %v4269, %v4265
      %v4318 = vpack.c.b16 %v4274, %v4270
      %v4319 = vpack.c.b16 %v4275, %v4271
      %v4320 = vpack.c.b16 %v4276, %v4272
      %v4321 = vpack.c.b16 %v4277, %v4273
      %v4322 = vpack.c.b16 %v4282, %v4278
      %v4323 = vpack.c.b16 %v4283, %v4279
      %v4324 = vpack.c.b16 %v4284, %v4280
      %v4325 = vpack.c.b16 %v4285, %v4281
      %v4326 = vpack.c.b16 %v4290, %v4286
      %v4327 = vpack.c.b16 %v4291, %v4287
      %v4328 = vpack.c.b16 %v4292, %v4288
      %v4329 = vpack.c.b16 %v4293, %v4289
      %v4330 = vpack.c.b16 %v4298, %v4294
      %v4331 = vpack.c.b16 %v4299, %v4295
      %v4332 = vpack.c.b16 %v4300, %v4296
      %v4333 = vpack.c.b16 %v4301, %v4297
      %4366 = vmatprep.subr.bf16.mxu0 %v4303
      %4367 = vmatpush1.bf16.msra.mxu0 %v4302
      %4368 = vmatprep.subr.bf16.mxu0 %v4307
      %4369 = vmatpush1.bf16.msra.mxu0 %v4306
      %4370 = vmatprep.subr.bf16.mxu0 %v4311
      %4371 = vmatpush1.bf16.msra.mxu0 %v4310
      %4372 = vmatprep.subr.bf16.mxu0 %v4315
      %4373 = vmatpush1.bf16.msra.mxu0 %v4314
      %4374 = vmatprep.subr.bf16.mxu0 %v4319
      %4375 = vmatpush1.bf16.msra.mxu0 %v4318
      %4376 = vmatprep.subr.bf16.mxu0 %v4323
      %4377 = vmatpush1.bf16.msra.mxu0 %v4322
      %4378 = vmatprep.subr.bf16.mxu0 %v4327
      %4379 = vmatpush1.bf16.msra.mxu0 %v4326
      %4380 = vmatprep.subr.bf16.mxu0 %v4331
      %4381 = vmatpush1.bf16.msra.mxu0 %v4330
      %4382 = vmatprep.subr.bf16.mxu0 0
      %4383 = vmatpush1.bf16.msra.mxu0 0
      %4384 = vmatprep.subr.bf16.mxu0 0
      %4385 = vmatpush1.bf16.msra.mxu0 0
      %4386 = vmatprep.subr.bf16.mxu0 0
      %4387 = vmatpush1.bf16.msra.mxu0 0
      %4388 = vmatprep.subr.bf16.mxu0 0
      %4389 = vmatpush1.bf16.msra.mxu0 0
      %4390 = vmatprep.subr.bf16.mxu0 0
      %4391 = vmatpush1.bf16.msra.mxu0 0
      %4392 = vmatprep.subr.bf16.mxu0 0
      %4393 = vmatpush1.bf16.msra.mxu0 0
      %4394 = vmatprep.subr.bf16.mxu0 0
      %4395 = vmatpush1.bf16.msra.mxu0 0
      %4396 = vmatprep.subr.bf16.mxu0 0
      %4397 = vmatpush1.bf16.msra.mxu0 0
      %4398 = vmatprep.mubr.bf16.mxu0 0
      %4399 = vmatmul.mubr.bf16.gmra.mrb[0].mxu0 %v4173
      %v4400 = vpop.f32.mrb[0].mxu0
      %v4401 = vadd.f32 0.0, %v4400
      %v4402 = vpop.f32.mrb[0].mxu0
      %v4403 = vadd.f32 0.0, %v4402
      %v4404 = vpop.f32.mrb[0].mxu0
      %v4405 = vpop.f32.mrb[0].mxu0
      %4406 = vdwg.mxu0
      %4407 = vmatprep.subr.bf16.mxu0 %v4305
      %4408 = vmatpush1.bf16.msra.mxu0 %v4304
      %4409 = vmatprep.subr.bf16.mxu0 %v4309
      %4410 = vmatpush1.bf16.msra.mxu0 %v4308
      %4411 = vmatprep.subr.bf16.mxu0 %v4313
      %4412 = vmatpush1.bf16.msra.mxu0 %v4312
      %4413 = vmatprep.subr.bf16.mxu0 %v4317
      %4414 = vmatpush1.bf16.msra.mxu0 %v4316
      %4415 = vmatprep.subr.bf16.mxu0 %v4321
      %4416 = vmatpush1.bf16.msra.mxu0 %v4320
      %4417 = vmatprep.subr.bf16.mxu0 %v4325
      %4418 = vmatpush1.bf16.msra.mxu0 %v4324
      %4419 = vmatprep.subr.bf16.mxu0 %v4329
      %4420 = vmatpush1.bf16.msra.mxu0 %v4328
      %4421 = vmatprep.subr.bf16.mxu0 %v4333
      %4422 = vmatpush1.bf16.msra.mxu0 %v4332
      %4423 = vmatprep.subr.bf16.mxu0 0
      %4424 = vmatpush1.bf16.msra.mxu0 0
      %4425 = vmatprep.subr.bf16.mxu0 0
      %4426 = vmatpush1.bf16.msra.mxu0 0
      %4427 = vmatprep.subr.bf16.mxu0 0
      %4428 = vmatpush1.bf16.msra.mxu0 0
      %4429 = vmatprep.subr.bf16.mxu0 0
      %4430 = vmatpush1.bf16.msra.mxu0 0
      %4431 = vmatprep.subr.bf16.mxu0 0
      %4432 = vmatpush1.bf16.msra.mxu0 0
      %4433 = vmatprep.subr.bf16.mxu0 0
      %4434 = vmatpush1.bf16.msra.mxu0 0
      %4435 = vmatprep.subr.bf16.mxu0 0
      %4436 = vmatpush1.bf16.msra.mxu0 0
      %4437 = vmatprep.subr.bf16.mxu0 0
      %4438 = vmatpush1.bf16.msra.mxu0 0
      %4439 = vmatprep.mubr.bf16.mxu0 0
      %4440 = vmatmul.mubr.bf16.gmra.mrb[0].mxu0 %v4173
      %v4441 = vpop.f32.mrb[0].mxu0
      %v4442 = vadd.f32 0.0, %v4441
      %v4443 = vpop.f32.mrb[0].mxu0
      %v4444 = vadd.f32 0.0, %v4443
      %v4445 = vpop.f32.mrb[0].mxu0
      %v4446 = vpop.f32.mrb[0].mxu0
      %4447 = vdwg.mxu0
      %v4452 = vcombine.low %v4401, %v4403
      %v4453 = vcombine.low %v4442, %v4444
      %v4455 = vunpack.c.l.s4 1983009808
      %v4456 = vunpack.c.0.s8 %v4455
      %v4457 = vlaneseq
      %v4458 = vshrl.u32 %v4457, 7
      %v4459 = vsub.s32 %v4456, %v4458
      %v4460 = vrot.slane %v4452, %v4459
      %v4462 = vunpack.c.l.s4 1983009808
      %v4463 = vunpack.c.0.s8 %v4462
      %v4464 = vlaneseq
      %v4465 = vshrl.u32 %v4464, 7
      %v4466 = vsub.s32 %v4463, %v4465
      %v4467 = vrot.slane %v4453, %v4466
      %v4468 = vcombine.low %v4460, %v4467
      %v4470 = vadd.f32 %v4172, %v4468
      %v4471 = vxor.u32 %v4470, 2147483648
      %v4472 = vmul.f32 %v4471, 1.442695
      %v4473 = vpow.pop %v4472
      %v4474 = vadd.f32 %v4473, 1.0
      %v4475 = vrcp.pop %v4474
      %v4476 = vmul.f32 1.0, %v4475
      %v4478 = vrot.slane %v4470, 2
      %v4480 = vxor.u32 %v4478, 2147483648
      %v4481 = vmul.f32 %v4480, 1.442695
      %v4482 = vpow.pop %v4481
      %v4483 = vadd.f32 %v4482, 1.0
      %v4484 = vrcp.pop %v4483
      %v4485 = vmul.f32 1.0, %v4484
      %v4486 = vrot.slane %v4470, 4
      %v4488 = vtanh.pop %v4486
      %v4489 = vrot.slane %v4470, 6
      %v4491 = vxor.u32 %v4489, 2147483648
      %v4492 = vmul.f32 %v4491, 1.442695
      %v4493 = vpow.pop %v4492
      %v4494 = vadd.f32 %v4493, 1.0
      %v4495 = vrcp.pop %v4494
      %v4496 = vmul.f32 1.0, %v4495
      %v4497 = vmul.f32 %v4485, %v3833
      %v4498 = vmul.f32 %v4476, %v4488
      %v4499 = vadd.f32 %v4497, %v4498
      %v4500 = vtanh.pop %v4499
      %v4501 = vmul.f32 %v4496, %v4500
      %s4502 = scalar_lea.vmem %s161, 72
      %v4503 = vld [vmem:[%s4502] sm:$0xff]
      %v4504 = vpack.c.bf16 %v4166, %v4166
      %v4505 = vld [vmem:[%s509] sm:$0xff]
      %v4506 = vld [vmem:[%s509 + $0x8] sm:$0xff]
      %v4507 = vld [vmem:[%s509 + $0x10] sm:$0xff]
      %v4508 = vld [vmem:[%s509 + $0x18] sm:$0xff]
      %v4509 = vld [vmem:[%s509 + $0x20] sm:$0xff]
      %v4510 = vld [vmem:[%s509 + $0x28] sm:$0xff]
      %v4511 = vld [vmem:[%s509 + $0x30] sm:$0xff]
      %v4512 = vld [vmem:[%s509 + $0x38] sm:$0xff]
      %v4513 = vld [vmem:[%s509 + $0x40] sm:$0xff]
      %v4514 = vld [vmem:[%s509 + $0x48] sm:$0xff]
      %v4515 = vld [vmem:[%s509 + $0x50] sm:$0xff]
      %v4516 = vld [vmem:[%s509 + $0x58] sm:$0xff]
      %v4517 = vld [vmem:[%s509 + $0x60] sm:$0xff]
      %v4518 = vld [vmem:[%s509 + $0x68] sm:$0xff]
      %v4519 = vld [vmem:[%s509 + $0x70] sm:$0xff]
      %v4520 = vld [vmem:[%s509 + $0x78] sm:$0xff]
      %v4521 = vld [vmem:[%s509 + $0x80] sm:$0xff]
      %v4522 = vld [vmem:[%s509 + $0x88] sm:$0xff]
      %v4523 = vld [vmem:[%s509 + $0x90] sm:$0xff]
      %v4524 = vld [vmem:[%s509 + $0x98] sm:$0xff]
      %v4525 = vld [vmem:[%s509 + $0xa0] sm:$0xff]
      %v4526 = vld [vmem:[%s509 + $0xa8] sm:$0xff]
      %v4527 = vld [vmem:[%s509 + $0xb0] sm:$0xff]
      %v4528 = vld [vmem:[%s509 + $0xb8] sm:$0xff]
      %v4529 = vld [vmem:[%s509 + $0xc0] sm:$0xff]
      %v4530 = vld [vmem:[%s509 + $0xc8] sm:$0xff]
      %v4531 = vld [vmem:[%s509 + $0xd0] sm:$0xff]
      %v4532 = vld [vmem:[%s509 + $0xd8] sm:$0xff]
      %v4533 = vld [vmem:[%s509 + $0xe0] sm:$0xff]
      %v4534 = vld [vmem:[%s509 + $0xe8] sm:$0xff]
      %v4535 = vld [vmem:[%s509 + $0xf0] sm:$0xff]
      %v4536 = vld [vmem:[%s509 + $0xf8] sm:$0xff]
      %v4569 = vunpack.c.l.b16 %v4505
      %v4570 = vunpack.c.h.b16 %v4505
      %v4571 = vunpack.c.l.b16 %v4506
      %v4572 = vunpack.c.h.b16 %v4506
      %v4573 = vunpack.c.l.b16 %v4507
      %v4574 = vunpack.c.h.b16 %v4507
      %v4575 = vunpack.c.l.b16 %v4508
      %v4576 = vunpack.c.h.b16 %v4508
      %v4577 = vunpack.c.l.b16 %v4509
      %v4578 = vunpack.c.h.b16 %v4509
      %v4579 = vunpack.c.l.b16 %v4510
      %v4580 = vunpack.c.h.b16 %v4510
      %v4581 = vunpack.c.l.b16 %v4511
      %v4582 = vunpack.c.h.b16 %v4511
      %v4583 = vunpack.c.l.b16 %v4512
      %v4584 = vunpack.c.h.b16 %v4512
      %v4585 = vunpack.c.l.b16 %v4513
      %v4586 = vunpack.c.h.b16 %v4513
      %v4587 = vunpack.c.l.b16 %v4514
      %v4588 = vunpack.c.h.b16 %v4514
      %v4589 = vunpack.c.l.b16 %v4515
      %v4590 = vunpack.c.h.b16 %v4515
      %v4591 = vunpack.c.l.b16 %v4516
      %v4592 = vunpack.c.h.b16 %v4516
      %v4593 = vunpack.c.l.b16 %v4517
      %v4594 = vunpack.c.h.b16 %v4517
      %v4595 = vunpack.c.l.b16 %v4518
      %v4596 = vunpack.c.h.b16 %v4518
      %v4597 = vunpack.c.l.b16 %v4519
      %v4598 = vunpack.c.h.b16 %v4519
      %v4599 = vunpack.c.l.b16 %v4520
      %v4600 = vunpack.c.h.b16 %v4520
      %v4601 = vunpack.c.l.b16 %v4521
      %v4602 = vunpack.c.h.b16 %v4521
      %v4603 = vunpack.c.l.b16 %v4522
      %v4604 = vunpack.c.h.b16 %v4522
      %v4605 = vunpack.c.l.b16 %v4523
      %v4606 = vunpack.c.h.b16 %v4523
      %v4607 = vunpack.c.l.b16 %v4524
      %v4608 = vunpack.c.h.b16 %v4524
      %v4609 = vunpack.c.l.b16 %v4525
      %v4610 = vunpack.c.h.b16 %v4525
      %v4611 = vunpack.c.l.b16 %v4526
      %v4612 = vunpack.c.h.b16 %v4526
      %v4613 = vunpack.c.l.b16 %v4527
      %v4614 = vunpack.c.h.b16 %v4527
      %v4615 = vunpack.c.l.b16 %v4528
      %v4616 = vunpack.c.h.b16 %v4528
      %v4617 = vunpack.c.l.b16 %v4529
      %v4618 = vunpack.c.h.b16 %v4529
      %v4619 = vunpack.c.l.b16 %v4530
      %v4620 = vunpack.c.h.b16 %v4530
      %v4621 = vunpack.c.l.b16 %v4531
      %v4622 = vunpack.c.h.b16 %v4531
      %v4623 = vunpack.c.l.b16 %v4532
      %v4624 = vunpack.c.h.b16 %v4532
      %v4625 = vunpack.c.l.b16 %v4533
      %v4626 = vunpack.c.h.b16 %v4533
      %v4627 = vunpack.c.l.b16 %v4534
      %v4628 = vunpack.c.h.b16 %v4534
      %v4629 = vunpack.c.l.b16 %v4535
      %v4630 = vunpack.c.h.b16 %v4535
      %v4631 = vunpack.c.l.b16 %v4536
      %v4632 = vunpack.c.h.b16 %v4536
      %v4633 = vpack.c.b16 %v4573, %v4569
      %v4634 = vpack.c.b16 %v4574, %v4570
      %v4635 = vpack.c.b16 %v4575, %v4571
      %v4636 = vpack.c.b16 %v4576, %v4572
      %v4637 = vpack.c.b16 %v4581, %v4577
      %v4638 = vpack.c.b16 %v4582, %v4578
      %v4639 = vpack.c.b16 %v4583, %v4579
      %v4640 = vpack.c.b16 %v4584, %v4580
      %v4641 = vpack.c.b16 %v4589, %v4585
      %v4642 = vpack.c.b16 %v4590, %v4586
      %v4643 = vpack.c.b16 %v4591, %v4587
      %v4644 = vpack.c.b16 %v4592, %v4588
      %v4645 = vpack.c.b16 %v4597, %v4593
      %v4646 = vpack.c.b16 %v4598, %v4594
      %v4647 = vpack.c.b16 %v4599, %v4595
      %v4648 = vpack.c.b16 %v4600, %v4596
      %v4649 = vpack.c.b16 %v4605, %v4601
      %v4650 = vpack.c.b16 %v4606, %v4602
      %v4651 = vpack.c.b16 %v4607, %v4603
      %v4652 = vpack.c.b16 %v4608, %v4604
      %v4653 = vpack.c.b16 %v4613, %v4609
      %v4654 = vpack.c.b16 %v4614, %v4610
      %v4655 = vpack.c.b16 %v4615, %v4611
      %v4656 = vpack.c.b16 %v4616, %v4612
      %v4657 = vpack.c.b16 %v4621, %v4617
      %v4658 = vpack.c.b16 %v4622, %v4618
      %v4659 = vpack.c.b16 %v4623, %v4619
      %v4660 = vpack.c.b16 %v4624, %v4620
      %v4661 = vpack.c.b16 %v4629, %v4625
      %v4662 = vpack.c.b16 %v4630, %v4626
      %v4663 = vpack.c.b16 %v4631, %v4627
      %v4664 = vpack.c.b16 %v4632, %v4628
      %4697 = vmatprep.subr.bf16.mxu0 %v4634
      %4698 = vmatpush1.bf16.msra.mxu0 %v4633
      %4699 = vmatprep.subr.bf16.mxu0 %v4638
      %4700 = vmatpush1.bf16.msra.mxu0 %v4637
      %4701 = vmatprep.subr.bf16.mxu0 %v4642
      %4702 = vmatpush1.bf16.msra.mxu0 %v4641
      %4703 = vmatprep.subr.bf16.mxu0 %v4646
      %4704 = vmatpush1.bf16.msra.mxu0 %v4645
      %4705 = vmatprep.subr.bf16.mxu0 %v4650
      %4706 = vmatpush1.bf16.msra.mxu0 %v4649
      %4707 = vmatprep.subr.bf16.mxu0 %v4654
      %4708 = vmatpush1.bf16.msra.mxu0 %v4653
      %4709 = vmatprep.subr.bf16.mxu0 %v4658
      %4710 = vmatpush1.bf16.msra.mxu0 %v4657
      %4711 = vmatprep.subr.bf16.mxu0 %v4662
      %4712 = vmatpush1.bf16.msra.mxu0 %v4661
      %4713 = vmatprep.subr.bf16.mxu0 0
      %4714 = vmatpush1.bf16.msra.mxu0 0
      %4715 = vmatprep.subr.bf16.mxu0 0
      %4716 = vmatpush1.bf16.msra.mxu0 0
      %4717 = vmatprep.subr.bf16.mxu0 0
      %4718 = vmatpush1.bf16.msra.mxu0 0
      %4719 = vmatprep.subr.bf16.mxu0 0
      %4720 = vmatpush1.bf16.msra.mxu0 0
      %4721 = vmatprep.subr.bf16.mxu0 0
      %4722 = vmatpush1.bf16.msra.mxu0 0
      %4723 = vmatprep.subr.bf16.mxu0 0
      %4724 = vmatpush1.bf16.msra.mxu0 0
      %4725 = vmatprep.subr.bf16.mxu0 0
      %4726 = vmatpush1.bf16.msra.mxu0 0
      %4727 = vmatprep.subr.bf16.mxu0 0
      %4728 = vmatpush1.bf16.msra.mxu0 0
      %4729 = vmatprep.mubr.bf16.mxu0 0
      %4730 = vmatmul.mubr.bf16.gmra.mrb[0].mxu0 %v4504
      %v4731 = vpop.f32.mrb[0].mxu0
      %v4732 = vadd.f32 0.0, %v4731
      %v4733 = vpop.f32.mrb[0].mxu0
      %v4734 = vadd.f32 0.0, %v4733
      %v4735 = vpop.f32.mrb[0].mxu0
      %v4736 = vpop.f32.mrb[0].mxu0
      %4737 = vdwg.mxu0
      %4738 = vmatprep.subr.bf16.mxu0 %v4636
      %4739 = vmatpush1.bf16.msra.mxu0 %v4635
      %4740 = vmatprep.subr.bf16.mxu0 %v4640
      %4741 = vmatpush1.bf16.msra.mxu0 %v4639
      %4742 = vmatprep.subr.bf16.mxu0 %v4644
      %4743 = vmatpush1.bf16.msra.mxu0 %v4643
      %4744 = vmatprep.subr.bf16.mxu0 %v4648
      %4745 = vmatpush1.bf16.msra.mxu0 %v4647
      %4746 = vmatprep.subr.bf16.mxu0 %v4652
      %4747 = vmatpush1.bf16.msra.mxu0 %v4651
      %4748 = vmatprep.subr.bf16.mxu0 %v4656
      %4749 = vmatpush1.bf16.msra.mxu0 %v4655
      %4750 = vmatprep.subr.bf16.mxu0 %v4660
      %4751 = vmatpush1.bf16.msra.mxu0 %v4659
      %4752 = vmatprep.subr.bf16.mxu0 %v4664
      %4753 = vmatpush1.bf16.msra.mxu0 %v4663
      %4754 = vmatprep.subr.bf16.mxu0 0
      %4755 = vmatpush1.bf16.msra.mxu0 0
      %4756 = vmatprep.subr.bf16.mxu0 0
      %4757 = vmatpush1.bf16.msra.mxu0 0
      %4758 = vmatprep.subr.bf16.mxu0 0
      %4759 = vmatpush1.bf16.msra.mxu0 0
      %4760 = vmatprep.subr.bf16.mxu0 0
      %4761 = vmatpush1.bf16.msra.mxu0 0
      %4762 = vmatprep.subr.bf16.mxu0 0
      %4763 = vmatpush1.bf16.msra.mxu0 0
      %4764 = vmatprep.subr.bf16.mxu0 0
      %4765 = vmatpush1.bf16.msra.mxu0 0
      %4766 = vmatprep.subr.bf16.mxu0 0
      %4767 = vmatpush1.bf16.msra.mxu0 0
      %4768 = vmatprep.subr.bf16.mxu0 0
      %4769 = vmatpush1.bf16.msra.mxu0 0
      %4770 = vmatprep.mubr.bf16.mxu0 0
      %4771 = vmatmul.mubr.bf16.gmra.mrb[0].mxu0 %v4504
      %v4772 = vpop.f32.mrb[0].mxu0
      %v4773 = vadd.f32 0.0, %v4772
      %v4774 = vpop.f32.mrb[0].mxu0
      %v4775 = vadd.f32 0.0, %v4774
      %v4776 = vpop.f32.mrb[0].mxu0
      %v4777 = vpop.f32.mrb[0].mxu0
      %4778 = vdwg.mxu0
      %v4783 = vcombine.low %v4732, %v4734
      %v4784 = vcombine.low %v4773, %v4775
      %v4786 = vunpack.c.l.s4 1983009808
      %v4787 = vunpack.c.0.s8 %v4786
      %v4788 = vlaneseq
      %v4789 = vshrl.u32 %v4788, 7
      %v4790 = vsub.s32 %v4787, %v4789
      %v4791 = vrot.slane %v4783, %v4790
      %v4793 = vunpack.c.l.s4 1983009808
      %v4794 = vunpack.c.0.s8 %v4793
      %v4795 = vlaneseq
      %v4796 = vshrl.u32 %v4795, 7
      %v4797 = vsub.s32 %v4794, %v4796
      %v4798 = vrot.slane %v4784, %v4797
      %v4799 = vcombine.low %v4791, %v4798
      %v4801 = vadd.f32 %v4503, %v4799
      %v4802 = vxor.u32 %v4801, 2147483648
      %v4803 = vmul.f32 %v4802, 1.442695
      %v4804 = vpow.pop %v4803
      %v4805 = vadd.f32 %v4804, 1.0
      %v4806 = vrcp.pop %v4805
      %v4807 = vmul.f32 1.0, %v4806
      %v4809 = vrot.slane %v4801, 2
      %v4811 = vxor.u32 %v4809, 2147483648
      %v4812 = vmul.f32 %v4811, 1.442695
      %v4813 = vpow.pop %v4812
      %v4814 = vadd.f32 %v4813, 1.0
      %v4815 = vrcp.pop %v4814
      %v4816 = vmul.f32 1.0, %v4815
      %v4817 = vrot.slane %v4801, 4
      %v4819 = vtanh.pop %v4817
      %v4820 = vrot.slane %v4801, 6
      %v4822 = vxor.u32 %v4820, 2147483648
      %v4823 = vmul.f32 %v4822, 1.442695
      %v4824 = vpow.pop %v4823
      %v4825 = vadd.f32 %v4824, 1.0
      %v4826 = vrcp.pop %v4825
      %v4827 = vmul.f32 1.0, %v4826
      %v4828 = vmul.f32 %v4816, %v4164
      %v4829 = vmul.f32 %v4807, %v4819
      %v4830 = vadd.f32 %v4828, %v4829
      %v4831 = vtanh.pop %v4830
      %v4832 = vmul.f32 %v4827, %v4831
      %s4833 = scalar_lea.vmem %s175, 12
      %4834 = vst [vmem:[%s4833] sm:$0x3] %v4501
      %s4835 = scalar_lea.vmem %s175, 28
      %4836 = vst [vmem:[%s4835] sm:$0x3] %v4832
      %s4837 = scalar_lea.vmem %s161, 56
      %v4838 = vld [vmem:[%s4837] sm:$0xff]
      %v4839 = vpack.c.bf16 %v4501, %v4501
      %v4840 = vld [vmem:[%s168] sm:$0xff]
      %v4841 = vld [vmem:[%s168 + $0x8] sm:$0xff]
      %v4842 = vld [vmem:[%s168 + $0x10] sm:$0xff]
      %v4843 = vld [vmem:[%s168 + $0x18] sm:$0xff]
      %v4844 = vld [vmem:[%s168 + $0x20] sm:$0xff]
      %v4845 = vld [vmem:[%s168 + $0x28] sm:$0xff]
      %v4846 = vld [vmem:[%s168 + $0x30] sm:$0xff]
      %v4847 = vld [vmem:[%s168 + $0x38] sm:$0xff]
      %v4848 = vld [vmem:[%s168 + $0x40] sm:$0xff]
      %v4849 = vld [vmem:[%s168 + $0x48] sm:$0xff]
      %v4850 = vld [vmem:[%s168 + $0x50] sm:$0xff]
      %v4851 = vld [vmem:[%s168 + $0x58] sm:$0xff]
      %v4852 = vld [vmem:[%s168 + $0x60] sm:$0xff]
      %v4853 = vld [vmem:[%s168 + $0x68] sm:$0xff]
      %v4854 = vld [vmem:[%s168 + $0x70] sm:$0xff]
      %v4855 = vld [vmem:[%s168 + $0x78] sm:$0xff]
      %v4856 = vld [vmem:[%s168 + $0x80] sm:$0xff]
      %v4857 = vld [vmem:[%s168 + $0x88] sm:$0xff]
      %v4858 = vld [vmem:[%s168 + $0x90] sm:$0xff]
      %v4859 = vld [vmem:[%s168 + $0x98] sm:$0xff]
      %v4860 = vld [vmem:[%s168 + $0xa0] sm:$0xff]
      %v4861 = vld [vmem:[%s168 + $0xa8] sm:$0xff]
      %v4862 = vld [vmem:[%s168 + $0xb0] sm:$0xff]
      %v4863 = vld [vmem:[%s168 + $0xb8] sm:$0xff]
      %v4864 = vld [vmem:[%s168 + $0xc0] sm:$0xff]
      %v4865 = vld [vmem:[%s168 + $0xc8] sm:$0xff]
      %v4866 = vld [vmem:[%s168 + $0xd0] sm:$0xff]
      %v4867 = vld [vmem:[%s168 + $0xd8] sm:$0xff]
      %v4868 = vld [vmem:[%s168 + $0xe0] sm:$0xff]
      %v4869 = vld [vmem:[%s168 + $0xe8] sm:$0xff]
      %v4870 = vld [vmem:[%s168 + $0xf0] sm:$0xff]
      %v4871 = vld [vmem:[%s168 + $0xf8] sm:$0xff]
      %v4904 = vunpack.c.l.b16 %v4840
      %v4905 = vunpack.c.h.b16 %v4840
      %v4906 = vunpack.c.l.b16 %v4841
      %v4907 = vunpack.c.h.b16 %v4841
      %v4908 = vunpack.c.l.b16 %v4842
      %v4909 = vunpack.c.h.b16 %v4842
      %v4910 = vunpack.c.l.b16 %v4843
      %v4911 = vunpack.c.h.b16 %v4843
      %v4912 = vunpack.c.l.b16 %v4844
      %v4913 = vunpack.c.h.b16 %v4844
      %v4914 = vunpack.c.l.b16 %v4845
      %v4915 = vunpack.c.h.b16 %v4845
      %v4916 = vunpack.c.l.b16 %v4846
      %v4917 = vunpack.c.h.b16 %v4846
      %v4918 = vunpack.c.l.b16 %v4847
      %v4919 = vunpack.c.h.b16 %v4847
      %v4920 = vunpack.c.l.b16 %v4848
      %v4921 = vunpack.c.h.b16 %v4848
      %v4922 = vunpack.c.l.b16 %v4849
      %v4923 = vunpack.c.h.b16 %v4849
      %v4924 = vunpack.c.l.b16 %v4850
      %v4925 = vunpack.c.h.b16 %v4850
      %v4926 = vunpack.c.l.b16 %v4851
      %v4927 = vunpack.c.h.b16 %v4851
      %v4928 = vunpack.c.l.b16 %v4852
      %v4929 = vunpack.c.h.b16 %v4852
      %v4930 = vunpack.c.l.b16 %v4853
      %v4931 = vunpack.c.h.b16 %v4853
      %v4932 = vunpack.c.l.b16 %v4854
      %v4933 = vunpack.c.h.b16 %v4854
      %v4934 = vunpack.c.l.b16 %v4855
      %v4935 = vunpack.c.h.b16 %v4855
      %v4936 = vunpack.c.l.b16 %v4856
      %v4937 = vunpack.c.h.b16 %v4856
      %v4938 = vunpack.c.l.b16 %v4857
      %v4939 = vunpack.c.h.b16 %v4857
      %v4940 = vunpack.c.l.b16 %v4858
      %v4941 = vunpack.c.h.b16 %v4858
      %v4942 = vunpack.c.l.b16 %v4859
      %v4943 = vunpack.c.h.b16 %v4859
      %v4944 = vunpack.c.l.b16 %v4860
      %v4945 = vunpack.c.h.b16 %v4860
      %v4946 = vunpack.c.l.b16 %v4861
      %v4947 = vunpack.c.h.b16 %v4861
      %v4948 = vunpack.c.l.b16 %v4862
      %v4949 = vunpack.c.h.b16 %v4862
      %v4950 = vunpack.c.l.b16 %v4863
      %v4951 = vunpack.c.h.b16 %v4863
      %v4952 = vunpack.c.l.b16 %v4864
      %v4953 = vunpack.c.h.b16 %v4864
      %v4954 = vunpack.c.l.b16 %v4865
      %v4955 = vunpack.c.h.b16 %v4865
      %v4956 = vunpack.c.l.b16 %v4866
      %v4957 = vunpack.c.h.b16 %v4866
      %v4958 = vunpack.c.l.b16 %v4867
      %v4959 = vunpack.c.h.b16 %v4867
      %v4960 = vunpack.c.l.b16 %v4868
      %v4961 = vunpack.c.h.b16 %v4868
      %v4962 = vunpack.c.l.b16 %v4869
      %v4963 = vunpack.c.h.b16 %v4869
      %v4964 = vunpack.c.l.b16 %v4870
      %v4965 = vunpack.c.h.b16 %v4870
      %v4966 = vunpack.c.l.b16 %v4871
      %v4967 = vunpack.c.h.b16 %v4871
      %v4968 = vpack.c.b16 %v4908, %v4904
      %v4969 = vpack.c.b16 %v4909, %v4905
      %v4970 = vpack.c.b16 %v4910, %v4906
      %v4971 = vpack.c.b16 %v4911, %v4907
      %v4972 = vpack.c.b16 %v4916, %v4912
      %v4973 = vpack.c.b16 %v4917, %v4913
      %v4974 = vpack.c.b16 %v4918, %v4914
      %v4975 = vpack.c.b16 %v4919, %v4915
      %v4976 = vpack.c.b16 %v4924, %v4920
      %v4977 = vpack.c.b16 %v4925, %v4921
      %v4978 = vpack.c.b16 %v4926, %v4922
      %v4979 = vpack.c.b16 %v4927, %v4923
      %v4980 = vpack.c.b16 %v4932, %v4928
      %v4981 = vpack.c.b16 %v4933, %v4929
      %v4982 = vpack.c.b16 %v4934, %v4930
      %v4983 = vpack.c.b16 %v4935, %v4931
      %v4984 = vpack.c.b16 %v4940, %v4936
      %v4985 = vpack.c.b16 %v4941, %v4937
      %v4986 = vpack.c.b16 %v4942, %v4938
      %v4987 = vpack.c.b16 %v4943, %v4939
      %v4988 = vpack.c.b16 %v4948, %v4944
      %v4989 = vpack.c.b16 %v4949, %v4945
      %v4990 = vpack.c.b16 %v4950, %v4946
      %v4991 = vpack.c.b16 %v4951, %v4947
      %v4992 = vpack.c.b16 %v4956, %v4952
      %v4993 = vpack.c.b16 %v4957, %v4953
      %v4994 = vpack.c.b16 %v4958, %v4954
      %v4995 = vpack.c.b16 %v4959, %v4955
      %v4996 = vpack.c.b16 %v4964, %v4960
      %v4997 = vpack.c.b16 %v4965, %v4961
      %v4998 = vpack.c.b16 %v4966, %v4962
      %v4999 = vpack.c.b16 %v4967, %v4963
      %5032 = vmatprep.subr.bf16.mxu0 %v4969
      %5033 = vmatpush1.bf16.msra.mxu0 %v4968
      %5034 = vmatprep.subr.bf16.mxu0 %v4973
      %5035 = vmatpush1.bf16.msra.mxu0 %v4972
      %5036 = vmatprep.subr.bf16.mxu0 %v4977
      %5037 = vmatpush1.bf16.msra.mxu0 %v4976
      %5038 = vmatprep.subr.bf16.mxu0 %v4981
      %5039 = vmatpush1.bf16.msra.mxu0 %v4980
      %5040 = vmatprep.subr.bf16.mxu0 %v4985
      %5041 = vmatpush1.bf16.msra.mxu0 %v4984
      %5042 = vmatprep.subr.bf16.mxu0 %v4989
      %5043 = vmatpush1.bf16.msra.mxu0 %v4988
      %5044 = vmatprep.subr.bf16.mxu0 %v4993
      %5045 = vmatpush1.bf16.msra.mxu0 %v4992
      %5046 = vmatprep.subr.bf16.mxu0 %v4997
      %5047 = vmatpush1.bf16.msra.mxu0 %v4996
      %5048 = vmatprep.subr.bf16.mxu0 0
      %5049 = vmatpush1.bf16.msra.mxu0 0
      %5050 = vmatprep.subr.bf16.mxu0 0
      %5051 = vmatpush1.bf16.msra.mxu0 0
      %5052 = vmatprep.subr.bf16.mxu0 0
      %5053 = vmatpush1.bf16.msra.mxu0 0
      %5054 = vmatprep.subr.bf16.mxu0 0
      %5055 = vmatpush1.bf16.msra.mxu0 0
      %5056 = vmatprep.subr.bf16.mxu0 0
      %5057 = vmatpush1.bf16.msra.mxu0 0
      %5058 = vmatprep.subr.bf16.mxu0 0
      %5059 = vmatpush1.bf16.msra.mxu0 0
      %5060 = vmatprep.subr.bf16.mxu0 0
      %5061 = vmatpush1.bf16.msra.mxu0 0
      %5062 = vmatprep.subr.bf16.mxu0 0
      %5063 = vmatpush1.bf16.msra.mxu0 0
      %5064 = vmatprep.mubr.bf16.mxu0 0
      %5065 = vmatmul.mubr.bf16.gmra.mrb[0].mxu0 %v4839
      %v5066 = vpop.f32.mrb[0].mxu0
      %v5067 = vadd.f32 0.0, %v5066
      %v5068 = vpop.f32.mrb[0].mxu0
      %v5069 = vadd.f32 0.0, %v5068
      %v5070 = vpop.f32.mrb[0].mxu0
      %v5071 = vpop.f32.mrb[0].mxu0
      %5072 = vdwg.mxu0
      %5073 = vmatprep.subr.bf16.mxu0 %v4971
      %5074 = vmatpush1.bf16.msra.mxu0 %v4970
      %5075 = vmatprep.subr.bf16.mxu0 %v4975
      %5076 = vmatpush1.bf16.msra.mxu0 %v4974
      %5077 = vmatprep.subr.bf16.mxu0 %v4979
      %5078 = vmatpush1.bf16.msra.mxu0 %v4978
      %5079 = vmatprep.subr.bf16.mxu0 %v4983
      %5080 = vmatpush1.bf16.msra.mxu0 %v4982
      %5081 = vmatprep.subr.bf16.mxu0 %v4987
      %5082 = vmatpush1.bf16.msra.mxu0 %v4986
      %5083 = vmatprep.subr.bf16.mxu0 %v4991
      %5084 = vmatpush1.bf16.msra.mxu0 %v4990
      %5085 = vmatprep.subr.bf16.mxu0 %v4995
      %5086 = vmatpush1.bf16.msra.mxu0 %v4994
      %5087 = vmatprep.subr.bf16.mxu0 %v4999
      %5088 = vmatpush1.bf16.msra.mxu0 %v4998
      %5089 = vmatprep.subr.bf16.mxu0 0
      %5090 = vmatpush1.bf16.msra.mxu0 0
      %5091 = vmatprep.subr.bf16.mxu0 0
      %5092 = vmatpush1.bf16.msra.mxu0 0
      %5093 = vmatprep.subr.bf16.mxu0 0
      %5094 = vmatpush1.bf16.msra.mxu0 0
      %5095 = vmatprep.subr.bf16.mxu0 0
      %5096 = vmatpush1.bf16.msra.mxu0 0
      %5097 = vmatprep.subr.bf16.mxu0 0
      %5098 = vmatpush1.bf16.msra.mxu0 0
      %5099 = vmatprep.subr.bf16.mxu0 0
      %5100 = vmatpush1.bf16.msra.mxu0 0
      %5101 = vmatprep.subr.bf16.mxu0 0
      %5102 = vmatpush1.bf16.msra.mxu0 0
      %5103 = vmatprep.subr.bf16.mxu0 0
      %5104 = vmatpush1.bf16.msra.mxu0 0
      %5105 = vmatprep.mubr.bf16.mxu0 0
      %5106 = vmatmul.mubr.bf16.gmra.mrb[0].mxu0 %v4839
      %v5107 = vpop.f32.mrb[0].mxu0
      %v5108 = vadd.f32 0.0, %v5107
      %v5109 = vpop.f32.mrb[0].mxu0
      %v5110 = vadd.f32 0.0, %v5109
      %v5111 = vpop.f32.mrb[0].mxu0
      %v5112 = vpop.f32.mrb[0].mxu0
      %5113 = vdwg.mxu0
      %v5118 = vcombine.low %v5067, %v5069
      %v5119 = vcombine.low %v5108, %v5110
      %v5121 = vunpack.c.l.s4 1983009808
      %v5122 = vunpack.c.0.s8 %v5121
      %v5123 = vlaneseq
      %v5124 = vshrl.u32 %v5123, 7
      %v5125 = vsub.s32 %v5122, %v5124
      %v5126 = vrot.slane %v5118, %v5125
      %v5128 = vunpack.c.l.s4 1983009808
      %v5129 = vunpack.c.0.s8 %v5128
      %v5130 = vlaneseq
      %v5131 = vshrl.u32 %v5130, 7
      %v5132 = vsub.s32 %v5129, %v5131
      %v5133 = vrot.slane %v5119, %v5132
      %v5134 = vcombine.low %v5126, %v5133
      %v5136 = vadd.f32 %v4838, %v5134
      %v5137 = vxor.u32 %v5136, 2147483648
      %v5138 = vmul.f32 %v5137, 1.442695
      %v5139 = vpow.pop %v5138
      %v5140 = vadd.f32 %v5139, 1.0
      %v5141 = vrcp.pop %v5140
      %v5142 = vmul.f32 1.0, %v5141
      %v5144 = vrot.slane %v5136, 2
      %v5146 = vxor.u32 %v5144, 2147483648
      %v5147 = vmul.f32 %v5146, 1.442695
      %v5148 = vpow.pop %v5147
      %v5149 = vadd.f32 %v5148, 1.0
      %v5150 = vrcp.pop %v5149
      %v5151 = vmul.f32 1.0, %v5150
      %v5152 = vrot.slane %v5136, 4
      %v5154 = vtanh.pop %v5152
      %v5155 = vrot.slane %v5136, 6
      %v5157 = vxor.u32 %v5155, 2147483648
      %v5158 = vmul.f32 %v5157, 1.442695
      %v5159 = vpow.pop %v5158
      %v5160 = vadd.f32 %v5159, 1.0
      %v5161 = vrcp.pop %v5160
      %v5162 = vmul.f32 1.0, %v5161
      %v5163 = vmul.f32 %v5151, %v4499
      %v5164 = vmul.f32 %v5142, %v5154
      %v5165 = vadd.f32 %v5163, %v5164
      %v5166 = vtanh.pop %v5165
      %v5167 = vmul.f32 %v5162, %v5166
      %s5168 = scalar_lea.vmem %s161, 64
      %v5169 = vld [vmem:[%s5168] sm:$0xff]
      %v5170 = vpack.c.bf16 %v4832, %v4832
      %v5171 = vld [vmem:[%s509] sm:$0xff]
      %v5172 = vld [vmem:[%s509 + $0x8] sm:$0xff]
      %v5173 = vld [vmem:[%s509 + $0x10] sm:$0xff]
      %v5174 = vld [vmem:[%s509 + $0x18] sm:$0xff]
      %v5175 = vld [vmem:[%s509 + $0x20] sm:$0xff]
      %v5176 = vld [vmem:[%s509 + $0x28] sm:$0xff]
      %v5177 = vld [vmem:[%s509 + $0x30] sm:$0xff]
      %v5178 = vld [vmem:[%s509 + $0x38] sm:$0xff]
      %v5179 = vld [vmem:[%s509 + $0x40] sm:$0xff]
      %v5180 = vld [vmem:[%s509 + $0x48] sm:$0xff]
      %v5181 = vld [vmem:[%s509 + $0x50] sm:$0xff]
      %v5182 = vld [vmem:[%s509 + $0x58] sm:$0xff]
      %v5183 = vld [vmem:[%s509 + $0x60] sm:$0xff]
      %v5184 = vld [vmem:[%s509 + $0x68] sm:$0xff]
      %v5185 = vld [vmem:[%s509 + $0x70] sm:$0xff]
      %v5186 = vld [vmem:[%s509 + $0x78] sm:$0xff]
      %v5187 = vld [vmem:[%s509 + $0x80] sm:$0xff]
      %v5188 = vld [vmem:[%s509 + $0x88] sm:$0xff]
      %v5189 = vld [vmem:[%s509 + $0x90] sm:$0xff]
      %v5190 = vld [vmem:[%s509 + $0x98] sm:$0xff]
      %v5191 = vld [vmem:[%s509 + $0xa0] sm:$0xff]
      %v5192 = vld [vmem:[%s509 + $0xa8] sm:$0xff]
      %v5193 = vld [vmem:[%s509 + $0xb0] sm:$0xff]
      %v5194 = vld [vmem:[%s509 + $0xb8] sm:$0xff]
      %v5195 = vld [vmem:[%s509 + $0xc0] sm:$0xff]
      %v5196 = vld [vmem:[%s509 + $0xc8] sm:$0xff]
      %v5197 = vld [vmem:[%s509 + $0xd0] sm:$0xff]
      %v5198 = vld [vmem:[%s509 + $0xd8] sm:$0xff]
      %v5199 = vld [vmem:[%s509 + $0xe0] sm:$0xff]
      %v5200 = vld [vmem:[%s509 + $0xe8] sm:$0xff]
      %v5201 = vld [vmem:[%s509 + $0xf0] sm:$0xff]
      %v5202 = vld [vmem:[%s509 + $0xf8] sm:$0xff]
      %v5235 = vunpack.c.l.b16 %v5171
      %v5236 = vunpack.c.h.b16 %v5171
      %v5237 = vunpack.c.l.b16 %v5172
      %v5238 = vunpack.c.h.b16 %v5172
      %v5239 = vunpack.c.l.b16 %v5173
      %v5240 = vunpack.c.h.b16 %v5173
      %v5241 = vunpack.c.l.b16 %v5174
      %v5242 = vunpack.c.h.b16 %v5174
      %v5243 = vunpack.c.l.b16 %v5175
      %v5244 = vunpack.c.h.b16 %v5175
      %v5245 = vunpack.c.l.b16 %v5176
      %v5246 = vunpack.c.h.b16 %v5176
      %v5247 = vunpack.c.l.b16 %v5177
      %v5248 = vunpack.c.h.b16 %v5177
      %v5249 = vunpack.c.l.b16 %v5178
      %v5250 = vunpack.c.h.b16 %v5178
      %v5251 = vunpack.c.l.b16 %v5179
      %v5252 = vunpack.c.h.b16 %v5179
      %v5253 = vunpack.c.l.b16 %v5180
      %v5254 = vunpack.c.h.b16 %v5180
      %v5255 = vunpack.c.l.b16 %v5181
      %v5256 = vunpack.c.h.b16 %v5181
      %v5257 = vunpack.c.l.b16 %v5182
      %v5258 = vunpack.c.h.b16 %v5182
      %v5259 = vunpack.c.l.b16 %v5183
      %v5260 = vunpack.c.h.b16 %v5183
      %v5261 = vunpack.c.l.b16 %v5184
      %v5262 = vunpack.c.h.b16 %v5184
      %v5263 = vunpack.c.l.b16 %v5185
      %v5264 = vunpack.c.h.b16 %v5185
      %v5265 = vunpack.c.l.b16 %v5186
      %v5266 = vunpack.c.h.b16 %v5186
      %v5267 = vunpack.c.l.b16 %v5187
      %v5268 = vunpack.c.h.b16 %v5187
      %v5269 = vunpack.c.l.b16 %v5188
      %v5270 = vunpack.c.h.b16 %v5188
      %v5271 = vunpack.c.l.b16 %v5189
      %v5272 = vunpack.c.h.b16 %v5189
      %v5273 = vunpack.c.l.b16 %v5190
      %v5274 = vunpack.c.h.b16 %v5190
      %v5275 = vunpack.c.l.b16 %v5191
      %v5276 = vunpack.c.h.b16 %v5191
      %v5277 = vunpack.c.l.b16 %v5192
      %v5278 = vunpack.c.h.b16 %v5192
      %v5279 = vunpack.c.l.b16 %v5193
      %v5280 = vunpack.c.h.b16 %v5193
      %v5281 = vunpack.c.l.b16 %v5194
      %v5282 = vunpack.c.h.b16 %v5194
      %v5283 = vunpack.c.l.b16 %v5195
      %v5284 = vunpack.c.h.b16 %v5195
      %v5285 = vunpack.c.l.b16 %v5196
      %v5286 = vunpack.c.h.b16 %v5196
      %v5287 = vunpack.c.l.b16 %v5197
      %v5288 = vunpack.c.h.b16 %v5197
      %v5289 = vunpack.c.l.b16 %v5198
      %v5290 = vunpack.c.h.b16 %v5198
      %v5291 = vunpack.c.l.b16 %v5199
      %v5292 = vunpack.c.h.b16 %v5199
      %v5293 = vunpack.c.l.b16 %v5200
      %v5294 = vunpack.c.h.b16 %v5200
      %v5295 = vunpack.c.l.b16 %v5201
      %v5296 = vunpack.c.h.b16 %v5201
      %v5297 = vunpack.c.l.b16 %v5202
      %v5298 = vunpack.c.h.b16 %v5202
      %v5299 = vpack.c.b16 %v5239, %v5235
      %v5300 = vpack.c.b16 %v5240, %v5236
      %v5301 = vpack.c.b16 %v5241, %v5237
      %v5302 = vpack.c.b16 %v5242, %v5238
      %v5303 = vpack.c.b16 %v5247, %v5243
      %v5304 = vpack.c.b16 %v5248, %v5244
      %v5305 = vpack.c.b16 %v5249, %v5245
      %v5306 = vpack.c.b16 %v5250, %v5246
      %v5307 = vpack.c.b16 %v5255, %v5251
      %v5308 = vpack.c.b16 %v5256, %v5252
      %v5309 = vpack.c.b16 %v5257, %v5253
      %v5310 = vpack.c.b16 %v5258, %v5254
      %v5311 = vpack.c.b16 %v5263, %v5259
      %v5312 = vpack.c.b16 %v5264, %v5260
      %v5313 = vpack.c.b16 %v5265, %v5261
      %v5314 = vpack.c.b16 %v5266, %v5262
      %v5315 = vpack.c.b16 %v5271, %v5267
      %v5316 = vpack.c.b16 %v5272, %v5268
      %v5317 = vpack.c.b16 %v5273, %v5269
      %v5318 = vpack.c.b16 %v5274, %v5270
      %v5319 = vpack.c.b16 %v5279, %v5275
      %v5320 = vpack.c.b16 %v5280, %v5276
      %v5321 = vpack.c.b16 %v5281, %v5277
      %v5322 = vpack.c.b16 %v5282, %v5278
      %v5323 = vpack.c.b16 %v5287, %v5283
      %v5324 = vpack.c.b16 %v5288, %v5284
      %v5325 = vpack.c.b16 %v5289, %v5285
      %v5326 = vpack.c.b16 %v5290, %v5286
      %v5327 = vpack.c.b16 %v5295, %v5291
      %v5328 = vpack.c.b16 %v5296, %v5292
      %v5329 = vpack.c.b16 %v5297, %v5293
      %v5330 = vpack.c.b16 %v5298, %v5294
      %5363 = vmatprep.subr.bf16.mxu0 %v5300
      %5364 = vmatpush1.bf16.msra.mxu0 %v5299
      %5365 = vmatprep.subr.bf16.mxu0 %v5304
      %5366 = vmatpush1.bf16.msra.mxu0 %v5303
      %5367 = vmatprep.subr.bf16.mxu0 %v5308
      %5368 = vmatpush1.bf16.msra.mxu0 %v5307
      %5369 = vmatprep.subr.bf16.mxu0 %v5312
      %5370 = vmatpush1.bf16.msra.mxu0 %v5311
      %5371 = vmatprep.subr.bf16.mxu0 %v5316
      %5372 = vmatpush1.bf16.msra.mxu0 %v5315
      %5373 = vmatprep.subr.bf16.mxu0 %v5320
      %5374 = vmatpush1.bf16.msra.mxu0 %v5319
      %5375 = vmatprep.subr.bf16.mxu0 %v5324
      %5376 = vmatpush1.bf16.msra.mxu0 %v5323
      %5377 = vmatprep.subr.bf16.mxu0 %v5328
      %5378 = vmatpush1.bf16.msra.mxu0 %v5327
      %5379 = vmatprep.subr.bf16.mxu0 0
      %5380 = vmatpush1.bf16.msra.mxu0 0
      %5381 = vmatprep.subr.bf16.mxu0 0
      %5382 = vmatpush1.bf16.msra.mxu0 0
      %5383 = vmatprep.subr.bf16.mxu0 0
      %5384 = vmatpush1.bf16.msra.mxu0 0
      %5385 = vmatprep.subr.bf16.mxu0 0
      %5386 = vmatpush1.bf16.msra.mxu0 0
      %5387 = vmatprep.subr.bf16.mxu0 0
      %5388 = vmatpush1.bf16.msra.mxu0 0
      %5389 = vmatprep.subr.bf16.mxu0 0
      %5390 = vmatpush1.bf16.msra.mxu0 0
      %5391 = vmatprep.subr.bf16.mxu0 0
      %5392 = vmatpush1.bf16.msra.mxu0 0
      %5393 = vmatprep.subr.bf16.mxu0 0
      %5394 = vmatpush1.bf16.msra.mxu0 0
      %5395 = vmatprep.mubr.bf16.mxu0 0
      %5396 = vmatmul.mubr.bf16.gmra.mrb[0].mxu0 %v5170
      %v5397 = vpop.f32.mrb[0].mxu0
      %v5398 = vadd.f32 0.0, %v5397
      %v5399 = vpop.f32.mrb[0].mxu0
      %v5400 = vadd.f32 0.0, %v5399
      %v5401 = vpop.f32.mrb[0].mxu0
      %v5402 = vpop.f32.mrb[0].mxu0
      %5403 = vdwg.mxu0
      %5404 = vmatprep.subr.bf16.mxu0 %v5302
      %5405 = vmatpush1.bf16.msra.mxu0 %v5301
      %5406 = vmatprep.subr.bf16.mxu0 %v5306
      %5407 = vmatpush1.bf16.msra.mxu0 %v5305
      %5408 = vmatprep.subr.bf16.mxu0 %v5310
      %5409 = vmatpush1.bf16.msra.mxu0 %v5309
      %5410 = vmatprep.subr.bf16.mxu0 %v5314
      %5411 = vmatpush1.bf16.msra.mxu0 %v5313
      %5412 = vmatprep.subr.bf16.mxu0 %v5318
      %5413 = vmatpush1.bf16.msra.mxu0 %v5317
      %5414 = vmatprep.subr.bf16.mxu0 %v5322
      %5415 = vmatpush1.bf16.msra.mxu0 %v5321
      %5416 = vmatprep.subr.bf16.mxu0 %v5326
      %5417 = vmatpush1.bf16.msra.mxu0 %v5325
      %5418 = vmatprep.subr.bf16.mxu0 %v5330
      %5419 = vmatpush1.bf16.msra.mxu0 %v5329
      %5420 = vmatprep.subr.bf16.mxu0 0
      %5421 = vmatpush1.bf16.msra.mxu0 0
      %5422 = vmatprep.subr.bf16.mxu0 0
      %5423 = vmatpush1.bf16.msra.mxu0 0
      %5424 = vmatprep.subr.bf16.mxu0 0
      %5425 = vmatpush1.bf16.msra.mxu0 0
      %5426 = vmatprep.subr.bf16.mxu0 0
      %5427 = vmatpush1.bf16.msra.mxu0 0
      %5428 = vmatprep.subr.bf16.mxu0 0
      %5429 = vmatpush1.bf16.msra.mxu0 0
      %5430 = vmatprep.subr.bf16.mxu0 0
      %5431 = vmatpush1.bf16.msra.mxu0 0
      %5432 = vmatprep.subr.bf16.mxu0 0
      %5433 = vmatpush1.bf16.msra.mxu0 0
      %5434 = vmatprep.subr.bf16.mxu0 0
      %5435 = vmatpush1.bf16.msra.mxu0 0
      %5436 = vmatprep.mubr.bf16.mxu0 0
      %5437 = vmatmul.mubr.bf16.gmra.mrb[0].mxu0 %v5170
      %v5438 = vpop.f32.mrb[0].mxu0
      %v5439 = vadd.f32 0.0, %v5438
      %v5440 = vpop.f32.mrb[0].mxu0
      %v5441 = vadd.f32 0.0, %v5440
      %v5442 = vpop.f32.mrb[0].mxu0
      %v5443 = vpop.f32.mrb[0].mxu0
      %5444 = vdwg.mxu0
      %v5449 = vcombine.low %v5398, %v5400
      %v5450 = vcombine.low %v5439, %v5441
      %v5452 = vunpack.c.l.s4 1983009808
      %v5453 = vunpack.c.0.s8 %v5452
      %v5454 = vlaneseq
      %v5455 = vshrl.u32 %v5454, 7
      %v5456 = vsub.s32 %v5453, %v5455
      %v5457 = vrot.slane %v5449, %v5456
      %v5459 = vunpack.c.l.s4 1983009808
      %v5460 = vunpack.c.0.s8 %v5459
      %v5461 = vlaneseq
      %v5462 = vshrl.u32 %v5461, 7
      %v5463 = vsub.s32 %v5460, %v5462
      %v5464 = vrot.slane %v5450, %v5463
      %v5465 = vcombine.low %v5457, %v5464
      %v5467 = vadd.f32 %v5169, %v5465
      %v5468 = vxor.u32 %v5467, 2147483648
      %v5469 = vmul.f32 %v5468, 1.442695
      %v5470 = vpow.pop %v5469
      %v5471 = vadd.f32 %v5470, 1.0
      %v5472 = vrcp.pop %v5471
      %v5473 = vmul.f32 1.0, %v5472
      %v5475 = vrot.slane %v5467, 2
      %v5477 = vxor.u32 %v5475, 2147483648
      %v5478 = vmul.f32 %v5477, 1.442695
      %v5479 = vpow.pop %v5478
      %v5480 = vadd.f32 %v5479, 1.0
      %v5481 = vrcp.pop %v5480
      %v5482 = vmul.f32 1.0, %v5481
      %v5483 = vrot.slane %v5467, 4
      %v5485 = vtanh.pop %v5483
      %v5486 = vrot.slane %v5467, 6
      %v5488 = vxor.u32 %v5486, 2147483648
      %v5489 = vmul.f32 %v5488, 1.442695
      %v5490 = vpow.pop %v5489
      %v5491 = vadd.f32 %v5490, 1.0
      %v5492 = vrcp.pop %v5491
      %v5493 = vmul.f32 1.0, %v5492
      %v5494 = vmul.f32 %v5482, %v4830
      %v5495 = vmul.f32 %v5473, %v5485
      %v5496 = vadd.f32 %v5494, %v5495
      %v5497 = vtanh.pop %v5496
      %v5498 = vmul.f32 %v5493, %v5497
      %s5499 = scalar_lea.vmem %s175, 14
      %5500 = vst [vmem:[%s5499] sm:$0x3] %v5167
      %s5501 = scalar_lea.vmem %s175, 30
      %5502 = vst [vmem:[%s5501] sm:$0x3] %v5498
      %s5503 = smul.u32 2, %s13
      %p5504 = scmp.lt.s32.totalorder %s5503, 3
      %s5505 = scalar_select %p5504, %s5503, 3
      %s5506 = smul.addr %s5505, 8
      %s5507 = smul.addr %s5506, 2
      %s5508 = scalar_lea.vmem %s2, %s5507
      // Predicated region
      $region29: #{model_forward.2} parent=27 // pred_check
        %p5509 = pneg %p83
      $region30: #{model_forward.2} parent=27 // pred_check_branch
        %5511 = sbr.rel (%p5509) target = $region32
      $region31: #{model_forward.2} parent=27 // pred_region
        %s5512 = smul.u32 2, %s13
      $region32: #{model_forward.2} parent=27 // pred_fallthru
        _
    $region28: #{model_forward.2} parent=5 // pred_fallthru
      _
    %p5513 = scmp.le.s32.totalorder 2, %s8
    // Predicated region
    $region33: #{model_forward.2} parent=5 // pred_check
      %p5514 = pneg %p5513
    $region34: #{model_forward.2} parent=5 // pred_check_branch
      %5516 = sbr.rel (%p5514) target = $region36
    $region35: #{model_forward.2} parent=5 // pred_region
      %s5517 = ssub.s32 %s8, 2
      // Predicated region
      $region37: #{model_forward.2} parent=35 // pred_check
        %p5518 = pneg %p89
      $region38: #{model_forward.2} parent=35 // pred_check_branch
        %5520 = sbr.rel (%p5518) target = $region40
      $region39: #{model_forward.2} parent=35 // pred_region
        %s5521 = smul.u32 2, %s14
        %p5522 = scmp.lt.s32.totalorder %s5521, 3
        %s5523 = scalar_select %p5522, %s5521, 3
        %s5524 = smul.addr %s5523, 8
        %s5525 = smul.addr %s5524, 2
        %s5526 = scalar_lea.vmem %s2, %s5525
      $region40: #{model_forward.2} parent=35 // pred_fallthru
        _
    $region36: #{model_forward.2} parent=5 // pred_fallthru
      _
  $region6: #{model_forward.2} parent=0 // loop_footer
    %s12 = sadd.s32 1, %s8
  $region7: #{model_forward.2} parent=0 // loop_footer_branch
    %7 = sbr.rel target = $region3
  $region8: #{model_forward.2} parent=0 // loop_exit
    _

</llo_original>
